<compile_context>
chip_gen: v6e
topology: v6e:2x2x1
jax: 0.10.0
libtpu: 0.0.40
codegen_flags: <defaults>
</compile_context>

<pallas_src>
import functools

import numpy as np
import jax
import jax.numpy as jnp
from jax.experimental import pallas as pl
from jax.experimental.pallas import tpu as pltpu

LANES = 128          # TPU lane width; every activation / weight is padded to it
LEAKY_SLOPE = 0.01


# ----------------------------------------------------------------------------
# Parameter init (raw HWIO conv weights, same semantics as the PyTorch module).
# ----------------------------------------------------------------------------
def init_discriminator_params(key, image_size=16, conv_dim=8, c_dim=5,
                              repeat_num=3):
    params = {"main": []}
    keys = jax.random.split(key, 2 * repeat_num + 2)
    cin, cout = 1, conv_dim
    for i in range(repeat_num):
        w = jax.random.normal(keys[2 * i], (4, 4, cin, cout), jnp.float32) * 0.05
        b = jax.random.normal(keys[2 * i + 1], (cout,), jnp.float32) * 0.05
        params["main"].append((w, b))
        cin, cout = cout, cout * 2
    curr_dim = cin
    params["conv1_w"] = (
        jax.random.normal(keys[-2], (3, 3, curr_dim, 1), jnp.float32) * 0.05)
    ksize = image_size // (2 ** repeat_num)
    params["conv2_w"] = (
        jax.random.normal(keys[-1], (ksize, ksize, curr_dim, c_dim), jnp.float32)
        * 0.05)
    return params


# ----------------------------------------------------------------------------
# One-time host-side weight packing: unroll the W axis (padding folded in) into
# small banded matrices, zero-padded to (128, 128) so every GEMM is lane-dense.
# ----------------------------------------------------------------------------
def _unroll_w(w_hwio, w_in, w_out, stride, pad):
    """B[i, w*Cin+ci, wo*Cout+co] = W[i, j, ci, co]  with  j = w - stride*wo + pad."""
    kh, kw, cin, cout = w_hwio.shape
    assert w_in * cin <= LANES and w_out * cout <= LANES
    w_np = np.asarray(jax.device_get(w_hwio), np.float32)
    B = np.zeros((kh, LANES, LANES), np.float32)
    for i in range(kh):
        for wo in range(w_out):
            for j in range(kw):
                w = stride * wo + j - pad
                if 0 <= w < w_in:
                    B[i, w * cin:(w + 1) * cin,
                      wo * cout:(wo + 1) * cout] = w_np[i, j]
    return B


def pack_discriminator(params, image_size, compute_dtype=jnp.float32):
    """compute_dtype: dtype of the MXU operands (f32 for v5e / strict checks,
    bf16 for the v6e/v7x fast path).  Accumulation is always f32."""
    curr = image_size
    b_list, bias_list = [], []
    for (w, b) in params["main"]:
        kh, kw, cin, cout = w.shape
        h_out = (curr + 2 - kh) // 2 + 1          # k=4, s=2, p=1
        w_out = h_out                              # square images
        b_list.append(_unroll_w(w, curr, w_out, stride=2, pad=1))
        bias_row = np.zeros((1, LANES), np.float32)
        bias_row[0, :w_out * cout] = np.tile(
            np.asarray(jax.device_get(b), np.float32), w_out)
        bias_list.append(bias_row)
        curr = h_out

    packed = {
        "b_main": jnp.asarray(np.stack(b_list), compute_dtype),      # (L,4,128,128)
        "bias_main": jnp.asarray(np.stack(bias_list), jnp.float32),  # (L,1,128)
    }
    # conv1 head: 3x3, stride 1, pad 1, no bias.
    packed["b_src"] = jnp.asarray(
        _unroll_w(params["conv1_w"], curr, curr, stride=1, pad=1), compute_dtype)
    # conv2 head: ksize x ksize over the full feature map, no pad, no bias.
    w2 = np.asarray(jax.device_get(params["conv2_w"]), np.float32)
    ksize, _, cin2, c_dim = w2.shape
    assert ksize == curr and ksize * cin2 <= ksize * LANES
    B5 = np.zeros((ksize * LANES, LANES), np.float32)   # flat single-GEMM weight
    for h in range(ksize):
        for w in range(ksize):
            B5[h * LANES + w * cin2: h * LANES + (w + 1) * cin2, :c_dim] = w2[h, w]
    packed["b_cls"] = jnp.asarray(B5, compute_dtype)

    packed["num_main"] = len(params["main"])
    packed["h0"] = image_size
    packed["hs"] = curr
    packed["ws"] = curr
    packed["c_dim"] = int(c_dim)
    return packed


# ----------------------------------------------------------------------------
# The fused Pallas kernel: one grid step == one block of B_BLK images, fully
# VMEM-resident.  refs = (inputs..., outputs..., scratch).
# ----------------------------------------------------------------------------
def _disc_kernel(x_ref, bmain_ref, bias_ref, bsrc_ref, bcls_ref,
                 src_ref, cls_ref, pad_ref,
                 *, num_main, b_blk, h0, ksize, compute_dtype):
    f32 = jnp.float32

    def write_padded(act, h_in):
        """Store act (b_blk*h_in, 128) per-image into pad_ref with one zero row
        above and below each image (H-axis conv padding folded into layout)."""
        h_pad = h_in + 2
        zrow = jnp.zeros((1, LANES), f32)
        for b in range(b_blk):
            base = b * h_pad
            pad_ref[pl.ds(base, 1), :] = zrow
            pad_ref[pl.ds(base + 1, h_in), :] = act[b * h_in:(b + 1) * h_in, :]
            pad_ref[pl.ds(base + 1 + h_in, 1), :] = zrow
        return h_pad

    def gather_rows(h_pad, offset, h_out, stride):
        """Strided per-image row windows, stacked along M -> (b_blk*h_out, 128)."""
        parts = [pad_ref[pl.ds(b * h_pad + offset, h_out, stride=stride), :]
                 for b in range(b_blk)]
        return jnp.concatenate(parts, axis=0) if b_blk > 1 else parts[0]

    act = x_ref[...]                              # (b_blk*h0, 128) lane-padded f32
    h = h0

    # ---- main trunk: [conv k=4 s=2 p=1 -> +bias -> LeakyReLU(0.01)] * num_main
    for l in range(num_main):
        h_out = h // 2
        h_pad = write_padded(act, h)
        acc = None
        for i in range(4):                        # kh = 4 offsets, unrolled
            rows = gather_rows(h_pad, i, h_out, stride=2).astype(compute_dtype)
            term = jnp.dot(rows, bmain_ref[l, i], preferred_element_type=f32)
            acc = term if acc is None else acc + term
        acc = acc + bias_ref[l]                   # (1,128) broadcast, f32
        act = jnp.where(acc >= 0.0, acc, LEAKY_SLOPE * acc)   # f32 LeakyReLU
        h = h_out

    # ---- conv1 head: 3x3, s=1, p=1, no bias -> lane-dense out_src slab
    h_pad = write_padded(act, h)
    src = None
    for i in range(3):
        rows = gather_rows(h_pad, i, h, stride=1).astype(compute_dtype)
        term = jnp.dot(rows, bsrc_ref[i], preferred_element_type=f32)
        src = term if src is None else src + term
    src_ref[0] = src                              # (b_blk*h, 128) full-width store

    # ---- conv2 head: one fused GEMM over the flattened final feature map
    flat = jnp.concatenate(
        [jnp.concatenate(
            [act[b * ksize + r: b * ksize + r + 1, :] for r in range(ksize)],
            axis=1)
         for b in range(b_blk)], axis=0)          # (b_blk, ksize*128)
    cls = jnp.dot(flat.astype(compute_dtype), bcls_ref[...],
                  preferred_element_type=f32)
    cls_ref[0] = cls                              # (b_blk, 128) full-width store


# ----------------------------------------------------------------------------
# Wrapper: lane-pad the input, build BlockSpecs, call the single pallas_call,
# and slice the lane-dense output slabs back to the PyTorch shapes.
# ----------------------------------------------------------------------------
def discriminator_forward(packed, x_nchw, b_blk=4):
    N, C, H, W = x_nchw.shape
    h0, hs, ws, c_dim = packed["h0"], packed["hs"], packed["ws"], packed["c_dim"]
    assert C == 1 and H == h0 and W == h0 and W * C <= LANES

    b_blk = max(1, min(b_blk, N))
    n_pad = -(-N // b_blk) * b_blk
    grid = n_pad // b_blk

    # NHWC row-flat, zero-padded to 128 lanes, batch stacked along rows.
    x_rows = jnp.transpose(x_nchw, (0, 2, 3, 1)).reshape(N, H, W * C)
    x_rows = jnp.pad(x_rows, ((0, n_pad - N), (0, 0), (0, LANES - W * C)))
    x2 = x_rows.reshape(n_pad * H, LANES).astype(jnp.float32)

    pad_rows = b_blk * (h0 + 2)                   # padded-activation scratch rows

    kernel = functools.partial(
        _disc_kernel,
        num_main=packed["num_main"], b_blk=b_blk, h0=h0, ksize=hs,
        compute_dtype=packed["b_main"].dtype)

    out_src_slab, out_cls_slab = pl.pallas_call(
        kernel,
        grid=(grid,),
        in_specs=[
            pl.BlockSpec((b_blk * h0, LANES), lambda g: (g, 0)),
            pl.BlockSpec(packed["b_main"].shape, lambda g: (0, 0, 0, 0)),
            pl.BlockSpec(packed["bias_main"].shape, lambda g: (0, 0, 0)),
            pl.BlockSpec(packed["b_src"].shape, lambda g: (0, 0, 0)),
            pl.BlockSpec(packed["b_cls"].shape, lambda g: (0, 0)),
        ],
        out_specs=(
            pl.BlockSpec((1, b_blk * hs, LANES), lambda g: (g, 0, 0)),
            pl.BlockSpec((1, b_blk, LANES), lambda g: (g, 0, 0)),
        ),
        out_shape=(
            jax.ShapeDtypeStruct((grid, b_blk * hs, LANES), jnp.float32),
            jax.ShapeDtypeStruct((grid, b_blk, LANES), jnp.float32),
        ),
        scratch_shapes=[pltpu.VMEM((pad_rows, LANES), jnp.float32)],
        compiler_params=pltpu.CompilerParams(
            dimension_semantics=("parallel",),    # v7x: one batch block per TC
        ),
    )(x2, packed["b_main"], packed["bias_main"], packed["b_src"],
      packed["b_cls"])

    out_src = out_src_slab.reshape(n_pad, hs, LANES)[:N, :, :ws]
    out_src = out_src[:, None, :, :]              # NCHW, Cout = 1
    out_cls = out_cls_slab.reshape(n_pad, LANES)[:N, :c_dim]
    return out_src, out_cls


# ----------------------------------------------------------------------------
# Pure-JAX reference (lax.conv, HIGHEST precision) for correctness checking.
# ----------------------------------------------------------------------------
def _ref_conv(x_nhwc, w_hwio, bias, stride, pad):
    dn = jax.lax.conv_dimension_numbers(x_nhwc.shape, w_hwio.shape,
                                        ("NHWC", "HWIO", "NHWC"))
    y = jax.lax.conv_general_dilated(
        x_nhwc, w_hwio, (stride, stride), [(pad, pad), (pad, pad)],
        dimension_numbers=dn, precision=jax.lax.Precision.HIGHEST)
    return y + bias


def discriminator_forward_ref(params, x_nchw):
    h = jnp.transpose(x_nchw, (0, 2, 3, 1))
    for w, b in params["main"]:
        h = _ref_conv(h, w, b, 2, 1)
        h = jnp.where(h >= 0.0, h, LEAKY_SLOPE * h)
    out_src = _ref_conv(h, params["conv1_w"], jnp.zeros((1,), jnp.float32), 1, 1)
    out_src = jnp.transpose(out_src, (0, 3, 1, 2))
    c_dim = params["conv2_w"].shape[-1]
    out_cls = _ref_conv(h, params["conv2_w"], jnp.zeros((c_dim,), jnp.float32),
                        1, 0)
    return out_src, out_cls.reshape(out_cls.shape[0], c_dim)


if __name__ == "__main__":
    key = jax.random.PRNGKey(0)
    kp, kx = jax.random.split(key)

    # Small config consistent with the module: image_size=16, conv_dim=8,
    # c_dim=5, repeat_num=3 -> final feature map (N, 32, 2, 2), conv2 ksize=2.
    image_size, conv_dim, c_dim, repeat_num = 16, 8, 5, 3
    N = 8                                          # B_BLK=4 -> grid=2 (both TCs)
    params = init_discriminator_params(kp, image_size, conv_dim, c_dim,
                                       repeat_num)
    x = jax.random.normal(kx, (N, 1, image_size, image_size), jnp.float32)
    ref_src, ref_cls = discriminator_forward_ref(params, x)

    # f32 MXU operands (v5e path) — strict check vs. the lax.conv reference.
    packed_f32 = pack_discriminator(params, image_size,
                                    compute_dtype=jnp.float32)
    out_src, out_cls = discriminator_forward(packed_f32, x, b_blk=4)
    jax.block_until_ready((out_src, out_cls))
    assert out_src.shape == (N, 1, 2, 2), out_src.shape
    assert out_cls.shape == (N, c_dim), out_cls.shape
    assert jnp.allclose(out_src, ref_src, atol=1e-4, rtol=1e-4), \
        float(jnp.max(jnp.abs(out_src - ref_src)))
    assert jnp.allclose(out_cls, ref_cls, atol=1e-4, rtol=1e-4), \
        float(jnp.max(jnp.abs(out_cls - ref_cls)))

    # bf16 MXU operands, f32 accumulation (v6e/v7x fast path) — looser check.
    packed_bf16 = pack_discriminator(params, image_size,
                                     compute_dtype=jnp.bfloat16)
    out_src_b, out_cls_b = discriminator_forward(packed_bf16, x, b_blk=4)
    jax.block_until_ready((out_src_b, out_cls_b))
    assert jnp.allclose(out_src_b, ref_src, atol=2e-2, rtol=2e-2), \
        float(jnp.max(jnp.abs(out_src_b - ref_src)))
    assert jnp.allclose(out_cls_b, ref_cls, atol=2e-2, rtol=2e-2), \
        float(jnp.max(jnp.abs(out_cls_b - ref_cls)))

    print("KERNEL_OK")
</pallas_src>

<mosaic_0001>
module attributes {stable_mosaic.version = 11 : i64} {
  func.func @_disc_kernel(%arg0: i32, %arg1: memref<64x128xf32, #tpu.memory_space<vmem>>, %arg2: memref<3x4x128x128xf32, #tpu.memory_space<vmem>>, %arg3: memref<3x1x128xf32, #tpu.memory_space<vmem>>, %arg4: memref<3x128x128xf32, #tpu.memory_space<vmem>>, %arg5: memref<256x128xf32, #tpu.memory_space<vmem>>, %arg6: memref<1x8x128xf32, #tpu.memory_space<vmem>>, %arg7: memref<1x4x128xf32, #tpu.memory_space<vmem>>, %arg8: memref<72x128xf32, #tpu.memory_space<vmem>>) attributes {dimension_semantics = [#tpu.dimension_semantics<parallel>], iteration_bounds = array<i64: 2>, scalar_prefetch = 0 : i64, scratch_operands = 1 : i64, tpu.core_type = #tpu.core_type<tc>, window_params = [{transform_indices = @transform_0, window_bounds = array<i64: 64, 128>}, {pipeline_mode = #tpu.pipeline_mode<synchronous>, transform_indices = @transform_1, window_bounds = array<i64: 3, 4, 128, 128>}, {pipeline_mode = #tpu.pipeline_mode<synchronous>, transform_indices = @transform_2, window_bounds = array<i64: 3, 1, 128>}, {pipeline_mode = #tpu.pipeline_mode<synchronous>, transform_indices = @transform_3, window_bounds = array<i64: 3, 128, 128>}, {pipeline_mode = #tpu.pipeline_mode<synchronous>, transform_indices = @transform_4, window_bounds = array<i64: 256, 128>}, {transform_indices = @transform_5, window_bounds = array<i64: 1, 8, 128>}, {transform_indices = @transform_6, window_bounds = array<i64: 1, 4, 128>}]} {
    %c0 = arith.constant 0 : index
    %c0_0 = arith.constant 0 : index
    %0 = vector.load %arg1[%c0, %c0_0] : memref<64x128xf32, #tpu.memory_space<vmem>>, vector<64x128xf32>
    %cst = arith.constant 0.000000e+00 : f32
    %1 = vector.broadcast %cst : f32 to vector<1x128xf32>
    %c0_1 = arith.constant 0 : index
    %c0_2 = arith.constant 0 : index
    %2 = vector.load %arg8[%c0_1, %c0_2] : memref<72x128xf32, #tpu.memory_space<vmem>>, vector<1x128xf32>
    tpu.vector_store %arg8[%c0_1, %c0_2], %1 {strides = array<i32>} : memref<72x128xf32, #tpu.memory_space<vmem>>, vector<1x128xf32>,
    %3 = vector.extract_strided_slice %0 {offsets = [0, 0], sizes = [16, 128], strides = [1, 1]} : vector<64x128xf32> to vector<16x128xf32>
    %c1 = arith.constant 1 : index
    %c0_3 = arith.constant 0 : index
    %4 = vector.load %arg8[%c1, %c0_3] : memref<72x128xf32, #tpu.memory_space<vmem>>, vector<16x128xf32>
    tpu.vector_store %arg8[%c1, %c0_3], %3 {strides = array<i32>} : memref<72x128xf32, #tpu.memory_space<vmem>>, vector<16x128xf32>,
    %c17 = arith.constant 17 : index
    %c0_4 = arith.constant 0 : index
    %5 = vector.load %arg8[%c17, %c0_4] : memref<72x128xf32, #tpu.memory_space<vmem>>, vector<1x128xf32>
    tpu.vector_store %arg8[%c17, %c0_4], %1 {strides = array<i32>} : memref<72x128xf32, #tpu.memory_space<vmem>>, vector<1x128xf32>,
    %c18 = arith.constant 18 : index
    %c0_5 = arith.constant 0 : index
    %6 = vector.load %arg8[%c18, %c0_5] : memref<72x128xf32, #tpu.memory_space<vmem>>, vector<1x128xf32>
    tpu.vector_store %arg8[%c18, %c0_5], %1 {strides = array<i32>} : memref<72x128xf32, #tpu.memory_space<vmem>>, vector<1x128xf32>,
    %7 = vector.extract_strided_slice %0 {offsets = [16, 0], sizes = [16, 128], strides = [1, 1]} : vector<64x128xf32> to vector<16x128xf32>
    %c19 = arith.constant 19 : index
    %c0_6 = arith.constant 0 : index
    %8 = vector.load %arg8[%c19, %c0_6] : memref<72x128xf32, #tpu.memory_space<vmem>>, vector<16x128xf32>
    tpu.vector_store %arg8[%c19, %c0_6], %7 {strides = array<i32>} : memref<72x128xf32, #tpu.memory_space<vmem>>, vector<16x128xf32>,
    %c35 = arith.constant 35 : index
    %c0_7 = arith.constant 0 : index
    %9 = vector.load %arg8[%c35, %c0_7] : memref<72x128xf32, #tpu.memory_space<vmem>>, vector<1x128xf32>
    tpu.vector_store %arg8[%c35, %c0_7], %1 {strides = array<i32>} : memref<72x128xf32, #tpu.memory_space<vmem>>, vector<1x128xf32>,
    %c36 = arith.constant 36 : index
    %c0_8 = arith.constant 0 : index
    %10 = vector.load %arg8[%c36, %c0_8] : memref<72x128xf32, #tpu.memory_space<vmem>>, vector<1x128xf32>
    tpu.vector_store %arg8[%c36, %c0_8], %1 {strides = array<i32>} : memref<72x128xf32, #tpu.memory_space<vmem>>, vector<1x128xf32>,
    %11 = vector.extract_strided_slice %0 {offsets = [32, 0], sizes = [16, 128], strides = [1, 1]} : vector<64x128xf32> to vector<16x128xf32>
    %c37 = arith.constant 37 : index
    %c0_9 = arith.constant 0 : index
    %12 = vector.load %arg8[%c37, %c0_9] : memref<72x128xf32, #tpu.memory_space<vmem>>, vector<16x128xf32>
    tpu.vector_store %arg8[%c37, %c0_9], %11 {strides = array<i32>} : memref<72x128xf32, #tpu.memory_space<vmem>>, vector<16x128xf32>,
    %c53 = arith.constant 53 : index
    %c0_10 = arith.constant 0 : index
    %13 = vector.load %arg8[%c53, %c0_10] : memref<72x128xf32, #tpu.memory_space<vmem>>, vector<1x128xf32>
    tpu.vector_store %arg8[%c53, %c0_10], %1 {strides = array<i32>} : memref<72x128xf32, #tpu.memory_space<vmem>>, vector<1x128xf32>,
    %c54 = arith.constant 54 : index
    %c0_11 = arith.constant 0 : index
    %14 = vector.load %arg8[%c54, %c0_11] : memref<72x128xf32, #tpu.memory_space<vmem>>, vector<1x128xf32>
    tpu.vector_store %arg8[%c54, %c0_11], %1 {strides = array<i32>} : memref<72x128xf32, #tpu.memory_space<vmem>>, vector<1x128xf32>,
    %15 = vector.extract_strided_slice %0 {offsets = [48, 0], sizes = [16, 128], strides = [1, 1]} : vector<64x128xf32> to vector<16x128xf32>
    %c55 = arith.constant 55 : index
    %c0_12 = arith.constant 0 : index
    %16 = vector.load %arg8[%c55, %c0_12] : memref<72x128xf32, #tpu.memory_space<vmem>>, vector<16x128xf32>
    tpu.vector_store %arg8[%c55, %c0_12], %15 {strides = array<i32>} : memref<72x128xf32, #tpu.memory_space<vmem>>, vector<16x128xf32>,
    %c71 = arith.constant 71 : index
    %c0_13 = arith.constant 0 : index
    %17 = vector.load %arg8[%c71, %c0_13] : memref<72x128xf32, #tpu.memory_space<vmem>>, vector<1x128xf32>
    tpu.vector_store %arg8[%c71, %c0_13], %1 {strides = array<i32>} : memref<72x128xf32, #tpu.memory_space<vmem>>, vector<1x128xf32>,
    %c0_14 = arith.constant 0 : index
    %c0_15 = arith.constant 0 : index
    %18 = tpu.strided_load %arg8[%c0_14, %c0_15] {strides = array<i32: 2, 1>} : memref<72x128xf32, #tpu.memory_space<vmem>>, vector<8x128xf32>
    %c18_16 = arith.constant 18 : index
    %c0_17 = arith.constant 0 : index
    %19 = tpu.strided_load %arg8[%c18_16, %c0_17] {strides = array<i32: 2, 1>} : memref<72x128xf32, #tpu.memory_space<vmem>>, vector<8x128xf32>
    %c36_18 = arith.constant 36 : index
    %c0_19 = arith.constant 0 : index
    %20 = tpu.strided_load %arg8[%c36_18, %c0_19] {strides = array<i32: 2, 1>} : memref<72x128xf32, #tpu.memory_space<vmem>>, vector<8x128xf32>
    %c54_20 = arith.constant 54 : index
    %c0_21 = arith.constant 0 : index
    %21 = tpu.strided_load %arg8[%c54_20, %c0_21] {strides = array<i32: 2, 1>} : memref<72x128xf32, #tpu.memory_space<vmem>>, vector<8x128xf32>
    %22 = tpu.concatenate %18, %19, %20, %21 in 0 : vector<8x128xf32>, vector<8x128xf32>, vector<8x128xf32>, vector<8x128xf32> -> vector<32x128xf32>
    %c0_22 = arith.constant 0 : index
    %c0_23 = arith.constant 0 : index
    %c0_24 = arith.constant 0 : index
    %c0_25 = arith.constant 0 : index
    %23 = vector.load %arg2[%c0_22, %c0_23, %c0_24, %c0_25] : memref<3x4x128x128xf32, #tpu.memory_space<vmem>>, vector<1x1x128x128xf32>
    %24 = vector.shape_cast %23 : vector<1x1x128x128xf32> to vector<128x128xf32>
    %cst_26 = arith.constant dense<0.000000e+00> : vector<32x128xf32>
    %25 = tpu.matmul %22, %24, %cst_26 {dimension_numbers = #tpu.dot_dimension_numbers<[1], [0], [0], [1], [0, 0, 1, 1], [], []>} : vector<32x128xf32>, vector<128x128xf32>, vector<32x128xf32> -> vector<32x128xf32>
    %c1_27 = arith.constant 1 : index
    %c0_28 = arith.constant 0 : index
    %26 = tpu.strided_load %arg8[%c1_27, %c0_28] {strides = array<i32: 2, 1>} : memref<72x128xf32, #tpu.memory_space<vmem>>, vector<8x128xf32>
    %c19_29 = arith.constant 19 : index
    %c0_30 = arith.constant 0 : index
    %27 = tpu.strided_load %arg8[%c19_29, %c0_30] {strides = array<i32: 2, 1>} : memref<72x128xf32, #tpu.memory_space<vmem>>, vector<8x128xf32>
    %c37_31 = arith.constant 37 : index
    %c0_32 = arith.constant 0 : index
    %28 = tpu.strided_load %arg8[%c37_31, %c0_32] {strides = array<i32: 2, 1>} : memref<72x128xf32, #tpu.memory_space<vmem>>, vector<8x128xf32>
    %c55_33 = arith.constant 55 : index
    %c0_34 = arith.constant 0 : index
    %29 = tpu.strided_load %arg8[%c55_33, %c0_34] {strides = array<i32: 2, 1>} : memref<72x128xf32, #tpu.memory_space<vmem>>, vector<8x128xf32>
    %30 = tpu.concatenate %26, %27, %28, %29 in 0 : vector<8x128xf32>, vector<8x128xf32>, vector<8x128xf32>, vector<8x128xf32> -> vector<32x128xf32>
    %c0_35 = arith.constant 0 : index
    %c1_36 = arith.constant 1 : index
    %c0_37 = arith.constant 0 : index
    %c0_38 = arith.constant 0 : index
    %31 = vector.load %arg2[%c0_35, %c1_36, %c0_37, %c0_38] : memref<3x4x128x128xf32, #tpu.memory_space<vmem>>, vector<1x1x128x128xf32>
    %32 = vector.shape_cast %31 : vector<1x1x128x128xf32> to vector<128x128xf32>
    %cst_39 = arith.constant dense<0.000000e+00> : vector<32x128xf32>
    %33 = tpu.matmul %30, %32, %cst_39 {dimension_numbers = #tpu.dot_dimension_numbers<[1], [0], [0], [1], [0, 0, 1, 1], [], []>} : vector<32x128xf32>, vector<128x128xf32>, vector<32x128xf32> -> vector<32x128xf32>
    %34 = arith.addf %25, %33 : vector<32x128xf32>
    %c2 = arith.constant 2 : index
    %c0_40 = arith.constant 0 : index
    %35 = tpu.strided_load %arg8[%c2, %c0_40] {strides = array<i32: 2, 1>} : memref<72x128xf32, #tpu.memory_space<vmem>>, vector<8x128xf32>
    %c20 = arith.constant 20 : index
    %c0_41 = arith.constant 0 : index
    %36 = tpu.strided_load %arg8[%c20, %c0_41] {strides = array<i32: 2, 1>} : memref<72x128xf32, #tpu.memory_space<vmem>>, vector<8x128xf32>
    %c38 = arith.constant 38 : index
    %c0_42 = arith.constant 0 : index
    %37 = tpu.strided_load %arg8[%c38, %c0_42] {strides = array<i32: 2, 1>} : memref<72x128xf32, #tpu.memory_space<vmem>>, vector<8x128xf32>
    %c56 = arith.constant 56 : index
    %c0_43 = arith.constant 0 : index
    %38 = tpu.strided_load %arg8[%c56, %c0_43] {strides = array<i32: 2, 1>} : memref<72x128xf32, #tpu.memory_space<vmem>>, vector<8x128xf32>
    %39 = tpu.concatenate %35, %36, %37, %38 in 0 : vector<8x128xf32>, vector<8x128xf32>, vector<8x128xf32>, vector<8x128xf32> -> vector<32x128xf32>
    %c0_44 = arith.constant 0 : index
    %c2_45 = arith.constant 2 : index
    %c0_46 = arith.constant 0 : index
    %c0_47 = arith.constant 0 : index
    %40 = vector.load %arg2[%c0_44, %c2_45, %c0_46, %c0_47] : memref<3x4x128x128xf32, #tpu.memory_space<vmem>>, vector<1x1x128x128xf32>
    %41 = vector.shape_cast %40 : vector<1x1x128x128xf32> to vector<128x128xf32>
    %cst_48 = arith.constant dense<0.000000e+00> : vector<32x128xf32>
    %42 = tpu.matmul %39, %41, %cst_48 {dimension_numbers = #tpu.dot_dimension_numbers<[1], [0], [0], [1], [0, 0, 1, 1], [], []>} : vector<32x128xf32>, vector<128x128xf32>, vector<32x128xf32> -> vector<32x128xf32>
    %43 = arith.addf %34, %42 : vector<32x128xf32>
    %c3 = arith.constant 3 : index
    %c0_49 = arith.constant 0 : index
    %44 = tpu.strided_load %arg8[%c3, %c0_49] {strides = array<i32: 2, 1>} : memref<72x128xf32, #tpu.memory_space<vmem>>, vector<8x128xf32>
    %c21 = arith.constant 21 : index
    %c0_50 = arith.constant 0 : index
    %45 = tpu.strided_load %arg8[%c21, %c0_50] {strides = array<i32: 2, 1>} : memref<72x128xf32, #tpu.memory_space<vmem>>, vector<8x128xf32>
    %c39 = arith.constant 39 : index
    %c0_51 = arith.constant 0 : index
    %46 = tpu.strided_load %arg8[%c39, %c0_51] {strides = array<i32: 2, 1>} : memref<72x128xf32, #tpu.memory_space<vmem>>, vector<8x128xf32>
    %c57 = arith.constant 57 : index
    %c0_52 = arith.constant 0 : index
    %47 = tpu.strided_load %arg8[%c57, %c0_52] {strides = array<i32: 2, 1>} : memref<72x128xf32, #tpu.memory_space<vmem>>, vector<8x128xf32>
    %48 = tpu.concatenate %44, %45, %46, %47 in 0 : vector<8x128xf32>, vector<8x128xf32>, vector<8x128xf32>, vector<8x128xf32> -> vector<32x128xf32>
    %c0_53 = arith.constant 0 : index
    %c3_54 = arith.constant 3 : index
    %c0_55 = arith.constant 0 : index
    %c0_56 = arith.constant 0 : index
    %49 = vector.load %arg2[%c0_53, %c3_54, %c0_55, %c0_56] : memref<3x4x128x128xf32, #tpu.memory_space<vmem>>, vector<1x1x128x128xf32>
    %50 = vector.shape_cast %49 : vector<1x1x128x128xf32> to vector<128x128xf32>
    %cst_57 = arith.constant dense<0.000000e+00> : vector<32x128xf32>
    %51 = tpu.matmul %48, %50, %cst_57 {dimension_numbers = #tpu.dot_dimension_numbers<[1], [0], [0], [1], [0, 0, 1, 1], [], []>} : vector<32x128xf32>, vector<128x128xf32>, vector<32x128xf32> -> vector<32x128xf32>
    %52 = arith.addf %43, %51 : vector<32x128xf32>
    %c0_58 = arith.constant 0 : index
    %c0_59 = arith.constant 0 : index
    %c0_60 = arith.constant 0 : index
    %53 = vector.load %arg3[%c0_58, %c0_59, %c0_60] : memref<3x1x128xf32, #tpu.memory_space<vmem>>, vector<1x1x128xf32>
    %54 = vector.shape_cast %53 : vector<1x1x128xf32> to vector<1x128xf32>
    %55 = vector.broadcast %54 : vector<1x128xf32> to vector<32x128xf32>
    %56 = arith.addf %52, %55 : vector<32x128xf32>
    %cst_61 = arith.constant 0.000000e+00 : f32
    %57 = vector.broadcast %cst_61 : f32 to vector<32x128xf32>
    %58 = arith.cmpf oge, %56, %57 : vector<32x128xf32>
    %cst_62 = arith.constant 0.00999999977 : f32
    %59 = vector.broadcast %cst_62 : f32 to vector<32x128xf32>
    %60 = arith.mulf %59, %56 : vector<32x128xf32>
    %61 = arith.select %58, %56, %60 : vector<32x128xi1>, vector<32x128xf32>
    %cst_63 = arith.constant 0.000000e+00 : f32
    %62 = vector.broadcast %cst_63 : f32 to vector<1x128xf32>
    %c0_64 = arith.constant 0 : index
    %c0_65 = arith.constant 0 : index
    %63 = vector.load %arg8[%c0_64, %c0_65] : memref<72x128xf32, #tpu.memory_space<vmem>>, vector<1x128xf32>
    tpu.vector_store %arg8[%c0_64, %c0_65], %62 {strides = array<i32>} : memref<72x128xf32, #tpu.memory_space<vmem>>, vector<1x128xf32>,
    %64 = vector.extract_strided_slice %61 {offsets = [0, 0], sizes = [8, 128], strides = [1, 1]} : vector<32x128xf32> to vector<8x128xf32>
    %c1_66 = arith.constant 1 : index
    %c0_67 = arith.constant 0 : index
    %65 = vector.load %arg8[%c1_66, %c0_67] : memref<72x128xf32, #tpu.memory_space<vmem>>, vector<8x128xf32>
    tpu.vector_store %arg8[%c1_66, %c0_67], %64 {strides = array<i32>} : memref<72x128xf32, #tpu.memory_space<vmem>>, vector<8x128xf32>,
    %c9 = arith.constant 9 : index
    %c0_68 = arith.constant 0 : index
    %66 = vector.load %arg8[%c9, %c0_68] : memref<72x128xf32, #tpu.memory_space<vmem>>, vector<1x128xf32>
    tpu.vector_store %arg8[%c9, %c0_68], %62 {strides = array<i32>} : memref<72x128xf32, #tpu.memory_space<vmem>>, vector<1x128xf32>,
    %c10 = arith.constant 10 : index
    %c0_69 = arith.constant 0 : index
    %67 = vector.load %arg8[%c10, %c0_69] : memref<72x128xf32, #tpu.memory_space<vmem>>, vector<1x128xf32>
    tpu.vector_store %arg8[%c10, %c0_69], %62 {strides = array<i32>} : memref<72x128xf32, #tpu.memory_space<vmem>>, vector<1x128xf32>,
    %68 = vector.extract_strided_slice %61 {offsets = [8, 0], sizes = [8, 128], strides = [1, 1]} : vector<32x128xf32> to vector<8x128xf32>
    %c11 = arith.constant 11 : index
    %c0_70 = arith.constant 0 : index
    %69 = vector.load %arg8[%c11, %c0_70] : memref<72x128xf32, #tpu.memory_space<vmem>>, vector<8x128xf32>
    tpu.vector_store %arg8[%c11, %c0_70], %68 {strides = array<i32>} : memref<72x128xf32, #tpu.memory_space<vmem>>, vector<8x128xf32>,
    %c19_71 = arith.constant 19 : index
    %c0_72 = arith.constant 0 : index
    %70 = vector.load %arg8[%c19_71, %c0_72] : memref<72x128xf32, #tpu.memory_space<vmem>>, vector<1x128xf32>
    tpu.vector_store %arg8[%c19_71, %c0_72], %62 {strides = array<i32>} : memref<72x128xf32, #tpu.memory_space<vmem>>, vector<1x128xf32>,
    %c20_73 = arith.constant 20 : index
    %c0_74 = arith.constant 0 : index
    %71 = vector.load %arg8[%c20_73, %c0_74] : memref<72x128xf32, #tpu.memory_space<vmem>>, vector<1x128xf32>
    tpu.vector_store %arg8[%c20_73, %c0_74], %62 {strides = array<i32>} : memref<72x128xf32, #tpu.memory_space<vmem>>, vector<1x128xf32>,
    %72 = vector.extract_strided_slice %61 {offsets = [16, 0], sizes = [8, 128], strides = [1, 1]} : vector<32x128xf32> to vector<8x128xf32>
    %c21_75 = arith.constant 21 : index
    %c0_76 = arith.constant 0 : index
    %73 = vector.load %arg8[%c21_75, %c0_76] : memref<72x128xf32, #tpu.memory_space<vmem>>, vector<8x128xf32>
    tpu.vector_store %arg8[%c21_75, %c0_76], %72 {strides = array<i32>} : memref<72x128xf32, #tpu.memory_space<vmem>>, vector<8x128xf32>,
    %c29 = arith.constant 29 : index
    %c0_77 = arith.constant 0 : index
    %74 = vector.load %arg8[%c29, %c0_77] : memref<72x128xf32, #tpu.memory_space<vmem>>, vector<1x128xf32>
    tpu.vector_store %arg8[%c29, %c0_77], %62 {strides = array<i32>} : memref<72x128xf32, #tpu.memory_space<vmem>>, vector<1x128xf32>,
    %c30 = arith.constant 30 : index
    %c0_78 = arith.constant 0 : index
    %75 = vector.load %arg8[%c30, %c0_78] : memref<72x128xf32, #tpu.memory_space<vmem>>, vector<1x128xf32>
    tpu.vector_store %arg8[%c30, %c0_78], %62 {strides = array<i32>} : memref<72x128xf32, #tpu.memory_space<vmem>>, vector<1x128xf32>,
    %76 = vector.extract_strided_slice %61 {offsets = [24, 0], sizes = [8, 128], strides = [1, 1]} : vector<32x128xf32> to vector<8x128xf32>
    %c31 = arith.constant 31 : index
    %c0_79 = arith.constant 0 : index
    %77 = vector.load %arg8[%c31, %c0_79] : memref<72x128xf32, #tpu.memory_space<vmem>>, vector<8x128xf32>
    tpu.vector_store %arg8[%c31, %c0_79], %76 {strides = array<i32>} : memref<72x128xf32, #tpu.memory_space<vmem>>, vector<8x128xf32>,
    %c39_80 = arith.constant 39 : index
    %c0_81 = arith.constant 0 : index
    %78 = vector.load %arg8[%c39_80, %c0_81] : memref<72x128xf32, #tpu.memory_space<vmem>>, vector<1x128xf32>
    tpu.vector_store %arg8[%c39_80, %c0_81], %62 {strides = array<i32>} : memref<72x128xf32, #tpu.memory_space<vmem>>, vector<1x128xf32>,
    %c0_82 = arith.constant 0 : index
    %c0_83 = arith.constant 0 : index
    %79 = tpu.strided_load %arg8[%c0_82, %c0_83] {strides = array<i32: 2, 1>} : memref<72x128xf32, #tpu.memory_space<vmem>>, vector<4x128xf32>
    %c10_84 = arith.constant 10 : index
    %c0_85 = arith.constant 0 : index
    %80 = tpu.strided_load %arg8[%c10_84, %c0_85] {strides = array<i32: 2, 1>} : memref<72x128xf32, #tpu.memory_space<vmem>>, vector<4x128xf32>
    %c20_86 = arith.constant 20 : index
    %c0_87 = arith.constant 0 : index
    %81 = tpu.strided_load %arg8[%c20_86, %c0_87] {strides = array<i32: 2, 1>} : memref<72x128xf32, #tpu.memory_space<vmem>>, vector<4x128xf32>
    %c30_88 = arith.constant 30 : index
    %c0_89 = arith.constant 0 : index
    %82 = tpu.strided_load %arg8[%c30_88, %c0_89] {strides = array<i32: 2, 1>} : memref<72x128xf32, #tpu.memory_space<vmem>>, vector<4x128xf32>
    %83 = tpu.concatenate %79, %80, %81, %82 in 0 : vector<4x128xf32>, vector<4x128xf32>, vector<4x128xf32>, vector<4x128xf32> -> vector<16x128xf32>
    %c1_90 = arith.constant 1 : index
    %c0_91 = arith.constant 0 : index
    %c0_92 = arith.constant 0 : index
    %c0_93 = arith.constant 0 : index
    %84 = vector.load %arg2[%c1_90, %c0_91, %c0_92, %c0_93] : memref<3x4x128x128xf32, #tpu.memory_space<vmem>>, vector<1x1x128x128xf32>
    %85 = vector.shape_cast %84 : vector<1x1x128x128xf32> to vector<128x128xf32>
    %cst_94 = arith.constant dense<0.000000e+00> : vector<16x128xf32>
    %86 = tpu.matmul %83, %85, %cst_94 {dimension_numbers = #tpu.dot_dimension_numbers<[1], [0], [0], [1], [0, 0, 1, 1], [], []>} : vector<16x128xf32>, vector<128x128xf32>, vector<16x128xf32> -> vector<16x128xf32>
    %c1_95 = arith.constant 1 : index
    %c0_96 = arith.constant 0 : index
    %87 = tpu.strided_load %arg8[%c1_95, %c0_96] {strides = array<i32: 2, 1>} : memref<72x128xf32, #tpu.memory_space<vmem>>, vector<4x128xf32>
    %c11_97 = arith.constant 11 : index
    %c0_98 = arith.constant 0 : index
    %88 = tpu.strided_load %arg8[%c11_97, %c0_98] {strides = array<i32: 2, 1>} : memref<72x128xf32, #tpu.memory_space<vmem>>, vector<4x128xf32>
    %c21_99 = arith.constant 21 : index
    %c0_100 = arith.constant 0 : index
    %89 = tpu.strided_load %arg8[%c21_99, %c0_100] {strides = array<i32: 2, 1>} : memref<72x128xf32, #tpu.memory_space<vmem>>, vector<4x128xf32>
    %c31_101 = arith.constant 31 : index
    %c0_102 = arith.constant 0 : index
    %90 = tpu.strided_load %arg8[%c31_101, %c0_102] {strides = array<i32: 2, 1>} : memref<72x128xf32, #tpu.memory_space<vmem>>, vector<4x128xf32>
    %91 = tpu.concatenate %87, %88, %89, %90 in 0 : vector<4x128xf32>, vector<4x128xf32>, vector<4x128xf32>, vector<4x128xf32> -> vector<16x128xf32>
    %c1_103 = arith.constant 1 : index
    %c1_104 = arith.constant 1 : index
    %c0_105 = arith.constant 0 : index
    %c0_106 = arith.constant 0 : index
    %92 = vector.load %arg2[%c1_103, %c1_104, %c0_105, %c0_106] : memref<3x4x128x128xf32, #tpu.memory_space<vmem>>, vector<1x1x128x128xf32>
    %93 = vector.shape_cast %92 : vector<1x1x128x128xf32> to vector<128x128xf32>
    %cst_107 = arith.constant dense<0.000000e+00> : vector<16x128xf32>
    %94 = tpu.matmul %91, %93, %cst_107 {dimension_numbers = #tpu.dot_dimension_numbers<[1], [0], [0], [1], [0, 0, 1, 1], [], []>} : vector<16x128xf32>, vector<128x128xf32>, vector<16x128xf32> -> vector<16x128xf32>
    %95 = arith.addf %86, %94 : vector<16x128xf32>
    %c2_108 = arith.constant 2 : index
    %c0_109 = arith.constant 0 : index
    %96 = tpu.strided_load %arg8[%c2_108, %c0_109] {strides = array<i32: 2, 1>} : memref<72x128xf32, #tpu.memory_space<vmem>>, vector<4x128xf32>
    %c12 = arith.constant 12 : index
    %c0_110 = arith.constant 0 : index
    %97 = tpu.strided_load %arg8[%c12, %c0_110] {strides = array<i32: 2, 1>} : memref<72x128xf32, #tpu.memory_space<vmem>>, vector<4x128xf32>
    %c22 = arith.constant 22 : index
    %c0_111 = arith.constant 0 : index
    %98 = tpu.strided_load %arg8[%c22, %c0_111] {strides = array<i32: 2, 1>} : memref<72x128xf32, #tpu.memory_space<vmem>>, vector<4x128xf32>
    %c32 = arith.constant 32 : index
    %c0_112 = arith.constant 0 : index
    %99 = tpu.strided_load %arg8[%c32, %c0_112] {strides = array<i32: 2, 1>} : memref<72x128xf32, #tpu.memory_space<vmem>>, vector<4x128xf32>
    %100 = tpu.concatenate %96, %97, %98, %99 in 0 : vector<4x128xf32>, vector<4x128xf32>, vector<4x128xf32>, vector<4x128xf32> -> vector<16x128xf32>
    %c1_113 = arith.constant 1 : index
    %c2_114 = arith.constant 2 : index
    %c0_115 = arith.constant 0 : index
    %c0_116 = arith.constant 0 : index
    %101 = vector.load %arg2[%c1_113, %c2_114, %c0_115, %c0_116] : memref<3x4x128x128xf32, #tpu.memory_space<vmem>>, vector<1x1x128x128xf32>
    %102 = vector.shape_cast %101 : vector<1x1x128x128xf32> to vector<128x128xf32>
    %cst_117 = arith.constant dense<0.000000e+00> : vector<16x128xf32>
    %103 = tpu.matmul %100, %102, %cst_117 {dimension_numbers = #tpu.dot_dimension_numbers<[1], [0], [0], [1], [0, 0, 1, 1], [], []>} : vector<16x128xf32>, vector<128x128xf32>, vector<16x128xf32> -> vector<16x128xf32>
    %104 = arith.addf %95, %103 : vector<16x128xf32>
    %c3_118 = arith.constant 3 : index
    %c0_119 = arith.constant 0 : index
    %105 = tpu.strided_load %arg8[%c3_118, %c0_119] {strides = array<i32: 2, 1>} : memref<72x128xf32, #tpu.memory_space<vmem>>, vector<4x128xf32>
    %c13 = arith.constant 13 : index
    %c0_120 = arith.constant 0 : index
    %106 = tpu.strided_load %arg8[%c13, %c0_120] {strides = array<i32: 2, 1>} : memref<72x128xf32, #tpu.memory_space<vmem>>, vector<4x128xf32>
    %c23 = arith.constant 23 : index
    %c0_121 = arith.constant 0 : index
    %107 = tpu.strided_load %arg8[%c23, %c0_121] {strides = array<i32: 2, 1>} : memref<72x128xf32, #tpu.memory_space<vmem>>, vector<4x128xf32>
    %c33 = arith.constant 33 : index
    %c0_122 = arith.constant 0 : index
    %108 = tpu.strided_load %arg8[%c33, %c0_122] {strides = array<i32: 2, 1>} : memref<72x128xf32, #tpu.memory_space<vmem>>, vector<4x128xf32>
    %109 = tpu.concatenate %105, %106, %107, %108 in 0 : vector<4x128xf32>, vector<4x128xf32>, vector<4x128xf32>, vector<4x128xf32> -> vector<16x128xf32>
    %c1_123 = arith.constant 1 : index
    %c3_124 = arith.constant 3 : index
    %c0_125 = arith.constant 0 : index
    %c0_126 = arith.constant 0 : index
    %110 = vector.load %arg2[%c1_123, %c3_124, %c0_125, %c0_126] : memref<3x4x128x128xf32, #tpu.memory_space<vmem>>, vector<1x1x128x128xf32>
    %111 = vector.shape_cast %110 : vector<1x1x128x128xf32> to vector<128x128xf32>
    %cst_127 = arith.constant dense<0.000000e+00> : vector<16x128xf32>
    %112 = tpu.matmul %109, %111, %cst_127 {dimension_numbers = #tpu.dot_dimension_numbers<[1], [0], [0], [1], [0, 0, 1, 1], [], []>} : vector<16x128xf32>, vector<128x128xf32>, vector<16x128xf32> -> vector<16x128xf32>
    %113 = arith.addf %104, %112 : vector<16x128xf32>
    %c1_128 = arith.constant 1 : index
    %c0_129 = arith.constant 0 : index
    %c0_130 = arith.constant 0 : index
    %114 = vector.load %arg3[%c1_128, %c0_129, %c0_130] : memref<3x1x128xf32, #tpu.memory_space<vmem>>, vector<1x1x128xf32>
    %115 = vector.shape_cast %114 : vector<1x1x128xf32> to vector<1x128xf32>
    %116 = vector.broadcast %115 : vector<1x128xf32> to vector<16x128xf32>
    %117 = arith.addf %113, %116 : vector<16x128xf32>
    %cst_131 = arith.constant 0.000000e+00 : f32
    %118 = vector.broadcast %cst_131 : f32 to vector<16x128xf32>
    %119 = arith.cmpf oge, %117, %118 : vector<16x128xf32>
    %cst_132 = arith.constant 0.00999999977 : f32
    %120 = vector.broadcast %cst_132 : f32 to vector<16x128xf32>
    %121 = arith.mulf %120, %117 : vector<16x128xf32>
    %122 = arith.select %119, %117, %121 : vector<16x128xi1>, vector<16x128xf32>
    %cst_133 = arith.constant 0.000000e+00 : f32
    %123 = vector.broadcast %cst_133 : f32 to vector<1x128xf32>
    %c0_134 = arith.constant 0 : index
    %c0_135 = arith.constant 0 : index
    %124 = vector.load %arg8[%c0_134, %c0_135] : memref<72x128xf32, #tpu.memory_space<vmem>>, vector<1x128xf32>
    tpu.vector_store %arg8[%c0_134, %c0_135], %123 {strides = array<i32>} : memref<72x128xf32, #tpu.memory_space<vmem>>, vector<1x128xf32>,
    %125 = vector.extract_strided_slice %122 {offsets = [0, 0], sizes = [4, 128], strides = [1, 1]} : vector<16x128xf32> to vector<4x128xf32>
    %c1_136 = arith.constant 1 : index
    %c0_137 = arith.constant 0 : index
    %126 = vector.load %arg8[%c1_136, %c0_137] : memref<72x128xf32, #tpu.memory_space<vmem>>, vector<4x128xf32>
    tpu.vector_store %arg8[%c1_136, %c0_137], %125 {strides = array<i32>} : memref<72x128xf32, #tpu.memory_space<vmem>>, vector<4x128xf32>,
    %c5 = arith.constant 5 : index
    %c0_138 = arith.constant 0 : index
    %127 = vector.load %arg8[%c5, %c0_138] : memref<72x128xf32, #tpu.memory_space<vmem>>, vector<1x128xf32>
    tpu.vector_store %arg8[%c5, %c0_138], %123 {strides = array<i32>} : memref<72x128xf32, #tpu.memory_space<vmem>>, vector<1x128xf32>,
    %c6 = arith.constant 6 : index
    %c0_139 = arith.constant 0 : index
    %128 = vector.load %arg8[%c6, %c0_139] : memref<72x128xf32, #tpu.memory_space<vmem>>, vector<1x128xf32>
    tpu.vector_store %arg8[%c6, %c0_139], %123 {strides = array<i32>} : memref<72x128xf32, #tpu.memory_space<vmem>>, vector<1x128xf32>,
    %129 = vector.extract_strided_slice %122 {offsets = [4, 0], sizes = [4, 128], strides = [1, 1]} : vector<16x128xf32> to vector<4x128xf32>
    %c7 = arith.constant 7 : index
    %c0_140 = arith.constant 0 : index
    %130 = vector.load %arg8[%c7, %c0_140] : memref<72x128xf32, #tpu.memory_space<vmem>>, vector<4x128xf32>
    tpu.vector_store %arg8[%c7, %c0_140], %129 {strides = array<i32>} : memref<72x128xf32, #tpu.memory_space<vmem>>, vector<4x128xf32>,
    %c11_141 = arith.constant 11 : index
    %c0_142 = arith.constant 0 : index
    %131 = vector.load %arg8[%c11_141, %c0_142] : memref<72x128xf32, #tpu.memory_space<vmem>>, vector<1x128xf32>
    tpu.vector_store %arg8[%c11_141, %c0_142], %123 {strides = array<i32>} : memref<72x128xf32, #tpu.memory_space<vmem>>, vector<1x128xf32>,
    %c12_143 = arith.constant 12 : index
    %c0_144 = arith.constant 0 : index
    %132 = vector.load %arg8[%c12_143, %c0_144] : memref<72x128xf32, #tpu.memory_space<vmem>>, vector<1x128xf32>
    tpu.vector_store %arg8[%c12_143, %c0_144], %123 {strides = array<i32>} : memref<72x128xf32, #tpu.memory_space<vmem>>, vector<1x128xf32>,
    %133 = vector.extract_strided_slice %122 {offsets = [8, 0], sizes = [4, 128], strides = [1, 1]} : vector<16x128xf32> to vector<4x128xf32>
    %c13_145 = arith.constant 13 : index
    %c0_146 = arith.constant 0 : index
    %134 = vector.load %arg8[%c13_145, %c0_146] : memref<72x128xf32, #tpu.memory_space<vmem>>, vector<4x128xf32>
    tpu.vector_store %arg8[%c13_145, %c0_146], %133 {strides = array<i32>} : memref<72x128xf32, #tpu.memory_space<vmem>>, vector<4x128xf32>,
    %c17_147 = arith.constant 17 : index
    %c0_148 = arith.constant 0 : index
    %135 = vector.load %arg8[%c17_147, %c0_148] : memref<72x128xf32, #tpu.memory_space<vmem>>, vector<1x128xf32>
    tpu.vector_store %arg8[%c17_147, %c0_148], %123 {strides = array<i32>} : memref<72x128xf32, #tpu.memory_space<vmem>>, vector<1x128xf32>,
    %c18_149 = arith.constant 18 : index
    %c0_150 = arith.constant 0 : index
    %136 = vector.load %arg8[%c18_149, %c0_150] : memref<72x128xf32, #tpu.memory_space<vmem>>, vector<1x128xf32>
    tpu.vector_store %arg8[%c18_149, %c0_150], %123 {strides = array<i32>} : memref<72x128xf32, #tpu.memory_space<vmem>>, vector<1x128xf32>,
    %137 = vector.extract_strided_slice %122 {offsets = [12, 0], sizes = [4, 128], strides = [1, 1]} : vector<16x128xf32> to vector<4x128xf32>
    %c19_151 = arith.constant 19 : index
    %c0_152 = arith.constant 0 : index
    %138 = vector.load %arg8[%c19_151, %c0_152] : memref<72x128xf32, #tpu.memory_space<vmem>>, vector<4x128xf32>
    tpu.vector_store %arg8[%c19_151, %c0_152], %137 {strides = array<i32>} : memref<72x128xf32, #tpu.memory_space<vmem>>, vector<4x128xf32>,
    %c23_153 = arith.constant 23 : index
    %c0_154 = arith.constant 0 : index
    %139 = vector.load %arg8[%c23_153, %c0_154] : memref<72x128xf32, #tpu.memory_space<vmem>>, vector<1x128xf32>
    tpu.vector_store %arg8[%c23_153, %c0_154], %123 {strides = array<i32>} : memref<72x128xf32, #tpu.memory_space<vmem>>, vector<1x128xf32>,
    %c0_155 = arith.constant 0 : index
    %c0_156 = arith.constant 0 : index
    %140 = tpu.strided_load %arg8[%c0_155, %c0_156] {strides = array<i32: 2, 1>} : memref<72x128xf32, #tpu.memory_space<vmem>>, vector<2x128xf32>
    %c6_157 = arith.constant 6 : index
    %c0_158 = arith.constant 0 : index
    %141 = tpu.strided_load %arg8[%c6_157, %c0_158] {strides = array<i32: 2, 1>} : memref<72x128xf32, #tpu.memory_space<vmem>>, vector<2x128xf32>
    %c12_159 = arith.constant 12 : index
    %c0_160 = arith.constant 0 : index
    %142 = tpu.strided_load %arg8[%c12_159, %c0_160] {strides = array<i32: 2, 1>} : memref<72x128xf32, #tpu.memory_space<vmem>>, vector<2x128xf32>
    %c18_161 = arith.constant 18 : index
    %c0_162 = arith.constant 0 : index
    %143 = tpu.strided_load %arg8[%c18_161, %c0_162] {strides = array<i32: 2, 1>} : memref<72x128xf32, #tpu.memory_space<vmem>>, vector<2x128xf32>
    %144 = tpu.concatenate %140, %141, %142, %143 in 0 : vector<2x128xf32>, vector<2x128xf32>, vector<2x128xf32>, vector<2x128xf32> -> vector<8x128xf32>
    %c2_163 = arith.constant 2 : index
    %c0_164 = arith.constant 0 : index
    %c0_165 = arith.constant 0 : index
    %c0_166 = arith.constant 0 : index
    %145 = vector.load %arg2[%c2_163, %c0_164, %c0_165, %c0_166] : memref<3x4x128x128xf32, #tpu.memory_space<vmem>>, vector<1x1x128x128xf32>
    %146 = vector.shape_cast %145 : vector<1x1x128x128xf32> to vector<128x128xf32>
    %cst_167 = arith.constant dense<0.000000e+00> : vector<8x128xf32>
    %147 = tpu.matmul %144, %146, %cst_167 {dimension_numbers = #tpu.dot_dimension_numbers<[1], [0], [0], [1], [0, 0, 1, 1], [], []>} : vector<8x128xf32>, vector<128x128xf32>, vector<8x128xf32> -> vector<8x128xf32>
    %c1_168 = arith.constant 1 : index
    %c0_169 = arith.constant 0 : index
    %148 = tpu.strided_load %arg8[%c1_168, %c0_169] {strides = array<i32: 2, 1>} : memref<72x128xf32, #tpu.memory_space<vmem>>, vector<2x128xf32>
    %c7_170 = arith.constant 7 : index
    %c0_171 = arith.constant 0 : index
    %149 = tpu.strided_load %arg8[%c7_170, %c0_171] {strides = array<i32: 2, 1>} : memref<72x128xf32, #tpu.memory_space<vmem>>, vector<2x128xf32>
    %c13_172 = arith.constant 13 : index
    %c0_173 = arith.constant 0 : index
    %150 = tpu.strided_load %arg8[%c13_172, %c0_173] {strides = array<i32: 2, 1>} : memref<72x128xf32, #tpu.memory_space<vmem>>, vector<2x128xf32>
    %c19_174 = arith.constant 19 : index
    %c0_175 = arith.constant 0 : index
    %151 = tpu.strided_load %arg8[%c19_174, %c0_175] {strides = array<i32: 2, 1>} : memref<72x128xf32, #tpu.memory_space<vmem>>, vector<2x128xf32>
    %152 = tpu.concatenate %148, %149, %150, %151 in 0 : vector<2x128xf32>, vector<2x128xf32>, vector<2x128xf32>, vector<2x128xf32> -> vector<8x128xf32>
    %c2_176 = arith.constant 2 : index
    %c1_177 = arith.constant 1 : index
    %c0_178 = arith.constant 0 : index
    %c0_179 = arith.constant 0 : index
    %153 = vector.load %arg2[%c2_176, %c1_177, %c0_178, %c0_179] : memref<3x4x128x128xf32, #tpu.memory_space<vmem>>, vector<1x1x128x128xf32>
    %154 = vector.shape_cast %153 : vector<1x1x128x128xf32> to vector<128x128xf32>
    %cst_180 = arith.constant dense<0.000000e+00> : vector<8x128xf32>
    %155 = tpu.matmul %152, %154, %cst_180 {dimension_numbers = #tpu.dot_dimension_numbers<[1], [0], [0], [1], [0, 0, 1, 1], [], []>} : vector<8x128xf32>, vector<128x128xf32>, vector<8x128xf32> -> vector<8x128xf32>
    %156 = arith.addf %147, %155 : vector<8x128xf32>
    %c2_181 = arith.constant 2 : index
    %c0_182 = arith.constant 0 : index
    %157 = tpu.strided_load %arg8[%c2_181, %c0_182] {strides = array<i32: 2, 1>} : memref<72x128xf32, #tpu.memory_space<vmem>>, vector<2x128xf32>
    %c8 = arith.constant 8 : index
    %c0_183 = arith.constant 0 : index
    %158 = tpu.strided_load %arg8[%c8, %c0_183] {strides = array<i32: 2, 1>} : memref<72x128xf32, #tpu.memory_space<vmem>>, vector<2x128xf32>
    %c14 = arith.constant 14 : index
    %c0_184 = arith.constant 0 : index
    %159 = tpu.strided_load %arg8[%c14, %c0_184] {strides = array<i32: 2, 1>} : memref<72x128xf32, #tpu.memory_space<vmem>>, vector<2x128xf32>
    %c20_185 = arith.constant 20 : index
    %c0_186 = arith.constant 0 : index
    %160 = tpu.strided_load %arg8[%c20_185, %c0_186] {strides = array<i32: 2, 1>} : memref<72x128xf32, #tpu.memory_space<vmem>>, vector<2x128xf32>
    %161 = tpu.concatenate %157, %158, %159, %160 in 0 : vector<2x128xf32>, vector<2x128xf32>, vector<2x128xf32>, vector<2x128xf32> -> vector<8x128xf32>
    %c2_187 = arith.constant 2 : index
    %c2_188 = arith.constant 2 : index
    %c0_189 = arith.constant 0 : index
    %c0_190 = arith.constant 0 : index
    %162 = vector.load %arg2[%c2_187, %c2_188, %c0_189, %c0_190] : memref<3x4x128x128xf32, #tpu.memory_space<vmem>>, vector<1x1x128x128xf32>
    %163 = vector.shape_cast %162 : vector<1x1x128x128xf32> to vector<128x128xf32>
    %cst_191 = arith.constant dense<0.000000e+00> : vector<8x128xf32>
    %164 = tpu.matmul %161, %163, %cst_191 {dimension_numbers = #tpu.dot_dimension_numbers<[1], [0], [0], [1], [0, 0, 1, 1], [], []>} : vector<8x128xf32>, vector<128x128xf32>, vector<8x128xf32> -> vector<8x128xf32>
    %165 = arith.addf %156, %164 : vector<8x128xf32>
    %c3_192 = arith.constant 3 : index
    %c0_193 = arith.constant 0 : index
    %166 = tpu.strided_load %arg8[%c3_192, %c0_193] {strides = array<i32: 2, 1>} : memref<72x128xf32, #tpu.memory_space<vmem>>, vector<2x128xf32>
    %c9_194 = arith.constant 9 : index
    %c0_195 = arith.constant 0 : index
    %167 = tpu.strided_load %arg8[%c9_194, %c0_195] {strides = array<i32: 2, 1>} : memref<72x128xf32, #tpu.memory_space<vmem>>, vector<2x128xf32>
    %c15 = arith.constant 15 : index
    %c0_196 = arith.constant 0 : index
    %168 = tpu.strided_load %arg8[%c15, %c0_196] {strides = array<i32: 2, 1>} : memref<72x128xf32, #tpu.memory_space<vmem>>, vector<2x128xf32>
    %c21_197 = arith.constant 21 : index
    %c0_198 = arith.constant 0 : index
    %169 = tpu.strided_load %arg8[%c21_197, %c0_198] {strides = array<i32: 2, 1>} : memref<72x128xf32, #tpu.memory_space<vmem>>, vector<2x128xf32>
    %170 = tpu.concatenate %166, %167, %168, %169 in 0 : vector<2x128xf32>, vector<2x128xf32>, vector<2x128xf32>, vector<2x128xf32> -> vector<8x128xf32>
    %c2_199 = arith.constant 2 : index
    %c3_200 = arith.constant 3 : index
    %c0_201 = arith.constant 0 : index
    %c0_202 = arith.constant 0 : index
    %171 = vector.load %arg2[%c2_199, %c3_200, %c0_201, %c0_202] : memref<3x4x128x128xf32, #tpu.memory_space<vmem>>, vector<1x1x128x128xf32>
    %172 = vector.shape_cast %171 : vector<1x1x128x128xf32> to vector<128x128xf32>
    %cst_203 = arith.constant dense<0.000000e+00> : vector<8x128xf32>
    %173 = tpu.matmul %170, %172, %cst_203 {dimension_numbers = #tpu.dot_dimension_numbers<[1], [0], [0], [1], [0, 0, 1, 1], [], []>} : vector<8x128xf32>, vector<128x128xf32>, vector<8x128xf32> -> vector<8x128xf32>
    %174 = arith.addf %165, %173 : vector<8x128xf32>
    %c2_204 = arith.constant 2 : index
    %c0_205 = arith.constant 0 : index
    %c0_206 = arith.constant 0 : index
    %175 = vector.load %arg3[%c2_204, %c0_205, %c0_206] : memref<3x1x128xf32, #tpu.memory_space<vmem>>, vector<1x1x128xf32>
    %176 = vector.shape_cast %175 : vector<1x1x128xf32> to vector<1x128xf32>
    %177 = vector.broadcast %176 : vector<1x128xf32> to vector<8x128xf32>
    %178 = arith.addf %174, %177 : vector<8x128xf32>
    %cst_207 = arith.constant 0.000000e+00 : f32
    %179 = vector.broadcast %cst_207 : f32 to vector<8x128xf32>
    %180 = arith.cmpf oge, %178, %179 : vector<8x128xf32>
    %cst_208 = arith.constant 0.00999999977 : f32
    %181 = vector.broadcast %cst_208 : f32 to vector<8x128xf32>
    %182 = arith.mulf %181, %178 : vector<8x128xf32>
    %183 = arith.select %180, %178, %182 : vector<8x128xi1>, vector<8x128xf32>
    %cst_209 = arith.constant 0.000000e+00 : f32
    %184 = vector.broadcast %cst_209 : f32 to vector<1x128xf32>
    %c0_210 = arith.constant 0 : index
    %c0_211 = arith.constant 0 : index
    %185 = vector.load %arg8[%c0_210, %c0_211] : memref<72x128xf32, #tpu.memory_space<vmem>>, vector<1x128xf32>
    tpu.vector_store %arg8[%c0_210, %c0_211], %184 {strides = array<i32>} : memref<72x128xf32, #tpu.memory_space<vmem>>, vector<1x128xf32>,
    %186 = vector.extract_strided_slice %183 {offsets = [0, 0], sizes = [2, 128], strides = [1, 1]} : vector<8x128xf32> to vector<2x128xf32>
    %c1_212 = arith.constant 1 : index
    %c0_213 = arith.constant 0 : index
    %187 = vector.load %arg8[%c1_212, %c0_213] : memref<72x128xf32, #tpu.memory_space<vmem>>, vector<2x128xf32>
    tpu.vector_store %arg8[%c1_212, %c0_213], %186 {strides = array<i32>} : memref<72x128xf32, #tpu.memory_space<vmem>>, vector<2x128xf32>,
    %c3_214 = arith.constant 3 : index
    %c0_215 = arith.constant 0 : index
    %188 = vector.load %arg8[%c3_214, %c0_215] : memref<72x128xf32, #tpu.memory_space<vmem>>, vector<1x128xf32>
    tpu.vector_store %arg8[%c3_214, %c0_215], %184 {strides = array<i32>} : memref<72x128xf32, #tpu.memory_space<vmem>>, vector<1x128xf32>,
    %c4 = arith.constant 4 : index
    %c0_216 = arith.constant 0 : index
    %189 = vector.load %arg8[%c4, %c0_216] : memref<72x128xf32, #tpu.memory_space<vmem>>, vector<1x128xf32>
    tpu.vector_store %arg8[%c4, %c0_216], %184 {strides = array<i32>} : memref<72x128xf32, #tpu.memory_space<vmem>>, vector<1x128xf32>,
    %190 = vector.extract_strided_slice %183 {offsets = [2, 0], sizes = [2, 128], strides = [1, 1]} : vector<8x128xf32> to vector<2x128xf32>
    %c5_217 = arith.constant 5 : index
    %c0_218 = arith.constant 0 : index
    %191 = vector.load %arg8[%c5_217, %c0_218] : memref<72x128xf32, #tpu.memory_space<vmem>>, vector<2x128xf32>
    tpu.vector_store %arg8[%c5_217, %c0_218], %190 {strides = array<i32>} : memref<72x128xf32, #tpu.memory_space<vmem>>, vector<2x128xf32>,
    %c7_219 = arith.constant 7 : index
    %c0_220 = arith.constant 0 : index
    %192 = vector.load %arg8[%c7_219, %c0_220] : memref<72x128xf32, #tpu.memory_space<vmem>>, vector<1x128xf32>
    tpu.vector_store %arg8[%c7_219, %c0_220], %184 {strides = array<i32>} : memref<72x128xf32, #tpu.memory_space<vmem>>, vector<1x128xf32>,
    %c8_221 = arith.constant 8 : index
    %c0_222 = arith.constant 0 : index
    %193 = vector.load %arg8[%c8_221, %c0_222] : memref<72x128xf32, #tpu.memory_space<vmem>>, vector<1x128xf32>
    tpu.vector_store %arg8[%c8_221, %c0_222], %184 {strides = array<i32>} : memref<72x128xf32, #tpu.memory_space<vmem>>, vector<1x128xf32>,
    %194 = vector.extract_strided_slice %183 {offsets = [4, 0], sizes = [2, 128], strides = [1, 1]} : vector<8x128xf32> to vector<2x128xf32>
    %c9_223 = arith.constant 9 : index
    %c0_224 = arith.constant 0 : index
    %195 = vector.load %arg8[%c9_223, %c0_224] : memref<72x128xf32, #tpu.memory_space<vmem>>, vector<2x128xf32>
    tpu.vector_store %arg8[%c9_223, %c0_224], %194 {strides = array<i32>} : memref<72x128xf32, #tpu.memory_space<vmem>>, vector<2x128xf32>,
    %c11_225 = arith.constant 11 : index
    %c0_226 = arith.constant 0 : index
    %196 = vector.load %arg8[%c11_225, %c0_226] : memref<72x128xf32, #tpu.memory_space<vmem>>, vector<1x128xf32>
    tpu.vector_store %arg8[%c11_225, %c0_226], %184 {strides = array<i32>} : memref<72x128xf32, #tpu.memory_space<vmem>>, vector<1x128xf32>,
    %c12_227 = arith.constant 12 : index
    %c0_228 = arith.constant 0 : index
    %197 = vector.load %arg8[%c12_227, %c0_228] : memref<72x128xf32, #tpu.memory_space<vmem>>, vector<1x128xf32>
    tpu.vector_store %arg8[%c12_227, %c0_228], %184 {strides = array<i32>} : memref<72x128xf32, #tpu.memory_space<vmem>>, vector<1x128xf32>,
    %198 = vector.extract_strided_slice %183 {offsets = [6, 0], sizes = [2, 128], strides = [1, 1]} : vector<8x128xf32> to vector<2x128xf32>
    %c13_229 = arith.constant 13 : index
    %c0_230 = arith.constant 0 : index
    %199 = vector.load %arg8[%c13_229, %c0_230] : memref<72x128xf32, #tpu.memory_space<vmem>>, vector<2x128xf32>
    tpu.vector_store %arg8[%c13_229, %c0_230], %198 {strides = array<i32>} : memref<72x128xf32, #tpu.memory_space<vmem>>, vector<2x128xf32>,
    %c15_231 = arith.constant 15 : index
    %c0_232 = arith.constant 0 : index
    %200 = vector.load %arg8[%c15_231, %c0_232] : memref<72x128xf32, #tpu.memory_space<vmem>>, vector<1x128xf32>
    tpu.vector_store %arg8[%c15_231, %c0_232], %184 {strides = array<i32>} : memref<72x128xf32, #tpu.memory_space<vmem>>, vector<1x128xf32>,
    %c0_233 = arith.constant 0 : index
    %c0_234 = arith.constant 0 : index
    %201 = vector.load %arg8[%c0_233, %c0_234] : memref<72x128xf32, #tpu.memory_space<vmem>>, vector<2x128xf32>
    %c4_235 = arith.constant 4 : index
    %c0_236 = arith.constant 0 : index
    %202 = vector.load %arg8[%c4_235, %c0_236] : memref<72x128xf32, #tpu.memory_space<vmem>>, vector<2x128xf32>
    %c8_237 = arith.constant 8 : index
    %c0_238 = arith.constant 0 : index
    %203 = vector.load %arg8[%c8_237, %c0_238] : memref<72x128xf32, #tpu.memory_space<vmem>>, vector<2x128xf32>
    %c12_239 = arith.constant 12 : index
    %c0_240 = arith.constant 0 : index
    %204 = vector.load %arg8[%c12_239, %c0_240] : memref<72x128xf32, #tpu.memory_space<vmem>>, vector<2x128xf32>
    %205 = tpu.concatenate %201, %202, %203, %204 in 0 : vector<2x128xf32>, vector<2x128xf32>, vector<2x128xf32>, vector<2x128xf32> -> vector<8x128xf32>
    %c0_241 = arith.constant 0 : index
    %c0_242 = arith.constant 0 : index
    %c0_243 = arith.constant 0 : index
    %206 = vector.load %arg4[%c0_241, %c0_242, %c0_243] : memref<3x128x128xf32, #tpu.memory_space<vmem>>, vector<1x128x128xf32>
    %207 = vector.shape_cast %206 : vector<1x128x128xf32> to vector<128x128xf32>
    %cst_244 = arith.constant dense<0.000000e+00> : vector<8x128xf32>
    %208 = tpu.matmul %205, %207, %cst_244 {dimension_numbers = #tpu.dot_dimension_numbers<[1], [0], [0], [1], [0, 0, 1, 1], [], []>} : vector<8x128xf32>, vector<128x128xf32>, vector<8x128xf32> -> vector<8x128xf32>
    %c1_245 = arith.constant 1 : index
    %c0_246 = arith.constant 0 : index
    %209 = vector.load %arg8[%c1_245, %c0_246] : memref<72x128xf32, #tpu.memory_space<vmem>>, vector<2x128xf32>
    %c5_247 = arith.constant 5 : index
    %c0_248 = arith.constant 0 : index
    %210 = vector.load %arg8[%c5_247, %c0_248] : memref<72x128xf32, #tpu.memory_space<vmem>>, vector<2x128xf32>
    %c9_249 = arith.constant 9 : index
    %c0_250 = arith.constant 0 : index
    %211 = vector.load %arg8[%c9_249, %c0_250] : memref<72x128xf32, #tpu.memory_space<vmem>>, vector<2x128xf32>
    %c13_251 = arith.constant 13 : index
    %c0_252 = arith.constant 0 : index
    %212 = vector.load %arg8[%c13_251, %c0_252] : memref<72x128xf32, #tpu.memory_space<vmem>>, vector<2x128xf32>
    %213 = tpu.concatenate %209, %210, %211, %212 in 0 : vector<2x128xf32>, vector<2x128xf32>, vector<2x128xf32>, vector<2x128xf32> -> vector<8x128xf32>
    %c1_253 = arith.constant 1 : index
    %c0_254 = arith.constant 0 : index
    %c0_255 = arith.constant 0 : index
    %214 = vector.load %arg4[%c1_253, %c0_254, %c0_255] : memref<3x128x128xf32, #tpu.memory_space<vmem>>, vector<1x128x128xf32>
    %215 = vector.shape_cast %214 : vector<1x128x128xf32> to vector<128x128xf32>
    %cst_256 = arith.constant dense<0.000000e+00> : vector<8x128xf32>
    %216 = tpu.matmul %213, %215, %cst_256 {dimension_numbers = #tpu.dot_dimension_numbers<[1], [0], [0], [1], [0, 0, 1, 1], [], []>} : vector<8x128xf32>, vector<128x128xf32>, vector<8x128xf32> -> vector<8x128xf32>
    %217 = arith.addf %208, %216 : vector<8x128xf32>
    %c2_257 = arith.constant 2 : index
    %c0_258 = arith.constant 0 : index
    %218 = vector.load %arg8[%c2_257, %c0_258] : memref<72x128xf32, #tpu.memory_space<vmem>>, vector<2x128xf32>
    %c6_259 = arith.constant 6 : index
    %c0_260 = arith.constant 0 : index
    %219 = vector.load %arg8[%c6_259, %c0_260] : memref<72x128xf32, #tpu.memory_space<vmem>>, vector<2x128xf32>
    %c10_261 = arith.constant 10 : index
    %c0_262 = arith.constant 0 : index
    %220 = vector.load %arg8[%c10_261, %c0_262] : memref<72x128xf32, #tpu.memory_space<vmem>>, vector<2x128xf32>
    %c14_263 = arith.constant 14 : index
    %c0_264 = arith.constant 0 : index
    %221 = vector.load %arg8[%c14_263, %c0_264] : memref<72x128xf32, #tpu.memory_space<vmem>>, vector<2x128xf32>
    %222 = tpu.concatenate %218, %219, %220, %221 in 0 : vector<2x128xf32>, vector<2x128xf32>, vector<2x128xf32>, vector<2x128xf32> -> vector<8x128xf32>
    %c2_265 = arith.constant 2 : index
    %c0_266 = arith.constant 0 : index
    %c0_267 = arith.constant 0 : index
    %223 = vector.load %arg4[%c2_265, %c0_266, %c0_267] : memref<3x128x128xf32, #tpu.memory_space<vmem>>, vector<1x128x128xf32>
    %224 = vector.shape_cast %223 : vector<1x128x128xf32> to vector<128x128xf32>
    %cst_268 = arith.constant dense<0.000000e+00> : vector<8x128xf32>
    %225 = tpu.matmul %222, %224, %cst_268 {dimension_numbers = #tpu.dot_dimension_numbers<[1], [0], [0], [1], [0, 0, 1, 1], [], []>} : vector<8x128xf32>, vector<128x128xf32>, vector<8x128xf32> -> vector<8x128xf32>
    %226 = arith.addf %217, %225 : vector<8x128xf32>
    %c0_269 = arith.constant 0 : index
    %c0_270 = arith.constant 0 : index
    %c0_271 = arith.constant 0 : index
    %227 = vector.load %arg6[%c0_269, %c0_270, %c0_271] : memref<1x8x128xf32, #tpu.memory_space<vmem>>, vector<1x8x128xf32>
    %228 = vector.shape_cast %227 : vector<1x8x128xf32> to vector<8x128xf32>
    %229 = vector.shape_cast %226 : vector<8x128xf32> to vector<1x8x128xf32>
    tpu.vector_store %arg6[%c0_269, %c0_270, %c0_271], %229 {strides = array<i32>} : memref<1x8x128xf32, #tpu.memory_space<vmem>>, vector<1x8x128xf32>,
    %230 = vector.extract_strided_slice %183 {offsets = [0, 0], sizes = [1, 128], strides = [1, 1]} : vector<8x128xf32> to vector<1x128xf32>
    %231 = vector.extract_strided_slice %183 {offsets = [1, 0], sizes = [1, 128], strides = [1, 1]} : vector<8x128xf32> to vector<1x128xf32>
    %232 = tpu.concatenate %230, %231 in 1 : vector<1x128xf32>, vector<1x128xf32> -> vector<1x256xf32>
    %233 = vector.extract_strided_slice %183 {offsets = [2, 0], sizes = [1, 128], strides = [1, 1]} : vector<8x128xf32> to vector<1x128xf32>
    %234 = vector.extract_strided_slice %183 {offsets = [3, 0], sizes = [1, 128], strides = [1, 1]} : vector<8x128xf32> to vector<1x128xf32>
    %235 = tpu.concatenate %233, %234 in 1 : vector<1x128xf32>, vector<1x128xf32> -> vector<1x256xf32>
    %236 = vector.extract_strided_slice %183 {offsets = [4, 0], sizes = [1, 128], strides = [1, 1]} : vector<8x128xf32> to vector<1x128xf32>
    %237 = vector.extract_strided_slice %183 {offsets = [5, 0], sizes = [1, 128], strides = [1, 1]} : vector<8x128xf32> to vector<1x128xf32>
    %238 = tpu.concatenate %236, %237 in 1 : vector<1x128xf32>, vector<1x128xf32> -> vector<1x256xf32>
    %239 = vector.extract_strided_slice %183 {offsets = [6, 0], sizes = [1, 128], strides = [1, 1]} : vector<8x128xf32> to vector<1x128xf32>
    %240 = vector.extract_strided_slice %183 {offsets = [7, 0], sizes = [1, 128], strides = [1, 1]} : vector<8x128xf32> to vector<1x128xf32>
    %241 = tpu.concatenate %239, %240 in 1 : vector<1x128xf32>, vector<1x128xf32> -> vector<1x256xf32>
    %242 = tpu.concatenate %232, %235, %238, %241 in 0 : vector<1x256xf32>, vector<1x256xf32>, vector<1x256xf32>, vector<1x256xf32> -> vector<4x256xf32>
    %c0_272 = arith.constant 0 : index
    %c0_273 = arith.constant 0 : index
    %243 = vector.load %arg5[%c0_272, %c0_273] : memref<256x128xf32, #tpu.memory_space<vmem>>, vector<256x128xf32>
    %cst_274 = arith.constant dense<0.000000e+00> : vector<4x128xf32>
    %244 = tpu.matmul %242, %243, %cst_274 {dimension_numbers = #tpu.dot_dimension_numbers<[1], [0], [0], [1], [0, 0, 1, 1], [], []>} : vector<4x256xf32>, vector<256x128xf32>, vector<4x128xf32> -> vector<4x128xf32>
    %c0_275 = arith.constant 0 : index
    %c0_276 = arith.constant 0 : index
    %c0_277 = arith.constant 0 : index
    %245 = vector.load %arg7[%c0_275, %c0_276, %c0_277] : memref<1x4x128xf32, #tpu.memory_space<vmem>>, vector<1x4x128xf32>
    %246 = vector.shape_cast %245 : vector<1x4x128xf32> to vector<4x128xf32>
    %247 = vector.shape_cast %244 : vector<4x128xf32> to vector<1x4x128xf32>
    tpu.vector_store %arg7[%c0_275, %c0_276, %c0_277], %247 {strides = array<i32>} : memref<1x4x128xf32, #tpu.memory_space<vmem>>, vector<1x4x128xf32>,
    return
  }
  func.func @transform_0(%arg0: i32) -> (i32, i32) {
    %c0_i32 = arith.constant 0 : i32
    %c0_i32_0 = arith.constant 0 : i32
    return %arg0, %c0_i32 : i32, i32
  }
  func.func @transform_1(%arg0: i32) -> (i32, i32, i32, i32) {
    %c0_i32 = arith.constant 0 : i32
    %c0_i32_0 = arith.constant 0 : i32
    %c0_i32_1 = arith.constant 0 : i32
    %c0_i32_2 = arith.constant 0 : i32
    %c0_i32_3 = arith.constant 0 : i32
    return %c0_i32, %c0_i32_0, %c0_i32_1, %c0_i32_2 : i32, i32, i32, i32
  }
  func.func @transform_2(%arg0: i32) -> (i32, i32, i32) {
    %c0_i32 = arith.constant 0 : i32
    %c0_i32_0 = arith.constant 0 : i32
    %c0_i32_1 = arith.constant 0 : i32
    %c0_i32_2 = arith.constant 0 : i32
    return %c0_i32, %c0_i32_0, %c0_i32_1 : i32, i32, i32
  }
  func.func @transform_3(%arg0: i32) -> (i32, i32, i32) {
    %c0_i32 = arith.constant 0 : i32
    %c0_i32_0 = arith.constant 0 : i32
    %c0_i32_1 = arith.constant 0 : i32
    %c0_i32_2 = arith.constant 0 : i32
    return %c0_i32, %c0_i32_0, %c0_i32_1 : i32, i32, i32
  }
  func.func @transform_4(%arg0: i32) -> (i32, i32) {
    %c0_i32 = arith.constant 0 : i32
    %c0_i32_0 = arith.constant 0 : i32
    %c0_i32_1 = arith.constant 0 : i32
    return %c0_i32, %c0_i32_0 : i32, i32
  }
  func.func @transform_5(%arg0: i32) -> (i32, i32, i32) {
    %c0_i32 = arith.constant 0 : i32
    %c0_i32_0 = arith.constant 0 : i32
    %c0_i32_1 = arith.constant 0 : i32
    return %arg0, %c0_i32, %c0_i32_0 : i32, i32, i32
  }
  func.func @transform_6(%arg0: i32) -> (i32, i32, i32) {
    %c0_i32 = arith.constant 0 : i32
    %c0_i32_0 = arith.constant 0 : i32
    %c0_i32_1 = arith.constant 0 : i32
    return %arg0, %c0_i32, %c0_i32_0 : i32, i32, i32
  }
}

</mosaic_0001>

<llo_original>
// kernel: tpu_custom_call.1
$region0: #{tpu_custom_call.1}
  #allocation0 [shape = 'u32[]', space=smem, size = 0x4, offset = 0x4, fixed_abs, tag = 'smem constant byte address 0x4 - core index']
  #allocation1 [shape = 'u32[144,128]{1,0:T(1,128)}', space=vmem, size = 0x12000, scoped, tag = 'internal scratch']
  #allocation2 [shape = 'f32[72,128]{1,0:T(8,128)}', space=vmem, size = 0x9000, scoped, tag = 'scratch operand']
  %s0 = inlined_call_operand.hbm [shape: f32[128,128], index: 0, kind: input, shape index: {}]
  %s1 = inlined_call_operand.hbm [shape: f32[3,4,128,128], index: 1, kind: input, shape index: {}]
  %s2 = inlined_call_operand.vmem [shape: f32[3,1,128], index: 2, kind: input, shape index: {}]
  %s3 = inlined_call_operand.hbm [shape: f32[3,128,128], index: 3, kind: input, shape index: {}]
  %s4 = inlined_call_operand.hbm [shape: f32[256,128], index: 4, kind: input, shape index: {}]
  %s5 = inlined_call_operand.hbm [shape: f32[2,8,128], index: 5, kind: output, shape index: {0}]
  %s6 = inlined_call_operand.hbm [shape: f32[2,4,128], index: 6, kind: output, shape index: {1}]
  %7 = xla_tuple %s5, %s6
  %s8 = sld [smem:[#allocation0]]
  $region77: #{tpu_custom_call.1} parent=0
    _
  %s10 = ssub.s32 1, %s8
  %s11 = scalar_select 0, %s10, %s8
  $region1: #{tpu_custom_call.1} parent=0
    #allocation3 [shape = 'u8[65536]{0}', space=vmem, size = 0x10000, scoped, tag = 'input window, operand 0']
    #allocation4 [shape = 's32[2]{0}', space=sflag, size = 0x8, scoped, tag = 'scoped memory for tpu_custom_call.1']
    #allocation5 [shape = 's32[2]{0}', space=sflag, size = 0x8, scoped, tag = 'scoped memory for tpu_custom_call.1']
    #allocation6 [shape = 'u8[786432]{0}', space=vmem, size = 0xc0000, scoped, tag = 'input window, operand 1, single buffered']
    #allocation7 [shape = 's32[1]{0}', space=sflag, size = 0x4, scoped, tag = 'scoped memory for tpu_custom_call.1']
    #allocation8 [shape = 'u8[196608]{0}', space=vmem, size = 0x30000, scoped, tag = 'input window, operand 3, single buffered']
    #allocation9 [shape = 'u8[131072]{0}', space=vmem, size = 0x20000, scoped, tag = 'input window, operand 4, single buffered']
    #allocation10 [shape = 's32[1]{0}', space=sflag, size = 0x4, scoped, tag = 'scoped memory for tpu_custom_call.1']
    #allocation11 [shape = 'u8[8192]{0}', space=vmem, size = 0x2000, scoped, tag = 'output window, operand 0']
    #allocation12 [shape = 'u8[4096]{0}', space=vmem, size = 0x1000, scoped, tag = 'output window, operand 1']
    #allocation13 [shape = 's32[2]{0}', space=sflag, size = 0x8, scoped, tag = 'scoped memory for tpu_custom_call.1']
    %12 = vsyncpa [#allocation4], 0
    %s13 = scalar_lea.sflag [#allocation4], 1
    %14 = vsyncpa %s13, 0
    %15 = vsyncpa [#allocation7], 0
    %16 = vsyncpa [#allocation10], 0
    %17 = vsyncpa [#allocation5], 0
    %s18 = scalar_lea.sflag [#allocation5], 1
    %19 = vsyncpa %s18, 0
    %20 = vsyncpa [#allocation13], 0
    %s21 = scalar_lea.sflag [#allocation13], 1
    %22 = vsyncpa %s21, 0
    loop: start=0, step=1, limit=4
    $region2: #{tpu_custom_call.1} parent=1 // loop_pre_header
      _
    $region3: #{tpu_custom_call.1} parent=1 // loop_header
      %s24 = sphi 0, %s28
      %p25 = scmp.ge.s32.totalorder %s24, 4
      %s34 = sphi 0, %s36
      %s37 = sphi 0, %s34
      %s38 = sphi 0, %s37
      %s54 = sphi 0, %s38
      %s58 = sphi 0, %s58
      %s60 = sphi 0, %s58
      %s61 = sphi 0, %s60
      %s75 = sphi 0, %s61
      %s79 = sphi 0, %s79
      %s81 = sphi 0, %s79
      %s82 = sphi 0, %s81
      %s96 = sphi 0, %s82
      %s100 = sphi 0, %s100
      %s102 = sphi 0, %s100
      %s103 = sphi 0, %s102
      %s117 = sphi 0, %s103
      %s121 = sphi 0, %s121
      %s123 = sphi 0, %s121
      %s124 = sphi 0, %s123
      %s138 = sphi 0, %s124
      %s144 = sphi 0, %s146
      %s147 = sphi 0, %s144
      %s148 = sphi 0, %s147
      %s164 = sphi 0, %s148
      %s170 = sphi 0, %s172
      %s173 = sphi 0, %s170
      %s174 = sphi 0, %s173
      %s190 = sphi 0, %s174
    $region4: #{tpu_custom_call.1} parent=1 // loop_header_branch
      %27 = sbr.rel (%p25) target = $region8
    $region5: #{tpu_custom_call.1} parent=1 // loop_body
      %s29 = ssub.s32 %s24, 1
      %s30 = ssub.s32 %s24, 2
      %s31 = sadd.s32 %s24, 1
      %s32 = ssub.s32 %s24, %s31
      %p33 = scmp.eq.s32.totalorder %s32, 0
      %s35 = sadd.s32 %s34, 1
      %s36 = scalar_select %p33, %s34, %s35
      %p39 = pneg %p33
      %p40 = scmp.eq.s32.totalorder %s24, 1
      %p41 = por %p39, %p40
      %p42 = scmp.ne.s32.totalorder %s34, %s37
      %p43 = scmp.eq.s32.totalorder %s24, 0
      %p44 = por %p42, %p43
      %p45 = scmp.ne.s32.totalorder %s34, %s37
      %p46 = scmp.eq.s32.totalorder %s29, 1
      %p47 = por %p45, %p46
      %p48 = scmp.ne.s32.totalorder %s37, %s38
      %p49 = scmp.eq.s32.totalorder %s29, 0
      %p50 = por %p48, %p49
      %p51 = scmp.ne.s32.totalorder %s37, %s38
      %p52 = scmp.eq.s32.totalorder %s30, 1
      %p53 = por %p51, %p52
      %p55 = scmp.ne.s32.totalorder %s38, %s54
      %p56 = scmp.eq.s32.totalorder %s30, 0
      %p57 = por %p55, %p56
      %s59 = sadd.s32 %s58, 1
      %p62 = scmp.eq.s32.totalorder %s24, 1
      %p63 = scmp.ne.s32.totalorder %s58, %s60
      %p64 = scmp.eq.s32.totalorder %s24, 0
      %p65 = por %p63, %p64
      %p66 = scmp.ne.s32.totalorder %s58, %s60
      %p67 = scmp.eq.s32.totalorder %s29, 1
      %p68 = por %p66, %p67
      %p69 = scmp.ne.s32.totalorder %s60, %s61
      %p70 = scmp.eq.s32.totalorder %s29, 0
      %p71 = por %p69, %p70
      %p72 = scmp.ne.s32.totalorder %s60, %s61
      %p73 = scmp.eq.s32.totalorder %s30, 1
      %p74 = por %p72, %p73
      %p76 = scmp.ne.s32.totalorder %s61, %s75
      %p77 = scmp.eq.s32.totalorder %s30, 0
      %p78 = por %p76, %p77
      %s80 = sadd.s32 %s79, 1
      %p83 = scmp.eq.s32.totalorder %s24, 1
      %p84 = scmp.ne.s32.totalorder %s79, %s81
      %p85 = scmp.eq.s32.totalorder %s24, 0
      %p86 = por %p84, %p85
      %p87 = scmp.ne.s32.totalorder %s79, %s81
      %p88 = scmp.eq.s32.totalorder %s29, 1
      %p89 = por %p87, %p88
      %p90 = scmp.ne.s32.totalorder %s81, %s82
      %p91 = scmp.eq.s32.totalorder %s29, 0
      %p92 = por %p90, %p91
      %p93 = scmp.ne.s32.totalorder %s81, %s82
      %p94 = scmp.eq.s32.totalorder %s30, 1
      %p95 = por %p93, %p94
      %p97 = scmp.ne.s32.totalorder %s82, %s96
      %p98 = scmp.eq.s32.totalorder %s30, 0
      %p99 = por %p97, %p98
      %s101 = sadd.s32 %s100, 1
      %p104 = scmp.eq.s32.totalorder %s24, 1
      %p105 = scmp.ne.s32.totalorder %s100, %s102
      %p106 = scmp.eq.s32.totalorder %s24, 0
      %p107 = por %p105, %p106
      %p108 = scmp.ne.s32.totalorder %s100, %s102
      %p109 = scmp.eq.s32.totalorder %s29, 1
      %p110 = por %p108, %p109
      %p111 = scmp.ne.s32.totalorder %s102, %s103
      %p112 = scmp.eq.s32.totalorder %s29, 0
      %p113 = por %p111, %p112
      %p114 = scmp.ne.s32.totalorder %s102, %s103
      %p115 = scmp.eq.s32.totalorder %s30, 1
      %p116 = por %p114, %p115
      %p118 = scmp.ne.s32.totalorder %s103, %s117
      %p119 = scmp.eq.s32.totalorder %s30, 0
      %p120 = por %p118, %p119
      %s122 = sadd.s32 %s121, 1
      %p125 = scmp.eq.s32.totalorder %s24, 1
      %p126 = scmp.ne.s32.totalorder %s121, %s123
      %p127 = scmp.eq.s32.totalorder %s24, 0
      %p128 = por %p126, %p127
      %p129 = scmp.ne.s32.totalorder %s121, %s123
      %p130 = scmp.eq.s32.totalorder %s29, 1
      %p131 = por %p129, %p130
      %p132 = scmp.ne.s32.totalorder %s123, %s124
      %p133 = scmp.eq.s32.totalorder %s29, 0
      %p134 = por %p132, %p133
      %p135 = scmp.ne.s32.totalorder %s123, %s124
      %p136 = scmp.eq.s32.totalorder %s30, 1
      %p137 = por %p135, %p136
      %p139 = scmp.ne.s32.totalorder %s124, %s138
      %p140 = scmp.eq.s32.totalorder %s30, 0
      %p141 = por %p139, %p140
      %s142 = ssub.s32 %s24, %s31
      %p143 = scmp.eq.s32.totalorder %s142, 0
      %s145 = sadd.s32 %s144, 1
      %s146 = scalar_select %p143, %s144, %s145
      %p149 = pneg %p143
      %p150 = scmp.eq.s32.totalorder %s24, 1
      %p151 = por %p149, %p150
      %p152 = scmp.ne.s32.totalorder %s144, %s147
      %p153 = scmp.eq.s32.totalorder %s24, 0
      %p154 = por %p152, %p153
      %p155 = scmp.ne.s32.totalorder %s144, %s147
      %p156 = scmp.eq.s32.totalorder %s29, 1
      %p157 = por %p155, %p156
      %p158 = scmp.ne.s32.totalorder %s147, %s148
      %p159 = scmp.eq.s32.totalorder %s29, 0
      %p160 = por %p158, %p159
      %p161 = scmp.ne.s32.totalorder %s147, %s148
      %p162 = scmp.eq.s32.totalorder %s30, 1
      %p163 = por %p161, %p162
      %p165 = scmp.ne.s32.totalorder %s148, %s164
      %p166 = scmp.eq.s32.totalorder %s30, 0
      %p167 = por %p165, %p166
      %s168 = ssub.s32 %s24, %s31
      %p169 = scmp.eq.s32.totalorder %s168, 0
      %s171 = sadd.s32 %s170, 1
      %s172 = scalar_select %p169, %s170, %s171
      %p175 = pneg %p169
      %p176 = scmp.eq.s32.totalorder %s24, 1
      %p177 = por %p175, %p176
      %p178 = scmp.ne.s32.totalorder %s170, %s173
      %p179 = scmp.eq.s32.totalorder %s24, 0
      %p180 = por %p178, %p179
      %p181 = scmp.ne.s32.totalorder %s170, %s173
      %p182 = scmp.eq.s32.totalorder %s29, 1
      %p183 = por %p181, %p182
      %p184 = scmp.ne.s32.totalorder %s173, %s174
      %p185 = scmp.eq.s32.totalorder %s29, 0
      %p186 = por %p184, %p185
      %p187 = scmp.ne.s32.totalorder %s173, %s174
      %p188 = scmp.eq.s32.totalorder %s30, 1
      %p189 = por %p187, %p188
      %p191 = scmp.ne.s32.totalorder %s174, %s190
      %p192 = scmp.eq.s32.totalorder %s30, 0
      %p193 = por %p191, %p192
      %p194 = scmp.le.s32.totalorder 1, %s24
      %p195 = scmp.lt.s32.totalorder %s24, 3
      %p196 = pnand %p194, %p195
      %p197 = pneg %p196
      // Predicated region
      $region9: #{tpu_custom_call.1} parent=5 // pred_check
        _
      $region10: #{tpu_custom_call.1} parent=5 // pred_check_branch
        %199 = sbr.rel (%p196) target = $region12
      $region11: #{tpu_custom_call.1} parent=5 // pred_region
        %s200 = ssub.s32 %s24, 1
        // Predicated region
        $region13: #{tpu_custom_call.1} parent=11 // pred_check
          %p201 = pneg %p71
        $region14: #{tpu_custom_call.1} parent=11 // pred_check_branch
          %203 = sbr.rel (%p201) target = $region16
        $region15: #{tpu_custom_call.1} parent=11 // pred_region
          %s205 = ssub.s32 24576, 24576
          %206 = vsyncadd [#allocation7], %s205
          %s207 = sshll.u32 [#allocation6], 4
          %s208 = int_to_ptr.vmem [resolvable:$true] %s207
          %213 = dma.hbm_to_vmem [thread:$0]  %s1, 24576, %s208, [#allocation7], 128, 128, 8
        $region16: #{tpu_custom_call.1} parent=11 // pred_fallthru
          _
        // Predicated region
        $region17: #{tpu_custom_call.1} parent=11 // pred_check
          %p214 = pneg %p92
        $region18: #{tpu_custom_call.1} parent=11 // pred_check_branch
          %216 = sbr.rel (%p214) target = $region20
        $region19: #{tpu_custom_call.1} parent=11 // pred_region
          _
        $region20: #{tpu_custom_call.1} parent=11 // pred_fallthru
          _
        // Predicated region
        $region21: #{tpu_custom_call.1} parent=11 // pred_check
          %p217 = pneg %p113
        $region22: #{tpu_custom_call.1} parent=11 // pred_check_branch
          %219 = sbr.rel (%p217) target = $region24
        $region23: #{tpu_custom_call.1} parent=11 // pred_region
          %s221 = ssub.s32 6144, 6144
          %222 = vsyncadd [#allocation7], %s221
          %s223 = sshll.u32 [#allocation8], 4
          %s224 = int_to_ptr.vmem [resolvable:$true] %s223
          %229 = dma.hbm_to_vmem [thread:$0]  %s3, 6144, %s224, [#allocation7], 128, 128, 8
        $region24: #{tpu_custom_call.1} parent=11 // pred_fallthru
          _
        // Predicated region
        $region25: #{tpu_custom_call.1} parent=11 // pred_check
          %p230 = pneg %p134
        $region26: #{tpu_custom_call.1} parent=11 // pred_check_branch
          %232 = sbr.rel (%p230) target = $region28
        $region27: #{tpu_custom_call.1} parent=11 // pred_region
          %s234 = ssub.s32 4096, 4096
          %235 = vsyncadd [#allocation10], %s234
          %s236 = sshll.u32 [#allocation9], 4
          %s237 = int_to_ptr.vmem [resolvable:$true] %s236
          %242 = dma.hbm_to_vmem [thread:$0]  %s4, 4096, %s237, [#allocation10], 128, 128, 8
        $region28: #{tpu_custom_call.1} parent=11 // pred_fallthru
          _
      $region12: #{tpu_custom_call.1} parent=5 // pred_fallthru
        _
      %p243 = scmp.lt.s32.totalorder %s24, 2
      // Predicated region
      $region29: #{tpu_custom_call.1} parent=5 // pred_check
        %p244 = pneg %p243
      $region30: #{tpu_custom_call.1} parent=5 // pred_check_branch
        %246 = sbr.rel (%p244) target = $region32
      $region31: #{tpu_custom_call.1} parent=5 // pred_region
        // Predicated region
        $region33: #{tpu_custom_call.1} parent=31 // pred_check
          %p247 = pneg %p44
        $region34: #{tpu_custom_call.1} parent=31 // pred_check_branch
          %249 = sbr.rel (%p247) target = $region36
        $region35: #{tpu_custom_call.1} parent=31 // pred_region
          %s250 = sand.u32 %s34, 1
          %s251 = scalar_lea.sflag [#allocation4], %s250
          %s252 = sand.u32 %s34, 1
          %s253 = smul.addr %s252, 64
          %s254 = scalar_lea.vmem [#allocation3], %s253
          %s255 = smul.u32 8, %s24
          %s257 = ssub.s32 1024, 1024
          %258 = vsyncadd %s251, %s257
          %s259 = smul.addr %s255, 128
          %s260 = scalar_lea.hbm %s0, %s259
          %s261 = sshll.u32 %s254, 4
          %s262 = int_to_ptr.vmem [resolvable:$true] %s261
          %267 = dma.hbm_to_vmem [thread:$0]  %s260, 1024, %s262, %s251, 128, 128, 8
        $region36: #{tpu_custom_call.1} parent=31 // pred_fallthru
          _
      $region32: #{tpu_custom_call.1} parent=5 // pred_fallthru
        _
      %p268 = scmp.le.s32.totalorder 1, %s24
      %p269 = scmp.lt.s32.totalorder %s24, 3
      %p270 = pnand %p268, %p269
      %p271 = pneg %p270
      // Predicated region
      $region37: #{tpu_custom_call.1} parent=5 // pred_check
        _
      $region38: #{tpu_custom_call.1} parent=5 // pred_check_branch
        %273 = sbr.rel (%p270) target = $region40
      $region39: #{tpu_custom_call.1} parent=5 // pred_region
        %s274 = ssub.s32 %s24, 1
        %s275 = sand.u32 %s37, 1
        %s276 = scalar_lea.sflag [#allocation4], %s275
        %s277 = sand.u32 %s37, 1
        %s278 = smul.addr %s277, 64
        %s279 = scalar_lea.vmem [#allocation3], %s278
        // Predicated region
        $region41: #{tpu_custom_call.1} parent=39 // pred_check
          %p280 = pneg %p50
        $region42: #{tpu_custom_call.1} parent=39 // pred_check_branch
          %282 = sbr.rel (%p280) target = $region44
        $region43: #{tpu_custom_call.1} parent=39 // pred_region
          %283 = dma.done %s276, 1024
        $region44: #{tpu_custom_call.1} parent=39 // pred_fallthru
          _
        // Predicated region
        $region45: #{tpu_custom_call.1} parent=39 // pred_check
          %p284 = pneg %p71
        $region46: #{tpu_custom_call.1} parent=39 // pred_check_branch
          %286 = sbr.rel (%p284) target = $region48
        $region47: #{tpu_custom_call.1} parent=39 // pred_region
          %287 = dma.done [#allocation7], 24576
        $region48: #{tpu_custom_call.1} parent=39 // pred_fallthru
          _
        // Predicated region
        $region49: #{tpu_custom_call.1} parent=39 // pred_check
          %p288 = pneg %p113
        $region50: #{tpu_custom_call.1} parent=39 // pred_check_branch
          %290 = sbr.rel (%p288) target = $region52
        $region51: #{tpu_custom_call.1} parent=39 // pred_region
          %291 = dma.done [#allocation7], 6144
        $region52: #{tpu_custom_call.1} parent=39 // pred_fallthru
          _
        // Predicated region
        $region53: #{tpu_custom_call.1} parent=39 // pred_check
          %p292 = pneg %p134
        $region54: #{tpu_custom_call.1} parent=39 // pred_check_branch
          %294 = sbr.rel (%p292) target = $region56
        $region55: #{tpu_custom_call.1} parent=39 // pred_region
          %295 = dma.done [#allocation10], 4096
        $region56: #{tpu_custom_call.1} parent=39 // pred_fallthru
          _
        %s296 = sand.u32 %s37, 1
        %s297 = scalar_lea.sflag [#allocation4], %s296
        %s298 = sand.u32 %s37, 1
        %s299 = smul.addr %s298, 64
        %s300 = scalar_lea.vmem [#allocation3], %s299
        %p301 = pneg %p50
        %p302 = pneg %p47
        %p303 = pneg %p71
        %p304 = pneg %p68
        %p305 = pneg %p92
        %p306 = pneg %p89
        %p307 = pneg %p113
        %p308 = pneg %p110
        %p309 = pneg %p134
        %p310 = pneg %p131
        %p311 = pneg %p160
        %p312 = pneg %p157
        %s313 = sand.u32 %s147, 1
        %s314 = scalar_lea.sflag [#allocation5], %s313
        %s315 = sand.u32 %s147, 1
        %s316 = smul.addr %s315, 8
        %s317 = scalar_lea.vmem [#allocation11], %s316
        %p318 = pneg %p186
        %p319 = pneg %p183
        %s320 = sand.u32 %s173, 1
        %s321 = scalar_lea.sflag [#allocation13], %s320
        %s322 = sand.u32 %s173, 1
        %s323 = smul.addr %s322, 4
        %s324 = scalar_lea.vmem [#allocation12], %s323
        %s325 = smul.u32 8, %s29
        %v326 = vld [vmem:[%s279] sm:$0xff]
        %v327 = vld [vmem:[%s279 + $0x8] sm:$0xff]
        %v328 = vld [vmem:[%s279 + $0x10] sm:$0xff]
        %v329 = vld [vmem:[%s279 + $0x18] sm:$0xff]
        %v330 = vld [vmem:[%s279 + $0x20] sm:$0xff]
        %v331 = vld [vmem:[%s279 + $0x28] sm:$0xff]
        %v332 = vld [vmem:[%s279 + $0x30] sm:$0xff]
        %v333 = vld [vmem:[%s279 + $0x38] sm:$0xff]
        %334 = vst [vmem:[#allocation2] sm:$0x1] 0.0
        %335 = vst [vmem:[#allocation2 + $0x1] sm:$0xff] %v326
        %336 = vst [vmem:[#allocation2 + $0x9] sm:$0xff] %v327
        %337 = vst [vmem:[#allocation2 + $0x11] sm:$0x1] 0.0
        %338 = vst [vmem:[#allocation2 + $0x12] sm:$0x1] 0.0
        %339 = vst [vmem:[#allocation2 + $0x13] sm:$0xff] %v328
        %340 = vst [vmem:[#allocation2 + $0x1b] sm:$0xff] %v329
        %341 = vst [vmem:[#allocation2 + $0x23] sm:$0x1] 0.0
        %342 = vst [vmem:[#allocation2 + $0x24] sm:$0x1] 0.0
        %343 = vst [vmem:[#allocation2 + $0x25] sm:$0xff] %v330
        %344 = vst [vmem:[#allocation2 + $0x2d] sm:$0xff] %v331
        %345 = vst [vmem:[#allocation2 + $0x35] sm:$0x1] 0.0
        %346 = vst [vmem:[#allocation2 + $0x36] sm:$0x1] 0.0
        %347 = vst [vmem:[#allocation2 + $0x37] sm:$0xff] %v332
        %348 = vst [vmem:[#allocation2 + $0x3f] sm:$0xff] %v333
        %349 = vst [vmem:[#allocation2 + $0x47] sm:$0x1] 0.0
        %v350 = vld [vmem:[#allocation2] ss:$2 sm:$0xff]
        %s351 = scalar_lea.vmem [#allocation2], 18
        %v352 = vld [vmem:[%s351] ss:$2 sm:$0xff]
        %s353 = scalar_lea.vmem [#allocation2], 36
        %v354 = vld [vmem:[%s353] ss:$2 sm:$0xff]
        %s355 = scalar_lea.vmem [#allocation2], 54
        %v356 = vld [vmem:[%s355] ss:$2 sm:$0xff]
        %v357 = vld [vmem:[#allocation6] sm:$0xff]
        %v358 = vld [vmem:[#allocation6 + $0x8] sm:$0xff]
        %v359 = vld [vmem:[#allocation6 + $0x10] sm:$0xff]
        %v360 = vld [vmem:[#allocation6 + $0x18] sm:$0xff]
        %v361 = vld [vmem:[#allocation6 + $0x20] sm:$0xff]
        %v362 = vld [vmem:[#allocation6 + $0x28] sm:$0xff]
        %v363 = vld [vmem:[#allocation6 + $0x30] sm:$0xff]
        %v364 = vld [vmem:[#allocation6 + $0x38] sm:$0xff]
        %v365 = vld [vmem:[#allocation6 + $0x40] sm:$0xff]
        %v366 = vld [vmem:[#allocation6 + $0x48] sm:$0xff]
        %v367 = vld [vmem:[#allocation6 + $0x50] sm:$0xff]
        %v368 = vld [vmem:[#allocation6 + $0x58] sm:$0xff]
        %v369 = vld [vmem:[#allocation6 + $0x60] sm:$0xff]
        %v370 = vld [vmem:[#allocation6 + $0x68] sm:$0xff]
        %v371 = vld [vmem:[#allocation6 + $0x70] sm:$0xff]
        %v372 = vld [vmem:[#allocation6 + $0x78] sm:$0xff]
        %s373 = scalar_lea.vmem [#allocation2], 1
        %v374 = vld [vmem:[%s373] ss:$2 sm:$0xff]
        %s375 = scalar_lea.vmem [#allocation2], 19
        %v376 = vld [vmem:[%s375] ss:$2 sm:$0xff]
        %s377 = scalar_lea.vmem [#allocation2], 37
        %v378 = vld [vmem:[%s377] ss:$2 sm:$0xff]
        %s379 = scalar_lea.vmem [#allocation2], 55
        %v380 = vld [vmem:[%s379] ss:$2 sm:$0xff]
        %s381 = scalar_lea.vmem [#allocation6], 128
        %v382 = vld [vmem:[%s381] sm:$0xff]
        %v383 = vld [vmem:[%s381 + $0x8] sm:$0xff]
        %v384 = vld [vmem:[%s381 + $0x10] sm:$0xff]
        %v385 = vld [vmem:[%s381 + $0x18] sm:$0xff]
        %v386 = vld [vmem:[%s381 + $0x20] sm:$0xff]
        %v387 = vld [vmem:[%s381 + $0x28] sm:$0xff]
        %v388 = vld [vmem:[%s381 + $0x30] sm:$0xff]
        %v389 = vld [vmem:[%s381 + $0x38] sm:$0xff]
        %v390 = vld [vmem:[%s381 + $0x40] sm:$0xff]
        %v391 = vld [vmem:[%s381 + $0x48] sm:$0xff]
        %v392 = vld [vmem:[%s381 + $0x50] sm:$0xff]
        %v393 = vld [vmem:[%s381 + $0x58] sm:$0xff]
        %v394 = vld [vmem:[%s381 + $0x60] sm:$0xff]
        %v395 = vld [vmem:[%s381 + $0x68] sm:$0xff]
        %v396 = vld [vmem:[%s381 + $0x70] sm:$0xff]
        %v397 = vld [vmem:[%s381 + $0x78] sm:$0xff]
        %398 = vmatprep.subr.mxu0 0.0
        %399 = vmatpush1.msra.mxu0 %v397
        %400 = vmatprep.subr.mxu0 0.0
        %401 = vmatpush1.msra.mxu0 %v396
        %402 = vmatprep.subr.mxu0 0.0
        %403 = vmatpush1.msra.mxu0 %v395
        %404 = vmatprep.subr.mxu0 0.0
        %405 = vmatpush1.msra.mxu0 %v394
        %406 = vmatprep.subr.mxu0 0.0
        %407 = vmatpush1.msra.mxu0 %v393
        %408 = vmatprep.subr.mxu0 0.0
        %409 = vmatpush1.msra.mxu0 %v392
        %410 = vmatprep.subr.mxu0 0.0
        %411 = vmatpush1.msra.mxu0 %v391
        %412 = vmatprep.subr.mxu0 0.0
        %413 = vmatpush1.msra.mxu0 %v390
        %414 = vmatprep.subr.mxu0 0.0
        %415 = vmatpush1.msra.mxu0 %v389
        %416 = vmatprep.subr.mxu0 0.0
        %417 = vmatpush1.msra.mxu0 %v388
        %418 = vmatprep.subr.mxu0 0.0
        %419 = vmatpush1.msra.mxu0 %v387
        %420 = vmatprep.subr.mxu0 0.0
        %421 = vmatpush1.msra.mxu0 %v386
        %422 = vmatprep.subr.mxu0 0.0
        %423 = vmatpush1.msra.mxu0 %v385
        %424 = vmatprep.subr.mxu0 0.0
        %425 = vmatpush1.msra.mxu0 %v384
        %426 = vmatprep.subr.mxu0 0.0
        %427 = vmatpush1.msra.mxu0 %v383
        %428 = vmatprep.subr.mxu0 0.0
        %429 = vmatpush1.msra.mxu0 %v382
        %430 = vmatprep.subr.mxu0 0.0
        %431 = vmatpush2.msra.mxu0 0.0
        %432 = vmatprep.subr.mxu0 0.0
        %433 = vmatpush2.msra.mxu0 0.0
        %434 = vmatprep.subr.mxu0 0.0
        %435 = vmatpush2.msra.mxu0 0.0
        %436 = vmatprep.subr.mxu0 0.0
        %437 = vmatpush2.msra.mxu0 0.0
        %438 = vmatprep.subr.mxu0 0.0
        %439 = vmatpush2.msra.mxu0 0.0
        %440 = vmatprep.subr.mxu0 0.0
        %441 = vmatpush2.msra.mxu0 0.0
        %442 = vmatprep.subr.mxu0 0.0
        %443 = vmatpush2.msra.mxu0 0.0
        %444 = vmatprep.subr.mxu0 0.0
        %445 = vmatpush2.msra.mxu0 0.0
        %446 = vmatprep.subr.mxu0 0.0
        %447 = vmatpush2.msra.mxu0 0.0
        %448 = vmatprep.subr.mxu0 0.0
        %449 = vmatpush2.msra.mxu0 0.0
        %450 = vmatprep.subr.mxu0 0.0
        %451 = vmatpush2.msra.mxu0 0.0
        %452 = vmatprep.subr.mxu0 0.0
        %453 = vmatpush2.msra.mxu0 0.0
        %454 = vmatprep.subr.mxu0 0.0
        %455 = vmatpush2.msra.mxu0 0.0
        %456 = vmatprep.subr.mxu0 0.0
        %457 = vmatpush2.msra.mxu0 0.0
        %458 = vmatprep.subr.mxu0 0.0
        %459 = vmatpush2.msra.mxu0 0.0
        %460 = vmatprep.subr.mxu0 0.0
        %461 = vmatpush2.msra.mxu0 0.0
        %462 = vmatprep.mubr.f32.mxu0 0.0
        %463 = vmatmul.mubr.f32.gmra.mxu0 %v374
        %v464 = vpop.f32.mrf.mxu0
        %v465 = vadd.f32 0.0, %v464
        %v466 = vpop.f32.mrf.mxu0
        %467 = vmatprep.mubr.f32.mxu0 0.0
        %468 = vmatmul.mubr.f32.gmra.mxu0 %v376
        %v469 = vpop.f32.mrf.mxu0
        %v470 = vadd.f32 0.0, %v469
        %v471 = vpop.f32.mrf.mxu0
        %472 = vmatprep.mubr.f32.mxu0 0.0
        %473 = vmatmul.mubr.f32.gmra.mxu0 %v378
        %v474 = vpop.f32.mrf.mxu0
        %v475 = vadd.f32 0.0, %v474
        %v476 = vpop.f32.mrf.mxu0
        %477 = vmatprep.mubr.f32.mxu0 0.0
        %478 = vmatmul.mubr.f32.gmra.mxu0 %v380
        %v479 = vpop.f32.mrf.mxu0
        %v480 = vadd.f32 0.0, %v479
        %v481 = vpop.f32.mrf.mxu0
        %482 = vdwg.mxu0
        %483 = vmatprep.subr.mxu0 0.0
        %484 = vmatpush1.msra.mxu0 %v372
        %485 = vmatprep.subr.mxu0 0.0
        %486 = vmatpush1.msra.mxu0 %v371
        %487 = vmatprep.subr.mxu0 0.0
        %488 = vmatpush1.msra.mxu0 %v370
        %489 = vmatprep.subr.mxu0 0.0
        %490 = vmatpush1.msra.mxu0 %v369
        %491 = vmatprep.subr.mxu0 0.0
        %492 = vmatpush1.msra.mxu0 %v368
        %493 = vmatprep.subr.mxu0 0.0
        %494 = vmatpush1.msra.mxu0 %v367
        %495 = vmatprep.subr.mxu0 0.0
        %496 = vmatpush1.msra.mxu0 %v366
        %497 = vmatprep.subr.mxu0 0.0
        %498 = vmatpush1.msra.mxu0 %v365
        %499 = vmatprep.subr.mxu0 0.0
        %500 = vmatpush1.msra.mxu0 %v364
        %501 = vmatprep.subr.mxu0 0.0
        %502 = vmatpush1.msra.mxu0 %v363
        %503 = vmatprep.subr.mxu0 0.0
        %504 = vmatpush1.msra.mxu0 %v362
        %505 = vmatprep.subr.mxu0 0.0
        %506 = vmatpush1.msra.mxu0 %v361
        %507 = vmatprep.subr.mxu0 0.0
        %508 = vmatpush1.msra.mxu0 %v360
        %509 = vmatprep.subr.mxu0 0.0
        %510 = vmatpush1.msra.mxu0 %v359
        %511 = vmatprep.subr.mxu0 0.0
        %512 = vmatpush1.msra.mxu0 %v358
        %513 = vmatprep.subr.mxu0 0.0
        %514 = vmatpush1.msra.mxu0 %v357
        %515 = vmatprep.subr.mxu0 0.0
        %516 = vmatpush2.msra.mxu0 0.0
        %517 = vmatprep.subr.mxu0 0.0
        %518 = vmatpush2.msra.mxu0 0.0
        %519 = vmatprep.subr.mxu0 0.0
        %520 = vmatpush2.msra.mxu0 0.0
        %521 = vmatprep.subr.mxu0 0.0
        %522 = vmatpush2.msra.mxu0 0.0
        %523 = vmatprep.subr.mxu0 0.0
        %524 = vmatpush2.msra.mxu0 0.0
        %525 = vmatprep.subr.mxu0 0.0
        %526 = vmatpush2.msra.mxu0 0.0
        %527 = vmatprep.subr.mxu0 0.0
        %528 = vmatpush2.msra.mxu0 0.0
        %529 = vmatprep.subr.mxu0 0.0
        %530 = vmatpush2.msra.mxu0 0.0
        %531 = vmatprep.subr.mxu0 0.0
        %532 = vmatpush2.msra.mxu0 0.0
        %533 = vmatprep.subr.mxu0 0.0
        %534 = vmatpush2.msra.mxu0 0.0
        %535 = vmatprep.subr.mxu0 0.0
        %536 = vmatpush2.msra.mxu0 0.0
        %537 = vmatprep.subr.mxu0 0.0
        %538 = vmatpush2.msra.mxu0 0.0
        %539 = vmatprep.subr.mxu0 0.0
        %540 = vmatpush2.msra.mxu0 0.0
        %541 = vmatprep.subr.mxu0 0.0
        %542 = vmatpush2.msra.mxu0 0.0
        %543 = vmatprep.subr.mxu0 0.0
        %544 = vmatpush2.msra.mxu0 0.0
        %545 = vmatprep.subr.mxu0 0.0
        %546 = vmatpush2.msra.mxu0 0.0
        %547 = vmatprep.mubr.f32.mxu0 0.0
        %548 = vmatmul.mubr.f32.gmra.mxu0 %v350
        %v549 = vpop.f32.mrf.mxu0
        %v550 = vadd.f32 %v465, %v549
        %v551 = vpop.f32.mrf.mxu0
        %552 = vmatprep.mubr.f32.mxu0 0.0
        %553 = vmatmul.mubr.f32.gmra.mxu0 %v352
        %v554 = vpop.f32.mrf.mxu0
        %v555 = vadd.f32 %v470, %v554
        %v556 = vpop.f32.mrf.mxu0
        %557 = vmatprep.mubr.f32.mxu0 0.0
        %558 = vmatmul.mubr.f32.gmra.mxu0 %v354
        %v559 = vpop.f32.mrf.mxu0
        %v560 = vadd.f32 %v475, %v559
        %v561 = vpop.f32.mrf.mxu0
        %562 = vmatprep.mubr.f32.mxu0 0.0
        %563 = vmatmul.mubr.f32.gmra.mxu0 %v356
        %v564 = vpop.f32.mrf.mxu0
        %v565 = vadd.f32 %v480, %v564
        %v566 = vpop.f32.mrf.mxu0
        %567 = vdwg.mxu0
        %s568 = scalar_lea.vmem [#allocation2], 2
        %v569 = vld [vmem:[%s568] ss:$2 sm:$0xff]
        %s570 = scalar_lea.vmem [#allocation2], 20
        %v571 = vld [vmem:[%s570] ss:$2 sm:$0xff]
        %s572 = scalar_lea.vmem [#allocation2], 38
        %v573 = vld [vmem:[%s572] ss:$2 sm:$0xff]
        %s574 = scalar_lea.vmem [#allocation2], 56
        %v575 = vld [vmem:[%s574] ss:$2 sm:$0xff]
        %s576 = scalar_lea.vmem [#allocation6], 256
        %v577 = vld [vmem:[%s576] sm:$0xff]
        %v578 = vld [vmem:[%s576 + $0x8] sm:$0xff]
        %v579 = vld [vmem:[%s576 + $0x10] sm:$0xff]
        %v580 = vld [vmem:[%s576 + $0x18] sm:$0xff]
        %v581 = vld [vmem:[%s576 + $0x20] sm:$0xff]
        %v582 = vld [vmem:[%s576 + $0x28] sm:$0xff]
        %v583 = vld [vmem:[%s576 + $0x30] sm:$0xff]
        %v584 = vld [vmem:[%s576 + $0x38] sm:$0xff]
        %v585 = vld [vmem:[%s576 + $0x40] sm:$0xff]
        %v586 = vld [vmem:[%s576 + $0x48] sm:$0xff]
        %v587 = vld [vmem:[%s576 + $0x50] sm:$0xff]
        %v588 = vld [vmem:[%s576 + $0x58] sm:$0xff]
        %v589 = vld [vmem:[%s576 + $0x60] sm:$0xff]
        %v590 = vld [vmem:[%s576 + $0x68] sm:$0xff]
        %v591 = vld [vmem:[%s576 + $0x70] sm:$0xff]
        %v592 = vld [vmem:[%s576 + $0x78] sm:$0xff]
        %593 = vmatprep.subr.mxu0 0.0
        %594 = vmatpush1.msra.mxu0 %v592
        %595 = vmatprep.subr.mxu0 0.0
        %596 = vmatpush1.msra.mxu0 %v591
        %597 = vmatprep.subr.mxu0 0.0
        %598 = vmatpush1.msra.mxu0 %v590
        %599 = vmatprep.subr.mxu0 0.0
        %600 = vmatpush1.msra.mxu0 %v589
        %601 = vmatprep.subr.mxu0 0.0
        %602 = vmatpush1.msra.mxu0 %v588
        %603 = vmatprep.subr.mxu0 0.0
        %604 = vmatpush1.msra.mxu0 %v587
        %605 = vmatprep.subr.mxu0 0.0
        %606 = vmatpush1.msra.mxu0 %v586
        %607 = vmatprep.subr.mxu0 0.0
        %608 = vmatpush1.msra.mxu0 %v585
        %609 = vmatprep.subr.mxu0 0.0
        %610 = vmatpush1.msra.mxu0 %v584
        %611 = vmatprep.subr.mxu0 0.0
        %612 = vmatpush1.msra.mxu0 %v583
        %613 = vmatprep.subr.mxu0 0.0
        %614 = vmatpush1.msra.mxu0 %v582
        %615 = vmatprep.subr.mxu0 0.0
        %616 = vmatpush1.msra.mxu0 %v581
        %617 = vmatprep.subr.mxu0 0.0
        %618 = vmatpush1.msra.mxu0 %v580
        %619 = vmatprep.subr.mxu0 0.0
        %620 = vmatpush1.msra.mxu0 %v579
        %621 = vmatprep.subr.mxu0 0.0
        %622 = vmatpush1.msra.mxu0 %v578
        %623 = vmatprep.subr.mxu0 0.0
        %624 = vmatpush1.msra.mxu0 %v577
        %625 = vmatprep.subr.mxu0 0.0
        %626 = vmatpush2.msra.mxu0 0.0
        %627 = vmatprep.subr.mxu0 0.0
        %628 = vmatpush2.msra.mxu0 0.0
        %629 = vmatprep.subr.mxu0 0.0
        %630 = vmatpush2.msra.mxu0 0.0
        %631 = vmatprep.subr.mxu0 0.0
        %632 = vmatpush2.msra.mxu0 0.0
        %633 = vmatprep.subr.mxu0 0.0
        %634 = vmatpush2.msra.mxu0 0.0
        %635 = vmatprep.subr.mxu0 0.0
        %636 = vmatpush2.msra.mxu0 0.0
        %637 = vmatprep.subr.mxu0 0.0
        %638 = vmatpush2.msra.mxu0 0.0
        %639 = vmatprep.subr.mxu0 0.0
        %640 = vmatpush2.msra.mxu0 0.0
        %641 = vmatprep.subr.mxu0 0.0
        %642 = vmatpush2.msra.mxu0 0.0
        %643 = vmatprep.subr.mxu0 0.0
        %644 = vmatpush2.msra.mxu0 0.0
        %645 = vmatprep.subr.mxu0 0.0
        %646 = vmatpush2.msra.mxu0 0.0
        %647 = vmatprep.subr.mxu0 0.0
        %648 = vmatpush2.msra.mxu0 0.0
        %649 = vmatprep.subr.mxu0 0.0
        %650 = vmatpush2.msra.mxu0 0.0
        %651 = vmatprep.subr.mxu0 0.0
        %652 = vmatpush2.msra.mxu0 0.0
        %653 = vmatprep.subr.mxu0 0.0
        %654 = vmatpush2.msra.mxu0 0.0
        %655 = vmatprep.subr.mxu0 0.0
        %656 = vmatpush2.msra.mxu0 0.0
        %657 = vmatprep.mubr.f32.mxu0 0.0
        %658 = vmatmul.mubr.f32.gmra.mxu0 %v569
        %v659 = vpop.f32.mrf.mxu0
        %v660 = vadd.f32 0.0, %v659
        %v661 = vpop.f32.mrf.mxu0
        %662 = vmatprep.mubr.f32.mxu0 0.0
        %663 = vmatmul.mubr.f32.gmra.mxu0 %v571
        %v664 = vpop.f32.mrf.mxu0
        %v665 = vadd.f32 0.0, %v664
        %v666 = vpop.f32.mrf.mxu0
        %667 = vmatprep.mubr.f32.mxu0 0.0
        %668 = vmatmul.mubr.f32.gmra.mxu0 %v573
        %v669 = vpop.f32.mrf.mxu0
        %v670 = vadd.f32 0.0, %v669
        %v671 = vpop.f32.mrf.mxu0
        %672 = vmatprep.mubr.f32.mxu0 0.0
        %673 = vmatmul.mubr.f32.gmra.mxu0 %v575
        %v674 = vpop.f32.mrf.mxu0
        %v675 = vadd.f32 0.0, %v674
        %v676 = vpop.f32.mrf.mxu0
        %677 = vdwg.mxu0
        %v678 = vadd.f32 %v550, %v660
        %v679 = vadd.f32 %v555, %v665
        %v680 = vadd.f32 %v560, %v670
        %v681 = vadd.f32 %v565, %v675
        %s682 = scalar_lea.vmem [#allocation2], 3
        %v683 = vld [vmem:[%s682] ss:$2 sm:$0xff]
        %s684 = scalar_lea.vmem [#allocation2], 21
        %v685 = vld [vmem:[%s684] ss:$2 sm:$0xff]
        %s686 = scalar_lea.vmem [#allocation2], 39
        %v687 = vld [vmem:[%s686] ss:$2 sm:$0xff]
        %s688 = scalar_lea.vmem [#allocation2], 57
        %v689 = vld [vmem:[%s688] ss:$2 sm:$0xff]
        %s690 = scalar_lea.vmem [#allocation6], 384
        %v691 = vld [vmem:[%s690] sm:$0xff]
        %v692 = vld [vmem:[%s690 + $0x8] sm:$0xff]
        %v693 = vld [vmem:[%s690 + $0x10] sm:$0xff]
        %v694 = vld [vmem:[%s690 + $0x18] sm:$0xff]
        %v695 = vld [vmem:[%s690 + $0x20] sm:$0xff]
        %v696 = vld [vmem:[%s690 + $0x28] sm:$0xff]
        %v697 = vld [vmem:[%s690 + $0x30] sm:$0xff]
        %v698 = vld [vmem:[%s690 + $0x38] sm:$0xff]
        %v699 = vld [vmem:[%s690 + $0x40] sm:$0xff]
        %v700 = vld [vmem:[%s690 + $0x48] sm:$0xff]
        %v701 = vld [vmem:[%s690 + $0x50] sm:$0xff]
        %v702 = vld [vmem:[%s690 + $0x58] sm:$0xff]
        %v703 = vld [vmem:[%s690 + $0x60] sm:$0xff]
        %v704 = vld [vmem:[%s690 + $0x68] sm:$0xff]
        %v705 = vld [vmem:[%s690 + $0x70] sm:$0xff]
        %v706 = vld [vmem:[%s690 + $0x78] sm:$0xff]
        %707 = vmatprep.subr.mxu0 0.0
        %708 = vmatpush1.msra.mxu0 %v706
        %709 = vmatprep.subr.mxu0 0.0
        %710 = vmatpush1.msra.mxu0 %v705
        %711 = vmatprep.subr.mxu0 0.0
        %712 = vmatpush1.msra.mxu0 %v704
        %713 = vmatprep.subr.mxu0 0.0
        %714 = vmatpush1.msra.mxu0 %v703
        %715 = vmatprep.subr.mxu0 0.0
        %716 = vmatpush1.msra.mxu0 %v702
        %717 = vmatprep.subr.mxu0 0.0
        %718 = vmatpush1.msra.mxu0 %v701
        %719 = vmatprep.subr.mxu0 0.0
        %720 = vmatpush1.msra.mxu0 %v700
        %721 = vmatprep.subr.mxu0 0.0
        %722 = vmatpush1.msra.mxu0 %v699
        %723 = vmatprep.subr.mxu0 0.0
        %724 = vmatpush1.msra.mxu0 %v698
        %725 = vmatprep.subr.mxu0 0.0
        %726 = vmatpush1.msra.mxu0 %v697
        %727 = vmatprep.subr.mxu0 0.0
        %728 = vmatpush1.msra.mxu0 %v696
        %729 = vmatprep.subr.mxu0 0.0
        %730 = vmatpush1.msra.mxu0 %v695
        %731 = vmatprep.subr.mxu0 0.0
        %732 = vmatpush1.msra.mxu0 %v694
        %733 = vmatprep.subr.mxu0 0.0
        %734 = vmatpush1.msra.mxu0 %v693
        %735 = vmatprep.subr.mxu0 0.0
        %736 = vmatpush1.msra.mxu0 %v692
        %737 = vmatprep.subr.mxu0 0.0
        %738 = vmatpush1.msra.mxu0 %v691
        %739 = vmatprep.subr.mxu0 0.0
        %740 = vmatpush2.msra.mxu0 0.0
        %741 = vmatprep.subr.mxu0 0.0
        %742 = vmatpush2.msra.mxu0 0.0
        %743 = vmatprep.subr.mxu0 0.0
        %744 = vmatpush2.msra.mxu0 0.0
        %745 = vmatprep.subr.mxu0 0.0
        %746 = vmatpush2.msra.mxu0 0.0
        %747 = vmatprep.subr.mxu0 0.0
        %748 = vmatpush2.msra.mxu0 0.0
        %749 = vmatprep.subr.mxu0 0.0
        %750 = vmatpush2.msra.mxu0 0.0
        %751 = vmatprep.subr.mxu0 0.0
        %752 = vmatpush2.msra.mxu0 0.0
        %753 = vmatprep.subr.mxu0 0.0
        %754 = vmatpush2.msra.mxu0 0.0
        %755 = vmatprep.subr.mxu0 0.0
        %756 = vmatpush2.msra.mxu0 0.0
        %757 = vmatprep.subr.mxu0 0.0
        %758 = vmatpush2.msra.mxu0 0.0
        %759 = vmatprep.subr.mxu0 0.0
        %760 = vmatpush2.msra.mxu0 0.0
        %761 = vmatprep.subr.mxu0 0.0
        %762 = vmatpush2.msra.mxu0 0.0
        %763 = vmatprep.subr.mxu0 0.0
        %764 = vmatpush2.msra.mxu0 0.0
        %765 = vmatprep.subr.mxu0 0.0
        %766 = vmatpush2.msra.mxu0 0.0
        %767 = vmatprep.subr.mxu0 0.0
        %768 = vmatpush2.msra.mxu0 0.0
        %769 = vmatprep.subr.mxu0 0.0
        %770 = vmatpush2.msra.mxu0 0.0
        %771 = vmatprep.mubr.f32.mxu0 0.0
        %772 = vmatmul.mubr.f32.gmra.mxu0 %v683
        %v773 = vpop.f32.mrf.mxu0
        %v774 = vadd.f32 0.0, %v773
        %v775 = vpop.f32.mrf.mxu0
        %776 = vmatprep.mubr.f32.mxu0 0.0
        %777 = vmatmul.mubr.f32.gmra.mxu0 %v685
        %v778 = vpop.f32.mrf.mxu0
        %v779 = vadd.f32 0.0, %v778
        %v780 = vpop.f32.mrf.mxu0
        %781 = vmatprep.mubr.f32.mxu0 0.0
        %782 = vmatmul.mubr.f32.gmra.mxu0 %v687
        %v783 = vpop.f32.mrf.mxu0
        %v784 = vadd.f32 0.0, %v783
        %v785 = vpop.f32.mrf.mxu0
        %786 = vmatprep.mubr.f32.mxu0 0.0
        %787 = vmatmul.mubr.f32.gmra.mxu0 %v689
        %v788 = vpop.f32.mrf.mxu0
        %v789 = vadd.f32 0.0, %v788
        %v790 = vpop.f32.mrf.mxu0
        %791 = vdwg.mxu0
        %v792 = vadd.f32 %v678, %v774
        %v793 = vadd.f32 %v679, %v779
        %v794 = vadd.f32 %v680, %v784
        %v795 = vadd.f32 %v681, %v789
        %v796 = vld [vmem:[%s2] sm:$0x1]
        %v798 = vlaneseq
        %v799 = vshrl.u32 %v798, 7
        %v800 = vsub.s32 0, %v799
        %v801 = vrot.slane %v796, %v800
        %v803 = vadd.f32 %v792, %v801
        %v804 = vadd.f32 %v793, %v801
        %v805 = vadd.f32 %v794, %v801
        %v806 = vadd.f32 %v795, %v801
        %vm807 = vcmp.ge.f32.partialorder %v803, 0.0
        %vm808 = vcmp.ge.f32.partialorder %v804, 0.0
        %vm809 = vcmp.ge.f32.partialorder %v805, 0.0
        %vm810 = vcmp.ge.f32.partialorder %v806, 0.0
        %v811 = vmul.f32 %v803, 0.01
        %v812 = vmul.f32 %v804, 0.01
        %v813 = vmul.f32 %v805, 0.01
        %v814 = vmul.f32 %v806, 0.01
        %v815 = vsel %vm807, %v803, %v811
        %v816 = vsel %vm808, %v804, %v812
        %v817 = vsel %vm809, %v805, %v813
        %v818 = vsel %vm810, %v806, %v814
        %819 = vst [vmem:[#allocation2] sm:$0x1] 0.0
        %820 = vst [vmem:[#allocation2 + $0x1] sm:$0xff] %v815
        %821 = vst [vmem:[#allocation2 + $0x9] sm:$0x1] 0.0
        %822 = vst [vmem:[#allocation2 + $0xa] sm:$0x1] 0.0
        %823 = vst [vmem:[#allocation2 + $0xb] sm:$0xff] %v816
        %824 = vst [vmem:[#allocation2 + $0x13] sm:$0x1] 0.0
        %825 = vst [vmem:[#allocation2 + $0x14] sm:$0x1] 0.0
        %826 = vst [vmem:[#allocation2 + $0x15] sm:$0xff] %v817
        %827 = vst [vmem:[#allocation2 + $0x1d] sm:$0x1] 0.0
        %828 = vst [vmem:[#allocation2 + $0x1e] sm:$0x1] 0.0
        %829 = vst [vmem:[#allocation2 + $0x1f] sm:$0xff] %v818
        %830 = vst [vmem:[#allocation2 + $0x27] sm:$0x1] 0.0
        %v831 = vld [vmem:[#allocation2] ss:$2 sm:$0xf]
        %s832 = scalar_lea.vmem [#allocation2], 10
        %v833 = vld [vmem:[%s832] ss:$2 sm:$0xf]
        %v834 = vld [vmem:[%s570] ss:$2 sm:$0xf]
        %s835 = scalar_lea.vmem [#allocation2], 30
        %v836 = vld [vmem:[%s835] ss:$2 sm:$0xf]
        %v838 = vrot.slane %v833, 4
        %v841 = vrot.slane %v836, 4
        %vm843 = vcmask 1043456
        %v844 = vsel %vm843, %v831, %v838
        %v845 = vsel %vm843, %v834, %v841
        %s846 = scalar_lea.vmem [#allocation6], 512
        %v847 = vld [vmem:[%s846] sm:$0xff]
        %v848 = vld [vmem:[%s846 + $0x8] sm:$0xff]
        %v849 = vld [vmem:[%s846 + $0x10] sm:$0xff]
        %v850 = vld [vmem:[%s846 + $0x18] sm:$0xff]
        %v851 = vld [vmem:[%s846 + $0x20] sm:$0xff]
        %v852 = vld [vmem:[%s846 + $0x28] sm:$0xff]
        %v853 = vld [vmem:[%s846 + $0x30] sm:$0xff]
        %v854 = vld [vmem:[%s846 + $0x38] sm:$0xff]
        %v855 = vld [vmem:[%s846 + $0x40] sm:$0xff]
        %v856 = vld [vmem:[%s846 + $0x48] sm:$0xff]
        %v857 = vld [vmem:[%s846 + $0x50] sm:$0xff]
        %v858 = vld [vmem:[%s846 + $0x58] sm:$0xff]
        %v859 = vld [vmem:[%s846 + $0x60] sm:$0xff]
        %v860 = vld [vmem:[%s846 + $0x68] sm:$0xff]
        %v861 = vld [vmem:[%s846 + $0x70] sm:$0xff]
        %v862 = vld [vmem:[%s846 + $0x78] sm:$0xff]
        %v863 = vld [vmem:[%s373] ss:$2 sm:$0xf]
        %s864 = scalar_lea.vmem [#allocation2], 11
        %v865 = vld [vmem:[%s864] ss:$2 sm:$0xf]
        %v866 = vld [vmem:[%s684] ss:$2 sm:$0xf]
        %s867 = scalar_lea.vmem [#allocation2], 31
        %v868 = vld [vmem:[%s867] ss:$2 sm:$0xf]
        %v870 = vrot.slane %v865, 4
        %v873 = vrot.slane %v868, 4
        %v875 = vsel %vm843, %v863, %v870
        %v876 = vsel %vm843, %v866, %v873
        %s877 = scalar_lea.vmem [#allocation6], 640
        %v878 = vld [vmem:[%s877] sm:$0xff]
        %v879 = vld [vmem:[%s877 + $0x8] sm:$0xff]
        %v880 = vld [vmem:[%s877 + $0x10] sm:$0xff]
        %v881 = vld [vmem:[%s877 + $0x18] sm:$0xff]
        %v882 = vld [vmem:[%s877 + $0x20] sm:$0xff]
        %v883 = vld [vmem:[%s877 + $0x28] sm:$0xff]
        %v884 = vld [vmem:[%s877 + $0x30] sm:$0xff]
        %v885 = vld [vmem:[%s877 + $0x38] sm:$0xff]
        %v886 = vld [vmem:[%s877 + $0x40] sm:$0xff]
        %v887 = vld [vmem:[%s877 + $0x48] sm:$0xff]
        %v888 = vld [vmem:[%s877 + $0x50] sm:$0xff]
        %v889 = vld [vmem:[%s877 + $0x58] sm:$0xff]
        %v890 = vld [vmem:[%s877 + $0x60] sm:$0xff]
        %v891 = vld [vmem:[%s877 + $0x68] sm:$0xff]
        %v892 = vld [vmem:[%s877 + $0x70] sm:$0xff]
        %v893 = vld [vmem:[%s877 + $0x78] sm:$0xff]
        %894 = vmatprep.subr.mxu0 0.0
        %895 = vmatpush1.msra.mxu0 %v893
        %896 = vmatprep.subr.mxu0 0.0
        %897 = vmatpush1.msra.mxu0 %v892
        %898 = vmatprep.subr.mxu0 0.0
        %899 = vmatpush1.msra.mxu0 %v891
        %900 = vmatprep.subr.mxu0 0.0
        %901 = vmatpush1.msra.mxu0 %v890
        %902 = vmatprep.subr.mxu0 0.0
        %903 = vmatpush1.msra.mxu0 %v889
        %904 = vmatprep.subr.mxu0 0.0
        %905 = vmatpush1.msra.mxu0 %v888
        %906 = vmatprep.subr.mxu0 0.0
        %907 = vmatpush1.msra.mxu0 %v887
        %908 = vmatprep.subr.mxu0 0.0
        %909 = vmatpush1.msra.mxu0 %v886
        %910 = vmatprep.subr.mxu0 0.0
        %911 = vmatpush1.msra.mxu0 %v885
        %912 = vmatprep.subr.mxu0 0.0
        %913 = vmatpush1.msra.mxu0 %v884
        %914 = vmatprep.subr.mxu0 0.0
        %915 = vmatpush1.msra.mxu0 %v883
        %916 = vmatprep.subr.mxu0 0.0
        %917 = vmatpush1.msra.mxu0 %v882
        %918 = vmatprep.subr.mxu0 0.0
        %919 = vmatpush1.msra.mxu0 %v881
        %920 = vmatprep.subr.mxu0 0.0
        %921 = vmatpush1.msra.mxu0 %v880
        %922 = vmatprep.subr.mxu0 0.0
        %923 = vmatpush1.msra.mxu0 %v879
        %924 = vmatprep.subr.mxu0 0.0
        %925 = vmatpush1.msra.mxu0 %v878
        %926 = vmatprep.subr.mxu0 0.0
        %927 = vmatpush2.msra.mxu0 0.0
        %928 = vmatprep.subr.mxu0 0.0
        %929 = vmatpush2.msra.mxu0 0.0
        %930 = vmatprep.subr.mxu0 0.0
        %931 = vmatpush2.msra.mxu0 0.0
        %932 = vmatprep.subr.mxu0 0.0
        %933 = vmatpush2.msra.mxu0 0.0
        %934 = vmatprep.subr.mxu0 0.0
        %935 = vmatpush2.msra.mxu0 0.0
        %936 = vmatprep.subr.mxu0 0.0
        %937 = vmatpush2.msra.mxu0 0.0
        %938 = vmatprep.subr.mxu0 0.0
        %939 = vmatpush2.msra.mxu0 0.0
        %940 = vmatprep.subr.mxu0 0.0
        %941 = vmatpush2.msra.mxu0 0.0
        %942 = vmatprep.subr.mxu0 0.0
        %943 = vmatpush2.msra.mxu0 0.0
        %944 = vmatprep.subr.mxu0 0.0
        %945 = vmatpush2.msra.mxu0 0.0
        %946 = vmatprep.subr.mxu0 0.0
        %947 = vmatpush2.msra.mxu0 0.0
        %948 = vmatprep.subr.mxu0 0.0
        %949 = vmatpush2.msra.mxu0 0.0
        %950 = vmatprep.subr.mxu0 0.0
        %951 = vmatpush2.msra.mxu0 0.0
        %952 = vmatprep.subr.mxu0 0.0
        %953 = vmatpush2.msra.mxu0 0.0
        %954 = vmatprep.subr.mxu0 0.0
        %955 = vmatpush2.msra.mxu0 0.0
        %956 = vmatprep.subr.mxu0 0.0
        %957 = vmatpush2.msra.mxu0 0.0
        %958 = vmatprep.mubr.f32.mxu0 0.0
        %959 = vmatmul.mubr.f32.gmra.mxu0 %v875
        %v960 = vpop.f32.mrf.mxu0
        %v961 = vadd.f32 0.0, %v960
        %v962 = vpop.f32.mrf.mxu0
        %963 = vmatprep.mubr.f32.mxu0 0.0
        %964 = vmatmul.mubr.f32.gmra.mxu0 %v876
        %v965 = vpop.f32.mrf.mxu0
        %v966 = vadd.f32 0.0, %v965
        %v967 = vpop.f32.mrf.mxu0
        %968 = vdwg.mxu0
        %969 = vmatprep.subr.mxu0 0.0
        %970 = vmatpush1.msra.mxu0 %v862
        %971 = vmatprep.subr.mxu0 0.0
        %972 = vmatpush1.msra.mxu0 %v861
        %973 = vmatprep.subr.mxu0 0.0
        %974 = vmatpush1.msra.mxu0 %v860
        %975 = vmatprep.subr.mxu0 0.0
        %976 = vmatpush1.msra.mxu0 %v859
        %977 = vmatprep.subr.mxu0 0.0
        %978 = vmatpush1.msra.mxu0 %v858
        %979 = vmatprep.subr.mxu0 0.0
        %980 = vmatpush1.msra.mxu0 %v857
        %981 = vmatprep.subr.mxu0 0.0
        %982 = vmatpush1.msra.mxu0 %v856
        %983 = vmatprep.subr.mxu0 0.0
        %984 = vmatpush1.msra.mxu0 %v855
        %985 = vmatprep.subr.mxu0 0.0
        %986 = vmatpush1.msra.mxu0 %v854
        %987 = vmatprep.subr.mxu0 0.0
        %988 = vmatpush1.msra.mxu0 %v853
        %989 = vmatprep.subr.mxu0 0.0
        %990 = vmatpush1.msra.mxu0 %v852
        %991 = vmatprep.subr.mxu0 0.0
        %992 = vmatpush1.msra.mxu0 %v851
        %993 = vmatprep.subr.mxu0 0.0
        %994 = vmatpush1.msra.mxu0 %v850
        %995 = vmatprep.subr.mxu0 0.0
        %996 = vmatpush1.msra.mxu0 %v849
        %997 = vmatprep.subr.mxu0 0.0
        %998 = vmatpush1.msra.mxu0 %v848
        %999 = vmatprep.subr.mxu0 0.0
        %1000 = vmatpush1.msra.mxu0 %v847
        %1001 = vmatprep.subr.mxu0 0.0
        %1002 = vmatpush2.msra.mxu0 0.0
        %1003 = vmatprep.subr.mxu0 0.0
        %1004 = vmatpush2.msra.mxu0 0.0
        %1005 = vmatprep.subr.mxu0 0.0
        %1006 = vmatpush2.msra.mxu0 0.0
        %1007 = vmatprep.subr.mxu0 0.0
        %1008 = vmatpush2.msra.mxu0 0.0
        %1009 = vmatprep.subr.mxu0 0.0
        %1010 = vmatpush2.msra.mxu0 0.0
        %1011 = vmatprep.subr.mxu0 0.0
        %1012 = vmatpush2.msra.mxu0 0.0
        %1013 = vmatprep.subr.mxu0 0.0
        %1014 = vmatpush2.msra.mxu0 0.0
        %1015 = vmatprep.subr.mxu0 0.0
        %1016 = vmatpush2.msra.mxu0 0.0
        %1017 = vmatprep.subr.mxu0 0.0
        %1018 = vmatpush2.msra.mxu0 0.0
        %1019 = vmatprep.subr.mxu0 0.0
        %1020 = vmatpush2.msra.mxu0 0.0
        %1021 = vmatprep.subr.mxu0 0.0
        %1022 = vmatpush2.msra.mxu0 0.0
        %1023 = vmatprep.subr.mxu0 0.0
        %1024 = vmatpush2.msra.mxu0 0.0
        %1025 = vmatprep.subr.mxu0 0.0
        %1026 = vmatpush2.msra.mxu0 0.0
        %1027 = vmatprep.subr.mxu0 0.0
        %1028 = vmatpush2.msra.mxu0 0.0
        %1029 = vmatprep.subr.mxu0 0.0
        %1030 = vmatpush2.msra.mxu0 0.0
        %1031 = vmatprep.subr.mxu0 0.0
        %1032 = vmatpush2.msra.mxu0 0.0
        %1033 = vmatprep.mubr.f32.mxu0 0.0
        %1034 = vmatmul.mubr.f32.gmra.mxu0 %v844
        %v1035 = vpop.f32.mrf.mxu0
        %v1036 = vadd.f32 %v961, %v1035
        %v1037 = vpop.f32.mrf.mxu0
        %1038 = vmatprep.mubr.f32.mxu0 0.0
        %1039 = vmatmul.mubr.f32.gmra.mxu0 %v845
        %v1040 = vpop.f32.mrf.mxu0
        %v1041 = vadd.f32 %v966, %v1040
        %v1042 = vpop.f32.mrf.mxu0
        %1043 = vdwg.mxu0
        %v1044 = vld [vmem:[%s568] ss:$2 sm:$0xf]
        %s1045 = scalar_lea.vmem [#allocation2], 12
        %v1046 = vld [vmem:[%s1045] ss:$2 sm:$0xf]
        %s1047 = scalar_lea.vmem [#allocation2], 22
        %v1048 = vld [vmem:[%s1047] ss:$2 sm:$0xf]
        %s1049 = scalar_lea.vmem [#allocation2], 32
        %v1050 = vld [vmem:[%s1049] ss:$2 sm:$0xf]
        %v1052 = vrot.slane %v1046, 4
        %v1055 = vrot.slane %v1050, 4
        %v1057 = vsel %vm843, %v1044, %v1052
        %v1058 = vsel %vm843, %v1048, %v1055
        %s1059 = scalar_lea.vmem [#allocation6], 768
        %v1060 = vld [vmem:[%s1059] sm:$0xff]
        %v1061 = vld [vmem:[%s1059 + $0x8] sm:$0xff]
        %v1062 = vld [vmem:[%s1059 + $0x10] sm:$0xff]
        %v1063 = vld [vmem:[%s1059 + $0x18] sm:$0xff]
        %v1064 = vld [vmem:[%s1059 + $0x20] sm:$0xff]
        %v1065 = vld [vmem:[%s1059 + $0x28] sm:$0xff]
        %v1066 = vld [vmem:[%s1059 + $0x30] sm:$0xff]
        %v1067 = vld [vmem:[%s1059 + $0x38] sm:$0xff]
        %v1068 = vld [vmem:[%s1059 + $0x40] sm:$0xff]
        %v1069 = vld [vmem:[%s1059 + $0x48] sm:$0xff]
        %v1070 = vld [vmem:[%s1059 + $0x50] sm:$0xff]
        %v1071 = vld [vmem:[%s1059 + $0x58] sm:$0xff]
        %v1072 = vld [vmem:[%s1059 + $0x60] sm:$0xff]
        %v1073 = vld [vmem:[%s1059 + $0x68] sm:$0xff]
        %v1074 = vld [vmem:[%s1059 + $0x70] sm:$0xff]
        %v1075 = vld [vmem:[%s1059 + $0x78] sm:$0xff]
        %1076 = vmatprep.subr.mxu0 0.0
        %1077 = vmatpush1.msra.mxu0 %v1075
        %1078 = vmatprep.subr.mxu0 0.0
        %1079 = vmatpush1.msra.mxu0 %v1074
        %1080 = vmatprep.subr.mxu0 0.0
        %1081 = vmatpush1.msra.mxu0 %v1073
        %1082 = vmatprep.subr.mxu0 0.0
        %1083 = vmatpush1.msra.mxu0 %v1072
        %1084 = vmatprep.subr.mxu0 0.0
        %1085 = vmatpush1.msra.mxu0 %v1071
        %1086 = vmatprep.subr.mxu0 0.0
        %1087 = vmatpush1.msra.mxu0 %v1070
        %1088 = vmatprep.subr.mxu0 0.0
        %1089 = vmatpush1.msra.mxu0 %v1069
        %1090 = vmatprep.subr.mxu0 0.0
        %1091 = vmatpush1.msra.mxu0 %v1068
        %1092 = vmatprep.subr.mxu0 0.0
        %1093 = vmatpush1.msra.mxu0 %v1067
        %1094 = vmatprep.subr.mxu0 0.0
        %1095 = vmatpush1.msra.mxu0 %v1066
        %1096 = vmatprep.subr.mxu0 0.0
        %1097 = vmatpush1.msra.mxu0 %v1065
        %1098 = vmatprep.subr.mxu0 0.0
        %1099 = vmatpush1.msra.mxu0 %v1064
        %1100 = vmatprep.subr.mxu0 0.0
        %1101 = vmatpush1.msra.mxu0 %v1063
        %1102 = vmatprep.subr.mxu0 0.0
        %1103 = vmatpush1.msra.mxu0 %v1062
        %1104 = vmatprep.subr.mxu0 0.0
        %1105 = vmatpush1.msra.mxu0 %v1061
        %1106 = vmatprep.subr.mxu0 0.0
        %1107 = vmatpush1.msra.mxu0 %v1060
        %1108 = vmatprep.subr.mxu0 0.0
        %1109 = vmatpush2.msra.mxu0 0.0
        %1110 = vmatprep.subr.mxu0 0.0
        %1111 = vmatpush2.msra.mxu0 0.0
        %1112 = vmatprep.subr.mxu0 0.0
        %1113 = vmatpush2.msra.mxu0 0.0
        %1114 = vmatprep.subr.mxu0 0.0
        %1115 = vmatpush2.msra.mxu0 0.0
        %1116 = vmatprep.subr.mxu0 0.0
        %1117 = vmatpush2.msra.mxu0 0.0
        %1118 = vmatprep.subr.mxu0 0.0
        %1119 = vmatpush2.msra.mxu0 0.0
        %1120 = vmatprep.subr.mxu0 0.0
        %1121 = vmatpush2.msra.mxu0 0.0
        %1122 = vmatprep.subr.mxu0 0.0
        %1123 = vmatpush2.msra.mxu0 0.0
        %1124 = vmatprep.subr.mxu0 0.0
        %1125 = vmatpush2.msra.mxu0 0.0
        %1126 = vmatprep.subr.mxu0 0.0
        %1127 = vmatpush2.msra.mxu0 0.0
        %1128 = vmatprep.subr.mxu0 0.0
        %1129 = vmatpush2.msra.mxu0 0.0
        %1130 = vmatprep.subr.mxu0 0.0
        %1131 = vmatpush2.msra.mxu0 0.0
        %1132 = vmatprep.subr.mxu0 0.0
        %1133 = vmatpush2.msra.mxu0 0.0
        %1134 = vmatprep.subr.mxu0 0.0
        %1135 = vmatpush2.msra.mxu0 0.0
        %1136 = vmatprep.subr.mxu0 0.0
        %1137 = vmatpush2.msra.mxu0 0.0
        %1138 = vmatprep.subr.mxu0 0.0
        %1139 = vmatpush2.msra.mxu0 0.0
        %1140 = vmatprep.mubr.f32.mxu0 0.0
        %1141 = vmatmul.mubr.f32.gmra.mxu0 %v1057
        %v1142 = vpop.f32.mrf.mxu0
        %v1143 = vadd.f32 0.0, %v1142
        %v1144 = vpop.f32.mrf.mxu0
        %1145 = vmatprep.mubr.f32.mxu0 0.0
        %1146 = vmatmul.mubr.f32.gmra.mxu0 %v1058
        %v1147 = vpop.f32.mrf.mxu0
        %v1148 = vadd.f32 0.0, %v1147
        %v1149 = vpop.f32.mrf.mxu0
        %1150 = vdwg.mxu0
        %v1151 = vadd.f32 %v1036, %v1143
        %v1152 = vadd.f32 %v1041, %v1148
        %v1153 = vld [vmem:[%s682] ss:$2 sm:$0xf]
        %s1154 = scalar_lea.vmem [#allocation2], 13
        %v1155 = vld [vmem:[%s1154] ss:$2 sm:$0xf]
        %s1156 = scalar_lea.vmem [#allocation2], 23
        %v1157 = vld [vmem:[%s1156] ss:$2 sm:$0xf]
        %s1158 = scalar_lea.vmem [#allocation2], 33
        %v1159 = vld [vmem:[%s1158] ss:$2 sm:$0xf]
        %v1161 = vrot.slane %v1155, 4
        %v1164 = vrot.slane %v1159, 4
        %v1166 = vsel %vm843, %v1153, %v1161
        %v1167 = vsel %vm843, %v1157, %v1164
        %s1168 = scalar_lea.vmem [#allocation6], 896
        %v1169 = vld [vmem:[%s1168] sm:$0xff]
        %v1170 = vld [vmem:[%s1168 + $0x8] sm:$0xff]
        %v1171 = vld [vmem:[%s1168 + $0x10] sm:$0xff]
        %v1172 = vld [vmem:[%s1168 + $0x18] sm:$0xff]
        %v1173 = vld [vmem:[%s1168 + $0x20] sm:$0xff]
        %v1174 = vld [vmem:[%s1168 + $0x28] sm:$0xff]
        %v1175 = vld [vmem:[%s1168 + $0x30] sm:$0xff]
        %v1176 = vld [vmem:[%s1168 + $0x38] sm:$0xff]
        %v1177 = vld [vmem:[%s1168 + $0x40] sm:$0xff]
        %v1178 = vld [vmem:[%s1168 + $0x48] sm:$0xff]
        %v1179 = vld [vmem:[%s1168 + $0x50] sm:$0xff]
        %v1180 = vld [vmem:[%s1168 + $0x58] sm:$0xff]
        %v1181 = vld [vmem:[%s1168 + $0x60] sm:$0xff]
        %v1182 = vld [vmem:[%s1168 + $0x68] sm:$0xff]
        %v1183 = vld [vmem:[%s1168 + $0x70] sm:$0xff]
        %v1184 = vld [vmem:[%s1168 + $0x78] sm:$0xff]
        %1185 = vmatprep.subr.mxu0 0.0
        %1186 = vmatpush1.msra.mxu0 %v1184
        %1187 = vmatprep.subr.mxu0 0.0
        %1188 = vmatpush1.msra.mxu0 %v1183
        %1189 = vmatprep.subr.mxu0 0.0
        %1190 = vmatpush1.msra.mxu0 %v1182
        %1191 = vmatprep.subr.mxu0 0.0
        %1192 = vmatpush1.msra.mxu0 %v1181
        %1193 = vmatprep.subr.mxu0 0.0
        %1194 = vmatpush1.msra.mxu0 %v1180
        %1195 = vmatprep.subr.mxu0 0.0
        %1196 = vmatpush1.msra.mxu0 %v1179
        %1197 = vmatprep.subr.mxu0 0.0
        %1198 = vmatpush1.msra.mxu0 %v1178
        %1199 = vmatprep.subr.mxu0 0.0
        %1200 = vmatpush1.msra.mxu0 %v1177
        %1201 = vmatprep.subr.mxu0 0.0
        %1202 = vmatpush1.msra.mxu0 %v1176
        %1203 = vmatprep.subr.mxu0 0.0
        %1204 = vmatpush1.msra.mxu0 %v1175
        %1205 = vmatprep.subr.mxu0 0.0
        %1206 = vmatpush1.msra.mxu0 %v1174
        %1207 = vmatprep.subr.mxu0 0.0
        %1208 = vmatpush1.msra.mxu0 %v1173
        %1209 = vmatprep.subr.mxu0 0.0
        %1210 = vmatpush1.msra.mxu0 %v1172
        %1211 = vmatprep.subr.mxu0 0.0
        %1212 = vmatpush1.msra.mxu0 %v1171
        %1213 = vmatprep.subr.mxu0 0.0
        %1214 = vmatpush1.msra.mxu0 %v1170
        %1215 = vmatprep.subr.mxu0 0.0
        %1216 = vmatpush1.msra.mxu0 %v1169
        %1217 = vmatprep.subr.mxu0 0.0
        %1218 = vmatpush2.msra.mxu0 0.0
        %1219 = vmatprep.subr.mxu0 0.0
        %1220 = vmatpush2.msra.mxu0 0.0
        %1221 = vmatprep.subr.mxu0 0.0
        %1222 = vmatpush2.msra.mxu0 0.0
        %1223 = vmatprep.subr.mxu0 0.0
        %1224 = vmatpush2.msra.mxu0 0.0
        %1225 = vmatprep.subr.mxu0 0.0
        %1226 = vmatpush2.msra.mxu0 0.0
        %1227 = vmatprep.subr.mxu0 0.0
        %1228 = vmatpush2.msra.mxu0 0.0
        %1229 = vmatprep.subr.mxu0 0.0
        %1230 = vmatpush2.msra.mxu0 0.0
        %1231 = vmatprep.subr.mxu0 0.0
        %1232 = vmatpush2.msra.mxu0 0.0
        %1233 = vmatprep.subr.mxu0 0.0
        %1234 = vmatpush2.msra.mxu0 0.0
        %1235 = vmatprep.subr.mxu0 0.0
        %1236 = vmatpush2.msra.mxu0 0.0
        %1237 = vmatprep.subr.mxu0 0.0
        %1238 = vmatpush2.msra.mxu0 0.0
        %1239 = vmatprep.subr.mxu0 0.0
        %1240 = vmatpush2.msra.mxu0 0.0
        %1241 = vmatprep.subr.mxu0 0.0
        %1242 = vmatpush2.msra.mxu0 0.0
        %1243 = vmatprep.subr.mxu0 0.0
        %1244 = vmatpush2.msra.mxu0 0.0
        %1245 = vmatprep.subr.mxu0 0.0
        %1246 = vmatpush2.msra.mxu0 0.0
        %1247 = vmatprep.subr.mxu0 0.0
        %1248 = vmatpush2.msra.mxu0 0.0
        %1249 = vmatprep.mubr.f32.mxu0 0.0
        %1250 = vmatmul.mubr.f32.gmra.mxu0 %v1166
        %v1251 = vpop.f32.mrf.mxu0
        %v1252 = vadd.f32 0.0, %v1251
        %v1253 = vpop.f32.mrf.mxu0
        %1254 = vmatprep.mubr.f32.mxu0 0.0
        %1255 = vmatmul.mubr.f32.gmra.mxu0 %v1167
        %v1256 = vpop.f32.mrf.mxu0
        %v1257 = vadd.f32 0.0, %v1256
        %v1258 = vpop.f32.mrf.mxu0
        %1259 = vdwg.mxu0
        %v1260 = vadd.f32 %v1151, %v1252
        %v1261 = vadd.f32 %v1152, %v1257
        %s1262 = scalar_lea.vmem %s2, 1
        %v1263 = vld [vmem:[%s1262] sm:$0x1]
        %v1265 = vlaneseq
        %v1266 = vshrl.u32 %v1265, 7
        %v1267 = vsub.s32 0, %v1266
        %v1268 = vrot.slane %v1263, %v1267
        %v1270 = vadd.f32 %v1260, %v1268
        %v1271 = vadd.f32 %v1261, %v1268
        %vm1272 = vcmp.ge.f32.partialorder %v1270, 0.0
        %vm1273 = vcmp.ge.f32.partialorder %v1271, 0.0
        %v1274 = vmul.f32 %v1270, 0.01
        %v1275 = vmul.f32 %v1271, 0.01
        %v1276 = vsel %vm1272, %v1270, %v1274
        %v1277 = vsel %vm1273, %v1271, %v1275
        %1278 = vst [vmem:[#allocation2] sm:$0x1] 0.0
        %1279 = vst [vmem:[#allocation2 + $0x1] sm:$0xf] %v1276
        %1280 = vst [vmem:[#allocation2 + $0x5] sm:$0x1] 0.0
        %1281 = vst [vmem:[#allocation2 + $0x6] sm:$0x1] 0.0
        %1282 = vst [vmem:[#allocation2 + $0x3] sm:$0xf0] %v1276
        %1283 = vst [vmem:[#allocation2 + $0xb] sm:$0x1] 0.0
        %1284 = vst [vmem:[#allocation2 + $0xc] sm:$0x1] 0.0
        %1285 = vst [vmem:[#allocation2 + $0xd] sm:$0xf] %v1277
        %1286 = vst [vmem:[#allocation2 + $0x11] sm:$0x1] 0.0
        %1287 = vst [vmem:[#allocation2 + $0x12] sm:$0x1] 0.0
        %1288 = vst [vmem:[#allocation2 + $0xf] sm:$0xf0] %v1277
        %1289 = vst [vmem:[#allocation2 + $0x17] sm:$0x1] 0.0
        %v1290 = vld [vmem:[#allocation2] ss:$2 sm:$0x3]
        %s1291 = scalar_lea.vmem [#allocation2], 6
        %v1292 = vld [vmem:[%s1291] ss:$2 sm:$0x3]
        %v1293 = vld [vmem:[%s1045] ss:$2 sm:$0x3]
        %v1294 = vld [vmem:[%s351] ss:$2 sm:$0x3]
        %v1296 = vrot.slane %v1292, 6
        %v1299 = vrot.slane %v1293, 4
        %v1302 = vrot.slane %v1294, 2
        %vm1304 = vcmask 1041408
        %v1305 = vsel %vm1304, %v1290, %v1296
        %v1306 = vsel %vm843, %v1305, %v1299
        %vm1307 = vcmask 1045504
        %v1308 = vsel %vm1307, %v1306, %v1302
        %s1309 = scalar_lea.vmem [#allocation6], 1024
        %v1310 = vld [vmem:[%s1309] sm:$0xff]
        %v1311 = vld [vmem:[%s1309 + $0x8] sm:$0xff]
        %v1312 = vld [vmem:[%s1309 + $0x10] sm:$0xff]
        %v1313 = vld [vmem:[%s1309 + $0x18] sm:$0xff]
        %v1314 = vld [vmem:[%s1309 + $0x20] sm:$0xff]
        %v1315 = vld [vmem:[%s1309 + $0x28] sm:$0xff]
        %v1316 = vld [vmem:[%s1309 + $0x30] sm:$0xff]
        %v1317 = vld [vmem:[%s1309 + $0x38] sm:$0xff]
        %v1318 = vld [vmem:[%s1309 + $0x40] sm:$0xff]
        %v1319 = vld [vmem:[%s1309 + $0x48] sm:$0xff]
        %v1320 = vld [vmem:[%s1309 + $0x50] sm:$0xff]
        %v1321 = vld [vmem:[%s1309 + $0x58] sm:$0xff]
        %v1322 = vld [vmem:[%s1309 + $0x60] sm:$0xff]
        %v1323 = vld [vmem:[%s1309 + $0x68] sm:$0xff]
        %v1324 = vld [vmem:[%s1309 + $0x70] sm:$0xff]
        %v1325 = vld [vmem:[%s1309 + $0x78] sm:$0xff]
        %v1326 = vld [vmem:[%s373] ss:$2 sm:$0x3]
        %s1327 = scalar_lea.vmem [#allocation2], 7
        %v1328 = vld [vmem:[%s1327] ss:$2 sm:$0x3]
        %v1329 = vld [vmem:[%s1154] ss:$2 sm:$0x3]
        %v1330 = vld [vmem:[%s375] ss:$2 sm:$0x3]
        %v1332 = vrot.slane %v1328, 6
        %v1335 = vrot.slane %v1329, 4
        %v1338 = vrot.slane %v1330, 2
        %v1340 = vsel %vm1304, %v1326, %v1332
        %v1341 = vsel %vm843, %v1340, %v1335
        %v1342 = vsel %vm1307, %v1341, %v1338
        %s1343 = scalar_lea.vmem [#allocation6], 1152
        %v1344 = vld [vmem:[%s1343] sm:$0xff]
        %v1345 = vld [vmem:[%s1343 + $0x8] sm:$0xff]
        %v1346 = vld [vmem:[%s1343 + $0x10] sm:$0xff]
        %v1347 = vld [vmem:[%s1343 + $0x18] sm:$0xff]
        %v1348 = vld [vmem:[%s1343 + $0x20] sm:$0xff]
        %v1349 = vld [vmem:[%s1343 + $0x28] sm:$0xff]
        %v1350 = vld [vmem:[%s1343 + $0x30] sm:$0xff]
        %v1351 = vld [vmem:[%s1343 + $0x38] sm:$0xff]
        %v1352 = vld [vmem:[%s1343 + $0x40] sm:$0xff]
        %v1353 = vld [vmem:[%s1343 + $0x48] sm:$0xff]
        %v1354 = vld [vmem:[%s1343 + $0x50] sm:$0xff]
        %v1355 = vld [vmem:[%s1343 + $0x58] sm:$0xff]
        %v1356 = vld [vmem:[%s1343 + $0x60] sm:$0xff]
        %v1357 = vld [vmem:[%s1343 + $0x68] sm:$0xff]
        %v1358 = vld [vmem:[%s1343 + $0x70] sm:$0xff]
        %v1359 = vld [vmem:[%s1343 + $0x78] sm:$0xff]
        %1360 = vmatprep.subr.mxu0 0.0
        %1361 = vmatpush1.msra.mxu0 %v1359
        %1362 = vmatprep.subr.mxu0 0.0
        %1363 = vmatpush1.msra.mxu0 %v1358
        %1364 = vmatprep.subr.mxu0 0.0
        %1365 = vmatpush1.msra.mxu0 %v1357
        %1366 = vmatprep.subr.mxu0 0.0
        %1367 = vmatpush1.msra.mxu0 %v1356
        %1368 = vmatprep.subr.mxu0 0.0
        %1369 = vmatpush1.msra.mxu0 %v1355
        %1370 = vmatprep.subr.mxu0 0.0
        %1371 = vmatpush1.msra.mxu0 %v1354
        %1372 = vmatprep.subr.mxu0 0.0
        %1373 = vmatpush1.msra.mxu0 %v1353
        %1374 = vmatprep.subr.mxu0 0.0
        %1375 = vmatpush1.msra.mxu0 %v1352
        %1376 = vmatprep.subr.mxu0 0.0
        %1377 = vmatpush1.msra.mxu0 %v1351
        %1378 = vmatprep.subr.mxu0 0.0
        %1379 = vmatpush1.msra.mxu0 %v1350
        %1380 = vmatprep.subr.mxu0 0.0
        %1381 = vmatpush1.msra.mxu0 %v1349
        %1382 = vmatprep.subr.mxu0 0.0
        %1383 = vmatpush1.msra.mxu0 %v1348
        %1384 = vmatprep.subr.mxu0 0.0
        %1385 = vmatpush1.msra.mxu0 %v1347
        %1386 = vmatprep.subr.mxu0 0.0
        %1387 = vmatpush1.msra.mxu0 %v1346
        %1388 = vmatprep.subr.mxu0 0.0
        %1389 = vmatpush1.msra.mxu0 %v1345
        %1390 = vmatprep.subr.mxu0 0.0
        %1391 = vmatpush1.msra.mxu0 %v1344
        %1392 = vmatprep.subr.mxu0 0.0
        %1393 = vmatpush2.msra.mxu0 0.0
        %1394 = vmatprep.subr.mxu0 0.0
        %1395 = vmatpush2.msra.mxu0 0.0
        %1396 = vmatprep.subr.mxu0 0.0
        %1397 = vmatpush2.msra.mxu0 0.0
        %1398 = vmatprep.subr.mxu0 0.0
        %1399 = vmatpush2.msra.mxu0 0.0
        %1400 = vmatprep.subr.mxu0 0.0
        %1401 = vmatpush2.msra.mxu0 0.0
        %1402 = vmatprep.subr.mxu0 0.0
        %1403 = vmatpush2.msra.mxu0 0.0
        %1404 = vmatprep.subr.mxu0 0.0
        %1405 = vmatpush2.msra.mxu0 0.0
        %1406 = vmatprep.subr.mxu0 0.0
        %1407 = vmatpush2.msra.mxu0 0.0
        %1408 = vmatprep.subr.mxu0 0.0
        %1409 = vmatpush2.msra.mxu0 0.0
        %1410 = vmatprep.subr.mxu0 0.0
        %1411 = vmatpush2.msra.mxu0 0.0
        %1412 = vmatprep.subr.mxu0 0.0
        %1413 = vmatpush2.msra.mxu0 0.0
        %1414 = vmatprep.subr.mxu0 0.0
        %1415 = vmatpush2.msra.mxu0 0.0
        %1416 = vmatprep.subr.mxu0 0.0
        %1417 = vmatpush2.msra.mxu0 0.0
        %1418 = vmatprep.subr.mxu0 0.0
        %1419 = vmatpush2.msra.mxu0 0.0
        %1420 = vmatprep.subr.mxu0 0.0
        %1421 = vmatpush2.msra.mxu0 0.0
        %1422 = vmatprep.subr.mxu0 0.0
        %1423 = vmatpush2.msra.mxu0 0.0
        %1424 = vmatprep.mubr.f32.mxu0 0.0
        %1425 = vmatmul.mubr.f32.gmra.mxu0 %v1342
        %v1426 = vpop.f32.mrf.mxu0
        %v1427 = vadd.f32 0.0, %v1426
        %v1428 = vpop.f32.mrf.mxu0
        %1429 = vdwg.mxu0
        %1430 = vmatprep.subr.mxu0 0.0
        %1431 = vmatpush1.msra.mxu0 %v1325
        %1432 = vmatprep.subr.mxu0 0.0
        %1433 = vmatpush1.msra.mxu0 %v1324
        %1434 = vmatprep.subr.mxu0 0.0
        %1435 = vmatpush1.msra.mxu0 %v1323
        %1436 = vmatprep.subr.mxu0 0.0
        %1437 = vmatpush1.msra.mxu0 %v1322
        %1438 = vmatprep.subr.mxu0 0.0
        %1439 = vmatpush1.msra.mxu0 %v1321
        %1440 = vmatprep.subr.mxu0 0.0
        %1441 = vmatpush1.msra.mxu0 %v1320
        %1442 = vmatprep.subr.mxu0 0.0
        %1443 = vmatpush1.msra.mxu0 %v1319
        %1444 = vmatprep.subr.mxu0 0.0
        %1445 = vmatpush1.msra.mxu0 %v1318
        %1446 = vmatprep.subr.mxu0 0.0
        %1447 = vmatpush1.msra.mxu0 %v1317
        %1448 = vmatprep.subr.mxu0 0.0
        %1449 = vmatpush1.msra.mxu0 %v1316
        %1450 = vmatprep.subr.mxu0 0.0
        %1451 = vmatpush1.msra.mxu0 %v1315
        %1452 = vmatprep.subr.mxu0 0.0
        %1453 = vmatpush1.msra.mxu0 %v1314
        %1454 = vmatprep.subr.mxu0 0.0
        %1455 = vmatpush1.msra.mxu0 %v1313
        %1456 = vmatprep.subr.mxu0 0.0
        %1457 = vmatpush1.msra.mxu0 %v1312
        %1458 = vmatprep.subr.mxu0 0.0
        %1459 = vmatpush1.msra.mxu0 %v1311
        %1460 = vmatprep.subr.mxu0 0.0
        %1461 = vmatpush1.msra.mxu0 %v1310
        %1462 = vmatprep.subr.mxu0 0.0
        %1463 = vmatpush2.msra.mxu0 0.0
        %1464 = vmatprep.subr.mxu0 0.0
        %1465 = vmatpush2.msra.mxu0 0.0
        %1466 = vmatprep.subr.mxu0 0.0
        %1467 = vmatpush2.msra.mxu0 0.0
        %1468 = vmatprep.subr.mxu0 0.0
        %1469 = vmatpush2.msra.mxu0 0.0
        %1470 = vmatprep.subr.mxu0 0.0
        %1471 = vmatpush2.msra.mxu0 0.0
        %1472 = vmatprep.subr.mxu0 0.0
        %1473 = vmatpush2.msra.mxu0 0.0
        %1474 = vmatprep.subr.mxu0 0.0
        %1475 = vmatpush2.msra.mxu0 0.0
        %1476 = vmatprep.subr.mxu0 0.0
        %1477 = vmatpush2.msra.mxu0 0.0
        %1478 = vmatprep.subr.mxu0 0.0
        %1479 = vmatpush2.msra.mxu0 0.0
        %1480 = vmatprep.subr.mxu0 0.0
        %1481 = vmatpush2.msra.mxu0 0.0
        %1482 = vmatprep.subr.mxu0 0.0
        %1483 = vmatpush2.msra.mxu0 0.0
        %1484 = vmatprep.subr.mxu0 0.0
        %1485 = vmatpush2.msra.mxu0 0.0
        %1486 = vmatprep.subr.mxu0 0.0
        %1487 = vmatpush2.msra.mxu0 0.0
        %1488 = vmatprep.subr.mxu0 0.0
        %1489 = vmatpush2.msra.mxu0 0.0
        %1490 = vmatprep.subr.mxu0 0.0
        %1491 = vmatpush2.msra.mxu0 0.0
        %1492 = vmatprep.subr.mxu0 0.0
        %1493 = vmatpush2.msra.mxu0 0.0
        %1494 = vmatprep.mubr.f32.mxu0 0.0
        %1495 = vmatmul.mubr.f32.gmra.mxu0 %v1308
        %v1496 = vpop.f32.mrf.mxu0
        %v1497 = vadd.f32 %v1427, %v1496
        %v1498 = vpop.f32.mrf.mxu0
        %1499 = vdwg.mxu0
        %v1500 = vld [vmem:[%s568] ss:$2 sm:$0x3]
        %s1501 = scalar_lea.vmem [#allocation2], 8
        %v1502 = vld [vmem:[%s1501] ss:$2 sm:$0x3]
        %s1503 = scalar_lea.vmem [#allocation2], 14
        %v1504 = vld [vmem:[%s1503] ss:$2 sm:$0x3]
        %v1505 = vld [vmem:[%s570] ss:$2 sm:$0x3]
        %v1507 = vrot.slane %v1502, 6
        %v1510 = vrot.slane %v1504, 4
        %v1513 = vrot.slane %v1505, 2
        %v1515 = vsel %vm1304, %v1500, %v1507
        %v1516 = vsel %vm843, %v1515, %v1510
        %v1517 = vsel %vm1307, %v1516, %v1513
        %s1518 = scalar_lea.vmem [#allocation6], 1280
        %v1519 = vld [vmem:[%s1518] sm:$0xff]
        %v1520 = vld [vmem:[%s1518 + $0x8] sm:$0xff]
        %v1521 = vld [vmem:[%s1518 + $0x10] sm:$0xff]
        %v1522 = vld [vmem:[%s1518 + $0x18] sm:$0xff]
        %v1523 = vld [vmem:[%s1518 + $0x20] sm:$0xff]
        %v1524 = vld [vmem:[%s1518 + $0x28] sm:$0xff]
        %v1525 = vld [vmem:[%s1518 + $0x30] sm:$0xff]
        %v1526 = vld [vmem:[%s1518 + $0x38] sm:$0xff]
        %v1527 = vld [vmem:[%s1518 + $0x40] sm:$0xff]
        %v1528 = vld [vmem:[%s1518 + $0x48] sm:$0xff]
        %v1529 = vld [vmem:[%s1518 + $0x50] sm:$0xff]
        %v1530 = vld [vmem:[%s1518 + $0x58] sm:$0xff]
        %v1531 = vld [vmem:[%s1518 + $0x60] sm:$0xff]
        %v1532 = vld [vmem:[%s1518 + $0x68] sm:$0xff]
        %v1533 = vld [vmem:[%s1518 + $0x70] sm:$0xff]
        %v1534 = vld [vmem:[%s1518 + $0x78] sm:$0xff]
        %1535 = vmatprep.subr.mxu0 0.0
        %1536 = vmatpush1.msra.mxu0 %v1534
        %1537 = vmatprep.subr.mxu0 0.0
        %1538 = vmatpush1.msra.mxu0 %v1533
        %1539 = vmatprep.subr.mxu0 0.0
        %1540 = vmatpush1.msra.mxu0 %v1532
        %1541 = vmatprep.subr.mxu0 0.0
        %1542 = vmatpush1.msra.mxu0 %v1531
        %1543 = vmatprep.subr.mxu0 0.0
        %1544 = vmatpush1.msra.mxu0 %v1530
        %1545 = vmatprep.subr.mxu0 0.0
        %1546 = vmatpush1.msra.mxu0 %v1529
        %1547 = vmatprep.subr.mxu0 0.0
        %1548 = vmatpush1.msra.mxu0 %v1528
        %1549 = vmatprep.subr.mxu0 0.0
        %1550 = vmatpush1.msra.mxu0 %v1527
        %1551 = vmatprep.subr.mxu0 0.0
        %1552 = vmatpush1.msra.mxu0 %v1526
        %1553 = vmatprep.subr.mxu0 0.0
        %1554 = vmatpush1.msra.mxu0 %v1525
        %1555 = vmatprep.subr.mxu0 0.0
        %1556 = vmatpush1.msra.mxu0 %v1524
        %1557 = vmatprep.subr.mxu0 0.0
        %1558 = vmatpush1.msra.mxu0 %v1523
        %1559 = vmatprep.subr.mxu0 0.0
        %1560 = vmatpush1.msra.mxu0 %v1522
        %1561 = vmatprep.subr.mxu0 0.0
        %1562 = vmatpush1.msra.mxu0 %v1521
        %1563 = vmatprep.subr.mxu0 0.0
        %1564 = vmatpush1.msra.mxu0 %v1520
        %1565 = vmatprep.subr.mxu0 0.0
        %1566 = vmatpush1.msra.mxu0 %v1519
        %1567 = vmatprep.subr.mxu0 0.0
        %1568 = vmatpush2.msra.mxu0 0.0
        %1569 = vmatprep.subr.mxu0 0.0
        %1570 = vmatpush2.msra.mxu0 0.0
        %1571 = vmatprep.subr.mxu0 0.0
        %1572 = vmatpush2.msra.mxu0 0.0
        %1573 = vmatprep.subr.mxu0 0.0
        %1574 = vmatpush2.msra.mxu0 0.0
        %1575 = vmatprep.subr.mxu0 0.0
        %1576 = vmatpush2.msra.mxu0 0.0
        %1577 = vmatprep.subr.mxu0 0.0
        %1578 = vmatpush2.msra.mxu0 0.0
        %1579 = vmatprep.subr.mxu0 0.0
        %1580 = vmatpush2.msra.mxu0 0.0
        %1581 = vmatprep.subr.mxu0 0.0
        %1582 = vmatpush2.msra.mxu0 0.0
        %1583 = vmatprep.subr.mxu0 0.0
        %1584 = vmatpush2.msra.mxu0 0.0
        %1585 = vmatprep.subr.mxu0 0.0
        %1586 = vmatpush2.msra.mxu0 0.0
        %1587 = vmatprep.subr.mxu0 0.0
        %1588 = vmatpush2.msra.mxu0 0.0
        %1589 = vmatprep.subr.mxu0 0.0
        %1590 = vmatpush2.msra.mxu0 0.0
        %1591 = vmatprep.subr.mxu0 0.0
        %1592 = vmatpush2.msra.mxu0 0.0
        %1593 = vmatprep.subr.mxu0 0.0
        %1594 = vmatpush2.msra.mxu0 0.0
        %1595 = vmatprep.subr.mxu0 0.0
        %1596 = vmatpush2.msra.mxu0 0.0
        %1597 = vmatprep.subr.mxu0 0.0
        %1598 = vmatpush2.msra.mxu0 0.0
        %1599 = vmatprep.mubr.f32.mxu0 0.0
        %1600 = vmatmul.mubr.f32.gmra.mxu0 %v1517
        %v1601 = vpop.f32.mrf.mxu0
        %v1602 = vadd.f32 0.0, %v1601
        %v1603 = vpop.f32.mrf.mxu0
        %1604 = vdwg.mxu0
        %v1605 = vadd.f32 %v1497, %v1602
        %v1606 = vld [vmem:[%s682] ss:$2 sm:$0x3]
        %s1607 = scalar_lea.vmem [#allocation2], 9
        %v1608 = vld [vmem:[%s1607] ss:$2 sm:$0x3]
        %s1609 = scalar_lea.vmem [#allocation2], 15
        %v1610 = vld [vmem:[%s1609] ss:$2 sm:$0x3]
        %v1611 = vld [vmem:[%s684] ss:$2 sm:$0x3]
        %v1613 = vrot.slane %v1608, 6
        %v1616 = vrot.slane %v1610, 4
        %v1619 = vrot.slane %v1611, 2
        %v1621 = vsel %vm1304, %v1606, %v1613
        %v1622 = vsel %vm843, %v1621, %v1616
        %v1623 = vsel %vm1307, %v1622, %v1619
        %s1624 = scalar_lea.vmem [#allocation6], 1408
        %v1625 = vld [vmem:[%s1624] sm:$0xff]
        %v1626 = vld [vmem:[%s1624 + $0x8] sm:$0xff]
        %v1627 = vld [vmem:[%s1624 + $0x10] sm:$0xff]
        %v1628 = vld [vmem:[%s1624 + $0x18] sm:$0xff]
        %v1629 = vld [vmem:[%s1624 + $0x20] sm:$0xff]
        %v1630 = vld [vmem:[%s1624 + $0x28] sm:$0xff]
        %v1631 = vld [vmem:[%s1624 + $0x30] sm:$0xff]
        %v1632 = vld [vmem:[%s1624 + $0x38] sm:$0xff]
        %v1633 = vld [vmem:[%s1624 + $0x40] sm:$0xff]
        %v1634 = vld [vmem:[%s1624 + $0x48] sm:$0xff]
        %v1635 = vld [vmem:[%s1624 + $0x50] sm:$0xff]
        %v1636 = vld [vmem:[%s1624 + $0x58] sm:$0xff]
        %v1637 = vld [vmem:[%s1624 + $0x60] sm:$0xff]
        %v1638 = vld [vmem:[%s1624 + $0x68] sm:$0xff]
        %v1639 = vld [vmem:[%s1624 + $0x70] sm:$0xff]
        %v1640 = vld [vmem:[%s1624 + $0x78] sm:$0xff]
        %1641 = vmatprep.subr.mxu0 0.0
        %1642 = vmatpush1.msra.mxu0 %v1640
        %1643 = vmatprep.subr.mxu0 0.0
        %1644 = vmatpush1.msra.mxu0 %v1639
        %1645 = vmatprep.subr.mxu0 0.0
        %1646 = vmatpush1.msra.mxu0 %v1638
        %1647 = vmatprep.subr.mxu0 0.0
        %1648 = vmatpush1.msra.mxu0 %v1637
        %1649 = vmatprep.subr.mxu0 0.0
        %1650 = vmatpush1.msra.mxu0 %v1636
        %1651 = vmatprep.subr.mxu0 0.0
        %1652 = vmatpush1.msra.mxu0 %v1635
        %1653 = vmatprep.subr.mxu0 0.0
        %1654 = vmatpush1.msra.mxu0 %v1634
        %1655 = vmatprep.subr.mxu0 0.0
        %1656 = vmatpush1.msra.mxu0 %v1633
        %1657 = vmatprep.subr.mxu0 0.0
        %1658 = vmatpush1.msra.mxu0 %v1632
        %1659 = vmatprep.subr.mxu0 0.0
        %1660 = vmatpush1.msra.mxu0 %v1631
        %1661 = vmatprep.subr.mxu0 0.0
        %1662 = vmatpush1.msra.mxu0 %v1630
        %1663 = vmatprep.subr.mxu0 0.0
        %1664 = vmatpush1.msra.mxu0 %v1629
        %1665 = vmatprep.subr.mxu0 0.0
        %1666 = vmatpush1.msra.mxu0 %v1628
        %1667 = vmatprep.subr.mxu0 0.0
        %1668 = vmatpush1.msra.mxu0 %v1627
        %1669 = vmatprep.subr.mxu0 0.0
        %1670 = vmatpush1.msra.mxu0 %v1626
        %1671 = vmatprep.subr.mxu0 0.0
        %1672 = vmatpush1.msra.mxu0 %v1625
        %1673 = vmatprep.subr.mxu0 0.0
        %1674 = vmatpush2.msra.mxu0 0.0
        %1675 = vmatprep.subr.mxu0 0.0
        %1676 = vmatpush2.msra.mxu0 0.0
        %1677 = vmatprep.subr.mxu0 0.0
        %1678 = vmatpush2.msra.mxu0 0.0
        %1679 = vmatprep.subr.mxu0 0.0
        %1680 = vmatpush2.msra.mxu0 0.0
        %1681 = vmatprep.subr.mxu0 0.0
        %1682 = vmatpush2.msra.mxu0 0.0
        %1683 = vmatprep.subr.mxu0 0.0
        %1684 = vmatpush2.msra.mxu0 0.0
        %1685 = vmatprep.subr.mxu0 0.0
        %1686 = vmatpush2.msra.mxu0 0.0
        %1687 = vmatprep.subr.mxu0 0.0
        %1688 = vmatpush2.msra.mxu0 0.0
        %1689 = vmatprep.subr.mxu0 0.0
        %1690 = vmatpush2.msra.mxu0 0.0
        %1691 = vmatprep.subr.mxu0 0.0
        %1692 = vmatpush2.msra.mxu0 0.0
        %1693 = vmatprep.subr.mxu0 0.0
        %1694 = vmatpush2.msra.mxu0 0.0
        %1695 = vmatprep.subr.mxu0 0.0
        %1696 = vmatpush2.msra.mxu0 0.0
        %1697 = vmatprep.subr.mxu0 0.0
        %1698 = vmatpush2.msra.mxu0 0.0
        %1699 = vmatprep.subr.mxu0 0.0
        %1700 = vmatpush2.msra.mxu0 0.0
        %1701 = vmatprep.subr.mxu0 0.0
        %1702 = vmatpush2.msra.mxu0 0.0
        %1703 = vmatprep.subr.mxu0 0.0
        %1704 = vmatpush2.msra.mxu0 0.0
        %1705 = vmatprep.mubr.f32.mxu0 0.0
        %1706 = vmatmul.mubr.f32.gmra.mxu0 %v1623
        %v1707 = vpop.f32.mrf.mxu0
        %v1708 = vadd.f32 0.0, %v1707
        %v1709 = vpop.f32.mrf.mxu0
        %1710 = vdwg.mxu0
        %v1711 = vadd.f32 %v1605, %v1708
        %s1712 = scalar_lea.vmem %s2, 2
        %v1713 = vld [vmem:[%s1712] sm:$0x1]
        %v1715 = vlaneseq
        %v1716 = vshrl.u32 %v1715, 7
        %v1717 = vsub.s32 0, %v1716
        %v1718 = vrot.slane %v1713, %v1717
        %v1720 = vadd.f32 %v1711, %v1718
        %vm1721 = vcmp.ge.f32.partialorder %v1720, 0.0
        %v1722 = vmul.f32 %v1720, 0.01
        %v1723 = vsel %vm1721, %v1720, %v1722
        %1724 = vst [vmem:[#allocation2] sm:$0x1] 0.0
        %1725 = vst [vmem:[#allocation2 + $0x1] sm:$0x3] %v1723
        %1726 = vst [vmem:[#allocation2 + $0x3] sm:$0x1] 0.0
        %1727 = vst [vmem:[#allocation2 + $0x4] sm:$0x1] 0.0
        %1728 = vst [vmem:[#allocation2 + $0x3] sm:$0xc] %v1723
        %1729 = vst [vmem:[#allocation2 + $0x7] sm:$0x1] 0.0
        %1730 = vst [vmem:[#allocation2 + $0x8] sm:$0x1] 0.0
        %1731 = vst [vmem:[#allocation2 + $0x5] sm:$0x30] %v1723
        %1732 = vst [vmem:[#allocation2 + $0xb] sm:$0x1] 0.0
        %1733 = vst [vmem:[#allocation2 + $0xc] sm:$0x1] 0.0
        %1734 = vst [vmem:[#allocation2 + $0x7] sm:$0xc0] %v1723
        %1735 = vst [vmem:[#allocation2 + $0xf] sm:$0x1] 0.0
        %v1736 = vld [vmem:[#allocation2] sm:$0x3]
        %v1737 = vld [vmem:[#allocation2 + $0x4] sm:$0x3]
        %v1738 = vld [vmem:[#allocation2 + $0x8] sm:$0x3]
        %v1739 = vld [vmem:[#allocation2 + $0xc] sm:$0x3]
        %v1741 = vrot.slane %v1737, 6
        %v1744 = vrot.slane %v1738, 4
        %v1747 = vrot.slane %v1739, 2
        %v1749 = vsel %vm1304, %v1736, %v1741
        %v1750 = vsel %vm843, %v1749, %v1744
        %v1751 = vsel %vm1307, %v1750, %v1747
        %v1752 = vld [vmem:[#allocation8] sm:$0xff]
        %v1753 = vld [vmem:[#allocation8 + $0x8] sm:$0xff]
        %v1754 = vld [vmem:[#allocation8 + $0x10] sm:$0xff]
        %v1755 = vld [vmem:[#allocation8 + $0x18] sm:$0xff]
        %v1756 = vld [vmem:[#allocation8 + $0x20] sm:$0xff]
        %v1757 = vld [vmem:[#allocation8 + $0x28] sm:$0xff]
        %v1758 = vld [vmem:[#allocation8 + $0x30] sm:$0xff]
        %v1759 = vld [vmem:[#allocation8 + $0x38] sm:$0xff]
        %v1760 = vld [vmem:[#allocation8 + $0x40] sm:$0xff]
        %v1761 = vld [vmem:[#allocation8 + $0x48] sm:$0xff]
        %v1762 = vld [vmem:[#allocation8 + $0x50] sm:$0xff]
        %v1763 = vld [vmem:[#allocation8 + $0x58] sm:$0xff]
        %v1764 = vld [vmem:[#allocation8 + $0x60] sm:$0xff]
        %v1765 = vld [vmem:[#allocation8 + $0x68] sm:$0xff]
        %v1766 = vld [vmem:[#allocation8 + $0x70] sm:$0xff]
        %v1767 = vld [vmem:[#allocation8 + $0x78] sm:$0xff]
        %v1768 = vld [vmem:[#allocation2 + $0x1] sm:$0x3]
        %v1769 = vld [vmem:[#allocation2 + $0x5] sm:$0x3]
        %v1770 = vld [vmem:[#allocation2 + $0x9] sm:$0x3]
        %v1771 = vld [vmem:[#allocation2 + $0xd] sm:$0x3]
        %v1773 = vrot.slane %v1769, 6
        %v1776 = vrot.slane %v1770, 4
        %v1779 = vrot.slane %v1771, 2
        %v1781 = vsel %vm1304, %v1768, %v1773
        %v1782 = vsel %vm843, %v1781, %v1776
        %v1783 = vsel %vm1307, %v1782, %v1779
        %s1784 = scalar_lea.vmem [#allocation8], 128
        %v1785 = vld [vmem:[%s1784] sm:$0xff]
        %v1786 = vld [vmem:[%s1784 + $0x8] sm:$0xff]
        %v1787 = vld [vmem:[%s1784 + $0x10] sm:$0xff]
        %v1788 = vld [vmem:[%s1784 + $0x18] sm:$0xff]
        %v1789 = vld [vmem:[%s1784 + $0x20] sm:$0xff]
        %v1790 = vld [vmem:[%s1784 + $0x28] sm:$0xff]
        %v1791 = vld [vmem:[%s1784 + $0x30] sm:$0xff]
        %v1792 = vld [vmem:[%s1784 + $0x38] sm:$0xff]
        %v1793 = vld [vmem:[%s1784 + $0x40] sm:$0xff]
        %v1794 = vld [vmem:[%s1784 + $0x48] sm:$0xff]
        %v1795 = vld [vmem:[%s1784 + $0x50] sm:$0xff]
        %v1796 = vld [vmem:[%s1784 + $0x58] sm:$0xff]
        %v1797 = vld [vmem:[%s1784 + $0x60] sm:$0xff]
        %v1798 = vld [vmem:[%s1784 + $0x68] sm:$0xff]
        %v1799 = vld [vmem:[%s1784 + $0x70] sm:$0xff]
        %v1800 = vld [vmem:[%s1784 + $0x78] sm:$0xff]
        %1801 = vmatprep.subr.mxu0 0.0
        %1802 = vmatpush1.msra.mxu0 %v1800
        %1803 = vmatprep.subr.mxu0 0.0
        %1804 = vmatpush1.msra.mxu0 %v1799
        %1805 = vmatprep.subr.mxu0 0.0
        %1806 = vmatpush1.msra.mxu0 %v1798
        %1807 = vmatprep.subr.mxu0 0.0
        %1808 = vmatpush1.msra.mxu0 %v1797
        %1809 = vmatprep.subr.mxu0 0.0
        %1810 = vmatpush1.msra.mxu0 %v1796
        %1811 = vmatprep.subr.mxu0 0.0
        %1812 = vmatpush1.msra.mxu0 %v1795
        %1813 = vmatprep.subr.mxu0 0.0
        %1814 = vmatpush1.msra.mxu0 %v1794
        %1815 = vmatprep.subr.mxu0 0.0
        %1816 = vmatpush1.msra.mxu0 %v1793
        %1817 = vmatprep.subr.mxu0 0.0
        %1818 = vmatpush1.msra.mxu0 %v1792
        %1819 = vmatprep.subr.mxu0 0.0
        %1820 = vmatpush1.msra.mxu0 %v1791
        %1821 = vmatprep.subr.mxu0 0.0
        %1822 = vmatpush1.msra.mxu0 %v1790
        %1823 = vmatprep.subr.mxu0 0.0
        %1824 = vmatpush1.msra.mxu0 %v1789
        %1825 = vmatprep.subr.mxu0 0.0
        %1826 = vmatpush1.msra.mxu0 %v1788
        %1827 = vmatprep.subr.mxu0 0.0
        %1828 = vmatpush1.msra.mxu0 %v1787
        %1829 = vmatprep.subr.mxu0 0.0
        %1830 = vmatpush1.msra.mxu0 %v1786
        %1831 = vmatprep.subr.mxu0 0.0
        %1832 = vmatpush1.msra.mxu0 %v1785
        %1833 = vmatprep.subr.mxu0 0.0
        %1834 = vmatpush2.msra.mxu0 0.0
        %1835 = vmatprep.subr.mxu0 0.0
        %1836 = vmatpush2.msra.mxu0 0.0
        %1837 = vmatprep.subr.mxu0 0.0
        %1838 = vmatpush2.msra.mxu0 0.0
        %1839 = vmatprep.subr.mxu0 0.0
        %1840 = vmatpush2.msra.mxu0 0.0
        %1841 = vmatprep.subr.mxu0 0.0
        %1842 = vmatpush2.msra.mxu0 0.0
        %1843 = vmatprep.subr.mxu0 0.0
        %1844 = vmatpush2.msra.mxu0 0.0
        %1845 = vmatprep.subr.mxu0 0.0
        %1846 = vmatpush2.msra.mxu0 0.0
        %1847 = vmatprep.subr.mxu0 0.0
        %1848 = vmatpush2.msra.mxu0 0.0
        %1849 = vmatprep.subr.mxu0 0.0
        %1850 = vmatpush2.msra.mxu0 0.0
        %1851 = vmatprep.subr.mxu0 0.0
        %1852 = vmatpush2.msra.mxu0 0.0
        %1853 = vmatprep.subr.mxu0 0.0
        %1854 = vmatpush2.msra.mxu0 0.0
        %1855 = vmatprep.subr.mxu0 0.0
        %1856 = vmatpush2.msra.mxu0 0.0
        %1857 = vmatprep.subr.mxu0 0.0
        %1858 = vmatpush2.msra.mxu0 0.0
        %1859 = vmatprep.subr.mxu0 0.0
        %1860 = vmatpush2.msra.mxu0 0.0
        %1861 = vmatprep.subr.mxu0 0.0
        %1862 = vmatpush2.msra.mxu0 0.0
        %1863 = vmatprep.subr.mxu0 0.0
        %1864 = vmatpush2.msra.mxu0 0.0
        %1865 = vmatprep.mubr.f32.mxu0 0.0
        %1866 = vmatmul.mubr.f32.gmra.mxu0 %v1783
        %v1867 = vpop.f32.mrf.mxu0
        %v1868 = vadd.f32 0.0, %v1867
        %v1869 = vpop.f32.mrf.mxu0
        %1870 = vdwg.mxu0
        %1871 = vmatprep.subr.mxu0 0.0
        %1872 = vmatpush1.msra.mxu0 %v1767
        %1873 = vmatprep.subr.mxu0 0.0
        %1874 = vmatpush1.msra.mxu0 %v1766
        %1875 = vmatprep.subr.mxu0 0.0
        %1876 = vmatpush1.msra.mxu0 %v1765
        %1877 = vmatprep.subr.mxu0 0.0
        %1878 = vmatpush1.msra.mxu0 %v1764
        %1879 = vmatprep.subr.mxu0 0.0
        %1880 = vmatpush1.msra.mxu0 %v1763
        %1881 = vmatprep.subr.mxu0 0.0
        %1882 = vmatpush1.msra.mxu0 %v1762
        %1883 = vmatprep.subr.mxu0 0.0
        %1884 = vmatpush1.msra.mxu0 %v1761
        %1885 = vmatprep.subr.mxu0 0.0
        %1886 = vmatpush1.msra.mxu0 %v1760
        %1887 = vmatprep.subr.mxu0 0.0
        %1888 = vmatpush1.msra.mxu0 %v1759
        %1889 = vmatprep.subr.mxu0 0.0
        %1890 = vmatpush1.msra.mxu0 %v1758
        %1891 = vmatprep.subr.mxu0 0.0
        %1892 = vmatpush1.msra.mxu0 %v1757
        %1893 = vmatprep.subr.mxu0 0.0
        %1894 = vmatpush1.msra.mxu0 %v1756
        %1895 = vmatprep.subr.mxu0 0.0
        %1896 = vmatpush1.msra.mxu0 %v1755
        %1897 = vmatprep.subr.mxu0 0.0
        %1898 = vmatpush1.msra.mxu0 %v1754
        %1899 = vmatprep.subr.mxu0 0.0
        %1900 = vmatpush1.msra.mxu0 %v1753
        %1901 = vmatprep.subr.mxu0 0.0
        %1902 = vmatpush1.msra.mxu0 %v1752
        %1903 = vmatprep.subr.mxu0 0.0
        %1904 = vmatpush2.msra.mxu0 0.0
        %1905 = vmatprep.subr.mxu0 0.0
        %1906 = vmatpush2.msra.mxu0 0.0
        %1907 = vmatprep.subr.mxu0 0.0
        %1908 = vmatpush2.msra.mxu0 0.0
        %1909 = vmatprep.subr.mxu0 0.0
        %1910 = vmatpush2.msra.mxu0 0.0
        %1911 = vmatprep.subr.mxu0 0.0
        %1912 = vmatpush2.msra.mxu0 0.0
        %1913 = vmatprep.subr.mxu0 0.0
        %1914 = vmatpush2.msra.mxu0 0.0
        %1915 = vmatprep.subr.mxu0 0.0
        %1916 = vmatpush2.msra.mxu0 0.0
        %1917 = vmatprep.subr.mxu0 0.0
        %1918 = vmatpush2.msra.mxu0 0.0
        %1919 = vmatprep.subr.mxu0 0.0
        %1920 = vmatpush2.msra.mxu0 0.0
        %1921 = vmatprep.subr.mxu0 0.0
        %1922 = vmatpush2.msra.mxu0 0.0
        %1923 = vmatprep.subr.mxu0 0.0
        %1924 = vmatpush2.msra.mxu0 0.0
        %1925 = vmatprep.subr.mxu0 0.0
        %1926 = vmatpush2.msra.mxu0 0.0
        %1927 = vmatprep.subr.mxu0 0.0
        %1928 = vmatpush2.msra.mxu0 0.0
        %1929 = vmatprep.subr.mxu0 0.0
        %1930 = vmatpush2.msra.mxu0 0.0
        %1931 = vmatprep.subr.mxu0 0.0
        %1932 = vmatpush2.msra.mxu0 0.0
        %1933 = vmatprep.subr.mxu0 0.0
        %1934 = vmatpush2.msra.mxu0 0.0
        %1935 = vmatprep.mubr.f32.mxu0 0.0
        %1936 = vmatmul.mubr.f32.gmra.mxu0 %v1751
        %v1937 = vpop.f32.mrf.mxu0
        %v1938 = vadd.f32 %v1868, %v1937
        %v1939 = vpop.f32.mrf.mxu0
        %1940 = vdwg.mxu0
        %v1941 = vld [vmem:[#allocation2 + $0x2] sm:$0x3]
        %v1942 = vld [vmem:[#allocation2 + $0x6] sm:$0x3]
        %v1943 = vld [vmem:[#allocation2 + $0xa] sm:$0x3]
        %v1944 = vld [vmem:[#allocation2 + $0xe] sm:$0x3]
        %v1946 = vrot.slane %v1942, 6
        %v1949 = vrot.slane %v1943, 4
        %v1952 = vrot.slane %v1944, 2
        %v1954 = vsel %vm1304, %v1941, %v1946
        %v1955 = vsel %vm843, %v1954, %v1949
        %v1956 = vsel %vm1307, %v1955, %v1952
        %s1957 = scalar_lea.vmem [#allocation8], 256
        %v1958 = vld [vmem:[%s1957] sm:$0xff]
        %v1959 = vld [vmem:[%s1957 + $0x8] sm:$0xff]
        %v1960 = vld [vmem:[%s1957 + $0x10] sm:$0xff]
        %v1961 = vld [vmem:[%s1957 + $0x18] sm:$0xff]
        %v1962 = vld [vmem:[%s1957 + $0x20] sm:$0xff]
        %v1963 = vld [vmem:[%s1957 + $0x28] sm:$0xff]
        %v1964 = vld [vmem:[%s1957 + $0x30] sm:$0xff]
        %v1965 = vld [vmem:[%s1957 + $0x38] sm:$0xff]
        %v1966 = vld [vmem:[%s1957 + $0x40] sm:$0xff]
        %v1967 = vld [vmem:[%s1957 + $0x48] sm:$0xff]
        %v1968 = vld [vmem:[%s1957 + $0x50] sm:$0xff]
        %v1969 = vld [vmem:[%s1957 + $0x58] sm:$0xff]
        %v1970 = vld [vmem:[%s1957 + $0x60] sm:$0xff]
        %v1971 = vld [vmem:[%s1957 + $0x68] sm:$0xff]
        %v1972 = vld [vmem:[%s1957 + $0x70] sm:$0xff]
        %v1973 = vld [vmem:[%s1957 + $0x78] sm:$0xff]
        %1974 = vmatprep.subr.mxu0 0.0
        %1975 = vmatpush1.msra.mxu0 %v1973
        %1976 = vmatprep.subr.mxu0 0.0
        %1977 = vmatpush1.msra.mxu0 %v1972
        %1978 = vmatprep.subr.mxu0 0.0
        %1979 = vmatpush1.msra.mxu0 %v1971
        %1980 = vmatprep.subr.mxu0 0.0
        %1981 = vmatpush1.msra.mxu0 %v1970
        %1982 = vmatprep.subr.mxu0 0.0
        %1983 = vmatpush1.msra.mxu0 %v1969
        %1984 = vmatprep.subr.mxu0 0.0
        %1985 = vmatpush1.msra.mxu0 %v1968
        %1986 = vmatprep.subr.mxu0 0.0
        %1987 = vmatpush1.msra.mxu0 %v1967
        %1988 = vmatprep.subr.mxu0 0.0
        %1989 = vmatpush1.msra.mxu0 %v1966
        %1990 = vmatprep.subr.mxu0 0.0
        %1991 = vmatpush1.msra.mxu0 %v1965
        %1992 = vmatprep.subr.mxu0 0.0
        %1993 = vmatpush1.msra.mxu0 %v1964
        %1994 = vmatprep.subr.mxu0 0.0
        %1995 = vmatpush1.msra.mxu0 %v1963
        %1996 = vmatprep.subr.mxu0 0.0
        %1997 = vmatpush1.msra.mxu0 %v1962
        %1998 = vmatprep.subr.mxu0 0.0
        %1999 = vmatpush1.msra.mxu0 %v1961
        %2000 = vmatprep.subr.mxu0 0.0
        %2001 = vmatpush1.msra.mxu0 %v1960
        %2002 = vmatprep.subr.mxu0 0.0
        %2003 = vmatpush1.msra.mxu0 %v1959
        %2004 = vmatprep.subr.mxu0 0.0
        %2005 = vmatpush1.msra.mxu0 %v1958
        %2006 = vmatprep.subr.mxu0 0.0
        %2007 = vmatpush2.msra.mxu0 0.0
        %2008 = vmatprep.subr.mxu0 0.0
        %2009 = vmatpush2.msra.mxu0 0.0
        %2010 = vmatprep.subr.mxu0 0.0
        %2011 = vmatpush2.msra.mxu0 0.0
        %2012 = vmatprep.subr.mxu0 0.0
        %2013 = vmatpush2.msra.mxu0 0.0
        %2014 = vmatprep.subr.mxu0 0.0
        %2015 = vmatpush2.msra.mxu0 0.0
        %2016 = vmatprep.subr.mxu0 0.0
        %2017 = vmatpush2.msra.mxu0 0.0
        %2018 = vmatprep.subr.mxu0 0.0
        %2019 = vmatpush2.msra.mxu0 0.0
        %2020 = vmatprep.subr.mxu0 0.0
        %2021 = vmatpush2.msra.mxu0 0.0
        %2022 = vmatprep.subr.mxu0 0.0
        %2023 = vmatpush2.msra.mxu0 0.0
        %2024 = vmatprep.subr.mxu0 0.0
        %2025 = vmatpush2.msra.mxu0 0.0
        %2026 = vmatprep.subr.mxu0 0.0
        %2027 = vmatpush2.msra.mxu0 0.0
        %2028 = vmatprep.subr.mxu0 0.0
        %2029 = vmatpush2.msra.mxu0 0.0
        %2030 = vmatprep.subr.mxu0 0.0
        %2031 = vmatpush2.msra.mxu0 0.0
        %2032 = vmatprep.subr.mxu0 0.0
        %2033 = vmatpush2.msra.mxu0 0.0
        %2034 = vmatprep.subr.mxu0 0.0
        %2035 = vmatpush2.msra.mxu0 0.0
        %2036 = vmatprep.subr.mxu0 0.0
        %2037 = vmatpush2.msra.mxu0 0.0
        %2038 = vmatprep.mubr.f32.mxu0 0.0
        %2039 = vmatmul.mubr.f32.gmra.mxu0 %v1956
        %v2040 = vpop.f32.mrf.mxu0
        %v2041 = vadd.f32 0.0, %v2040
        %v2042 = vpop.f32.mrf.mxu0
        %2043 = vdwg.mxu0
        %v2044 = vadd.f32 %v1938, %v2041
        %2045 = vst [vmem:[%s317] sm:$0xff] %v2044
        %v2047 = vrot.slane %v1723, 1
        %v2049 = vrot.slane %v2047, 1
        %v2051 = vrot.slane %v1723, 2
        %v2052 = vrot.slane %v2047, 2
        %v2055 = vrot.slane %v1723, 3
        %v2056 = vrot.slane %v2047, 3
        %vm2059 = vcmask 1040384
        %v2060 = vsel %vm2059, %v1723, %v2047
        %v2061 = vsel %vm2059, %v2047, %v2049
        %v2062 = vsel %vm1304, %v2060, %v2051
        %v2063 = vsel %vm1304, %v2061, %v2052
        %vm2064 = vcmask 1042432
        %v2065 = vsel %vm2064, %v2062, %v2055
        %v2066 = vsel %vm2064, %v2063, %v2056
        %v2067 = vld [vmem:[#allocation9] sm:$0xff]
        %v2068 = vld [vmem:[#allocation9 + $0x8] sm:$0xff]
        %v2069 = vld [vmem:[#allocation9 + $0x10] sm:$0xff]
        %v2070 = vld [vmem:[#allocation9 + $0x18] sm:$0xff]
        %v2071 = vld [vmem:[#allocation9 + $0x20] sm:$0xff]
        %v2072 = vld [vmem:[#allocation9 + $0x28] sm:$0xff]
        %v2073 = vld [vmem:[#allocation9 + $0x30] sm:$0xff]
        %v2074 = vld [vmem:[#allocation9 + $0x38] sm:$0xff]
        %v2075 = vld [vmem:[#allocation9 + $0x40] sm:$0xff]
        %v2076 = vld [vmem:[#allocation9 + $0x48] sm:$0xff]
        %v2077 = vld [vmem:[#allocation9 + $0x50] sm:$0xff]
        %v2078 = vld [vmem:[#allocation9 + $0x58] sm:$0xff]
        %v2079 = vld [vmem:[#allocation9 + $0x60] sm:$0xff]
        %v2080 = vld [vmem:[#allocation9 + $0x68] sm:$0xff]
        %v2081 = vld [vmem:[#allocation9 + $0x70] sm:$0xff]
        %v2082 = vld [vmem:[#allocation9 + $0x78] sm:$0xff]
        %v2083 = vld [vmem:[#allocation9 + $0x80] sm:$0xff]
        %v2084 = vld [vmem:[#allocation9 + $0x88] sm:$0xff]
        %v2085 = vld [vmem:[#allocation9 + $0x90] sm:$0xff]
        %v2086 = vld [vmem:[#allocation9 + $0x98] sm:$0xff]
        %v2087 = vld [vmem:[#allocation9 + $0xa0] sm:$0xff]
        %v2088 = vld [vmem:[#allocation9 + $0xa8] sm:$0xff]
        %v2089 = vld [vmem:[#allocation9 + $0xb0] sm:$0xff]
        %v2090 = vld [vmem:[#allocation9 + $0xb8] sm:$0xff]
        %v2091 = vld [vmem:[#allocation9 + $0xc0] sm:$0xff]
        %v2092 = vld [vmem:[#allocation9 + $0xc8] sm:$0xff]
        %v2093 = vld [vmem:[#allocation9 + $0xd0] sm:$0xff]
        %v2094 = vld [vmem:[#allocation9 + $0xd8] sm:$0xff]
        %v2095 = vld [vmem:[#allocation9 + $0xe0] sm:$0xff]
        %v2096 = vld [vmem:[#allocation9 + $0xe8] sm:$0xff]
        %v2097 = vld [vmem:[#allocation9 + $0xf0] sm:$0xff]
        %v2098 = vld [vmem:[#allocation9 + $0xf8] sm:$0xff]
        %2099 = vmatprep.subr.mxu0 0.0
        %2100 = vmatpush1.msra.mxu0 %v2082
        %2101 = vmatprep.subr.mxu0 0.0
        %2102 = vmatpush1.msra.mxu0 %v2081
        %2103 = vmatprep.subr.mxu0 0.0
        %2104 = vmatpush1.msra.mxu0 %v2080
        %2105 = vmatprep.subr.mxu0 0.0
        %2106 = vmatpush1.msra.mxu0 %v2079
        %2107 = vmatprep.subr.mxu0 0.0
        %2108 = vmatpush1.msra.mxu0 %v2078
        %2109 = vmatprep.subr.mxu0 0.0
        %2110 = vmatpush1.msra.mxu0 %v2077
        %2111 = vmatprep.subr.mxu0 0.0
        %2112 = vmatpush1.msra.mxu0 %v2076
        %2113 = vmatprep.subr.mxu0 0.0
        %2114 = vmatpush1.msra.mxu0 %v2075
        %2115 = vmatprep.subr.mxu0 0.0
        %2116 = vmatpush1.msra.mxu0 %v2074
        %2117 = vmatprep.subr.mxu0 0.0
        %2118 = vmatpush1.msra.mxu0 %v2073
        %2119 = vmatprep.subr.mxu0 0.0
        %2120 = vmatpush1.msra.mxu0 %v2072
        %2121 = vmatprep.subr.mxu0 0.0
        %2122 = vmatpush1.msra.mxu0 %v2071
        %2123 = vmatprep.subr.mxu0 0.0
        %2124 = vmatpush1.msra.mxu0 %v2070
        %2125 = vmatprep.subr.mxu0 0.0
        %2126 = vmatpush1.msra.mxu0 %v2069
        %2127 = vmatprep.subr.mxu0 0.0
        %2128 = vmatpush1.msra.mxu0 %v2068
        %2129 = vmatprep.subr.mxu0 0.0
        %2130 = vmatpush1.msra.mxu0 %v2067
        %2131 = vmatprep.subr.mxu0 0.0
        %2132 = vmatpush2.msra.mxu0 %v2098
        %2133 = vmatprep.subr.mxu0 0.0
        %2134 = vmatpush2.msra.mxu0 %v2097
        %2135 = vmatprep.subr.mxu0 0.0
        %2136 = vmatpush2.msra.mxu0 %v2096
        %2137 = vmatprep.subr.mxu0 0.0
        %2138 = vmatpush2.msra.mxu0 %v2095
        %2139 = vmatprep.subr.mxu0 0.0
        %2140 = vmatpush2.msra.mxu0 %v2094
        %2141 = vmatprep.subr.mxu0 0.0
        %2142 = vmatpush2.msra.mxu0 %v2093
        %2143 = vmatprep.subr.mxu0 0.0
        %2144 = vmatpush2.msra.mxu0 %v2092
        %2145 = vmatprep.subr.mxu0 0.0
        %2146 = vmatpush2.msra.mxu0 %v2091
        %2147 = vmatprep.subr.mxu0 0.0
        %2148 = vmatpush2.msra.mxu0 %v2090
        %2149 = vmatprep.subr.mxu0 0.0
        %2150 = vmatpush2.msra.mxu0 %v2089
        %2151 = vmatprep.subr.mxu0 0.0
        %2152 = vmatpush2.msra.mxu0 %v2088
        %2153 = vmatprep.subr.mxu0 0.0
        %2154 = vmatpush2.msra.mxu0 %v2087
        %2155 = vmatprep.subr.mxu0 0.0
        %2156 = vmatpush2.msra.mxu0 %v2086
        %2157 = vmatprep.subr.mxu0 0.0
        %2158 = vmatpush2.msra.mxu0 %v2085
        %2159 = vmatprep.subr.mxu0 0.0
        %2160 = vmatpush2.msra.mxu0 %v2084
        %2161 = vmatprep.subr.mxu0 0.0
        %2162 = vmatpush2.msra.mxu0 %v2083
        %2163 = vmatprep.mubr.f32.mxu0 %v2066
        %2164 = vmatmul.mubr.f32.gmra.mxu0 %v2065
        %v2165 = vpop.f32.mrf.mxu0
        %v2166 = vadd.f32 0.0, %v2165
        %v2167 = vpop.f32.mrf.mxu0
        %2168 = vdwg.mxu0
        %2169 = vst [vmem:[%s324] sm:$0xf] %v2166
        %s2170 = sand.u32 %s147, 1
        %s2171 = scalar_lea.sflag [#allocation5], %s2170
        %s2172 = sand.u32 %s147, 1
        %s2173 = smul.addr %s2172, 8
        %s2174 = scalar_lea.vmem [#allocation11], %s2173
        %s2175 = sand.u32 %s173, 1
        %s2176 = scalar_lea.sflag [#allocation13], %s2175
        %s2177 = sand.u32 %s173, 1
        %s2178 = smul.addr %s2177, 4
        %s2179 = scalar_lea.vmem [#allocation12], %s2178
        // Predicated region
        $region57: #{tpu_custom_call.1} parent=39 // pred_check
          %p2180 = pneg %p157
        $region58: #{tpu_custom_call.1} parent=39 // pred_check_branch
          %2182 = sbr.rel (%p2180) target = $region60
        $region59: #{tpu_custom_call.1} parent=39 // pred_region
          %s2184 = ssub.s32 128, 128
          %2185 = vsyncadd %s2171, %s2184
          %s2186 = smul.addr %s29, 128
          %s2187 = scalar_lea.hbm %s5, %s2186
          %s2189 = sshll.u32 %s2174, 4
          %s2190 = int_to_ptr.vmem [resolvable:$true] %s2189
          %2192 = dma.vmem_to_hbm [thread:$0]  %s2190, 128, %s2187, %s2171
        $region60: #{tpu_custom_call.1} parent=39 // pred_fallthru
          _
        // Predicated region
        $region61: #{tpu_custom_call.1} parent=39 // pred_check
          %p2193 = pneg %p183
        $region62: #{tpu_custom_call.1} parent=39 // pred_check_branch
          %2195 = sbr.rel (%p2193) target = $region64
        $region63: #{tpu_custom_call.1} parent=39 // pred_region
          %s2197 = ssub.s32 64, 64
          %2198 = vsyncadd %s2176, %s2197
          %s2199 = smul.addr %s29, 64
          %s2200 = scalar_lea.hbm %s6, %s2199
          %s2202 = sshll.u32 %s2179, 4
          %s2203 = int_to_ptr.vmem [resolvable:$true] %s2202
          %2205 = dma.vmem_to_hbm [thread:$0]  %s2203, 64, %s2200, %s2176
        $region64: #{tpu_custom_call.1} parent=39 // pred_fallthru
          _
      $region40: #{tpu_custom_call.1} parent=5 // pred_fallthru
        _
      %p2206 = scmp.le.s32.totalorder 2, %s24
      // Predicated region
      $region65: #{tpu_custom_call.1} parent=5 // pred_check
        %p2207 = pneg %p2206
      $region66: #{tpu_custom_call.1} parent=5 // pred_check_branch
        %2209 = sbr.rel (%p2207) target = $region68
      $region67: #{tpu_custom_call.1} parent=5 // pred_region
        %s2210 = ssub.s32 %s24, 2
        // Predicated region
        $region69: #{tpu_custom_call.1} parent=67 // pred_check
          %p2211 = pneg %p163
        $region70: #{tpu_custom_call.1} parent=67 // pred_check_branch
          %2213 = sbr.rel (%p2211) target = $region72
        $region71: #{tpu_custom_call.1} parent=67 // pred_region
          %s2214 = sand.u32 %s148, 1
          %s2215 = scalar_lea.sflag [#allocation5], %s2214
          %s2216 = sand.u32 %s148, 1
          %s2217 = smul.addr %s2216, 8
          %s2218 = scalar_lea.vmem [#allocation11], %s2217
          %2219 = dma.done %s2215, 128
        $region72: #{tpu_custom_call.1} parent=67 // pred_fallthru
          _
        // Predicated region
        $region73: #{tpu_custom_call.1} parent=67 // pred_check
          %p2220 = pneg %p189
        $region74: #{tpu_custom_call.1} parent=67 // pred_check_branch
          %2222 = sbr.rel (%p2220) target = $region76
        $region75: #{tpu_custom_call.1} parent=67 // pred_region
          %s2223 = sand.u32 %s174, 1
          %s2224 = scalar_lea.sflag [#allocation13], %s2223
          %s2225 = sand.u32 %s174, 1
          %s2226 = smul.addr %s2225, 4
          %s2227 = scalar_lea.vmem [#allocation12], %s2226
          %2228 = dma.done %s2224, 64
        $region76: #{tpu_custom_call.1} parent=67 // pred_fallthru
          _
      $region68: #{tpu_custom_call.1} parent=5 // pred_fallthru
        _
    $region6: #{tpu_custom_call.1} parent=1 // loop_footer
      %s28 = sadd.s32 1, %s24
    $region7: #{tpu_custom_call.1} parent=1 // loop_footer_branch
      %23 = sbr.rel target = $region3
    $region8: #{tpu_custom_call.1} parent=1 // loop_exit
      _
    %2229 = vsyncpa [#allocation4], 1
    %s2230 = scalar_lea.sflag [#allocation4], 1
    %2231 = vsyncpa %s2230, 1
    %2232 = vsyncpa [#allocation7], 1
    %2233 = vsyncpa [#allocation10], 1
    %2234 = vsyncpa [#allocation5], 1
    %s2235 = scalar_lea.sflag [#allocation5], 1
    %2236 = vsyncpa %s2235, 1
    %2237 = vsyncpa [#allocation13], 1
    %s2238 = scalar_lea.sflag [#allocation13], 1
    %2239 = vsyncpa %s2238, 1

</llo_original>
